<compile_context>
chip_gen: v7x
topology: tpu7x:2x2x1
jax: 0.10.0
libtpu: 0.0.40
codegen_flags: <defaults>
</compile_context>

<pallas_src>
import functools

import jax
import jax.numpy as jnp
from jax.experimental import pallas as pl
from jax.experimental.pallas import tpu as pltpu

BN_EPS = 1e-5
_VMEM_LIMIT = 32 * 1024 * 1024          # scoped-VMEM request (safe on v5e/v6e/v7x)
_FUSED_VMEM_BUDGET = 20 * 1024 * 1024   # use the single-call fused path below this


def _round_up(x, m):
    return (x + m - 1) // m * m


# ---------------------------------------------------------------------------
# Fused path kernel: matmul + BN stats + BN/ReLU epilogue in one pallas_call.
# ---------------------------------------------------------------------------
def _fused_conv_bn_relu_kernel(p_ref, w_ref, g_ref, b_ref, o_ref,
                               y_scr, sum_scr, sumsq_scr,
                               *, tm, m_real, c_out, eps):
    """p_ref: (tm, Kp) bf16 patches   w_ref: (Kp, Cp) bf16 weights
    g_ref/b_ref: (1, Cp) f32 gamma/beta   o_ref: (Mp, c_out) bf16 (resident)
    y_scr: (Mp, Cp) f32 pre-BN scratch    sum/sumsq_scr: (1, Cp) f32 stats."""
    i = pl.program_id(0)

    @pl.when(i == 0)
    def _():
        sum_scr[...] = jnp.zeros_like(sum_scr)
        sumsq_scr[...] = jnp.zeros_like(sumsq_scr)

    # bf16 MXU matmul, f32 accumulation.
    acc = jnp.dot(p_ref[...], w_ref[...], preferred_element_type=jnp.float32)
    row0 = pl.multiple_of(i * tm, tm)
    y_scr[pl.ds(row0, tm), :] = acc

    # One-pass batch statistics (zero-padded rows/cols contribute exactly 0,
    # since no conv bias is added; we divide by the real M later).
    # TODO(synk): switch to shifted/Welford accumulation if tolerances tighten.
    sum_scr[...] += jnp.sum(acc, axis=0, keepdims=True)
    sumsq_scr[...] += jnp.sum(acc * acc, axis=0, keepdims=True)

    @pl.when(i == pl.num_programs(0) - 1)
    def _():
        inv_m = 1.0 / m_real
        mu = sum_scr[...] * inv_m
        var = jnp.maximum(sumsq_scr[...] * inv_m - mu * mu, 0.0)  # biased var
        scale = g_ref[...] * jax.lax.rsqrt(var + eps)
        shift = b_ref[...] - mu * scale
        cp = y_scr.shape[-1]
        scale_b = jnp.broadcast_to(scale, (tm, cp))   # hoisted out of the loop
        shift_b = jnp.broadcast_to(shift, (tm, cp))

        def body(t, carry):
            r0 = pl.multiple_of(t * tm, tm)
            yt = y_scr[pl.ds(r0, tm), :]
            ot = jnp.maximum(yt * scale_b + shift_b, 0.0)
            if c_out != cp:                       # write only the real channels
                ot = ot[:, :c_out]
            o_ref[pl.ds(r0, tm), :] = ot.astype(o_ref.dtype)
            return carry

        jax.lax.fori_loop(0, pl.num_programs(0), body, 0)


# ---------------------------------------------------------------------------
# Fallback path kernels (large layers): two pallas_calls.
# ---------------------------------------------------------------------------
def _matmul_partial_stats_kernel(p_ref, w_ref, y_ref, psum_ref, psumsq_ref):
    """Pass 1: bf16 y tile + per-tile (8, Cp) partial sum / sum-of-squares."""
    acc = jnp.dot(p_ref[...], w_ref[...], preferred_element_type=jnp.float32)
    y_ref[...] = acc.astype(y_ref.dtype)                 # bf16 pre-BN activation
    tm, cp = acc.shape
    a3 = acc.reshape(tm // 8, 8, cp)                     # sublane-aligned fold
    psum_ref[...] = jnp.sum(a3, axis=0)                  # (8, Cp) partial sums
    psumsq_ref[...] = jnp.sum(a3 * a3, axis=0)


def _bn_relu_kernel(y_ref, scale_ref, shift_ref, o_ref):
    """Pass 2: folded BN + ReLU, f32 math (v5e-safe), bf16 in/out."""
    y = y_ref[...].astype(jnp.float32)
    o_ref[...] = jnp.maximum(y * scale_ref[...] + shift_ref[...],
                             0.0).astype(o_ref.dtype)


# ---------------------------------------------------------------------------
# One encoder block.
# ---------------------------------------------------------------------------
def conv_bn_relu_block(x_nhwc, w_hwio, gamma, beta, *, stride, pad, tile_m=512):
    """ReflectionPad -> Conv -> BatchNorm(train) -> ReLU.  x_nhwc: (N,H,W,Cin) bf16."""
    N, H, W, Cin = x_nhwc.shape
    KH, KW, _, Cout = w_hwio.shape

    # Reflection padding (nn.ReflectionPad2d), done in bf16 — glue.
    xp = jnp.pad(x_nhwc, ((0, 0), (pad, pad), (pad, pad), (0, 0)), mode="reflect")
    Hp, Wp = H + 2 * pad, W + 2 * pad
    Ho = (Hp - KH) // stride + 1
    Wo = (Wp - KW) // stride + 1

    # bf16 im2col patch extraction — glue.
    # TODO(synk): replace with in-kernel halo DMA to kill the KH*KW read blowup.
    cols = []
    for ki in range(KH):
        for kj in range(KW):
            cols.append(
                xp[:,
                   ki:ki + stride * (Ho - 1) + 1:stride,
                   kj:kj + stride * (Wo - 1) + 1:stride,
                   :])
    patches = jnp.concatenate(cols, axis=-1).reshape(N * Ho * Wo, KH * KW * Cin)

    M, K = patches.shape
    tm = min(min(tile_m, 1024), _round_up(M, 8))   # cap tm (v7x: 64 MiB VMEM / TC)
    Mp = _round_up(M, tm)
    Kp = _round_up(K, 128)                         # lane-aligned K
    Cp = _round_up(Cout, 128)                      # lane-aligned matmul width
    n_tiles = Mp // tm

    patches_p = jnp.pad(patches, ((0, Mp - M), (0, Kp - K)))          # bf16 already
    w_p = jnp.pad(w_hwio.reshape(K, Cout).astype(jnp.bfloat16),
                  ((0, Kp - K), (0, Cp - Cout)))
    gamma_p = jnp.pad(gamma.astype(jnp.float32), ((0, 0), (0, Cp - Cout)))
    beta_p = jnp.pad(beta.astype(jnp.float32), ((0, 0), (0, Cp - Cout)))

    # Conv bias is omitted on purpose: training-mode BN subtracts the batch
    # mean, which cancels a per-channel bias exactly (forward output unchanged).

    # VMEM estimate for the fully fused single-call path.
    fused_bytes = (Mp * Cp * 4                    # resident f32 pre-BN scratch
                   + 2 * 2 * tm * Kp * 2          # double-buffered bf16 patch tiles
                   + 2 * Kp * Cp * 2              # weights
                   + 2 * Mp * Cout * 2            # resident bf16 output block
                   + 8 * Cp * 4)                  # stats / gamma / beta

    if fused_bytes <= _FUSED_VMEM_BUDGET:
        # ---------------- Fused path: one pallas_call per layer -------------
        out2d = pl.pallas_call(
            functools.partial(_fused_conv_bn_relu_kernel,
                              tm=tm, m_real=float(M), c_out=Cout, eps=BN_EPS),
            grid=(n_tiles,),
            in_specs=[
                pl.BlockSpec((tm, Kp), lambda i: (i, 0)),
                pl.BlockSpec((Kp, Cp), lambda i: (0, 0)),
                pl.BlockSpec((1, Cp), lambda i: (0, 0)),
                pl.BlockSpec((1, Cp), lambda i: (0, 0)),
            ],
            out_specs=pl.BlockSpec((Mp, Cout), lambda i: (0, 0)),
            out_shape=jax.ShapeDtypeStruct((Mp, Cout), jnp.bfloat16),
            scratch_shapes=[
                pltpu.VMEM((Mp, Cp), jnp.float32),
                pltpu.VMEM((1, Cp), jnp.float32),
                pltpu.VMEM((1, Cp), jnp.float32),
            ],
            compiler_params=pltpu.CompilerParams(
                dimension_semantics=("arbitrary",),
                vmem_limit_bytes=_VMEM_LIMIT),
        )(patches_p, w_p, gamma_p, beta_p)
        if Mp != M:
            out2d = out2d[:M]
        return out2d.reshape(N, Ho, Wo, Cout)

    # ---------------- Fallback path: large layers, two pallas_calls ---------
    # Pass 1: "parallel" over M tiles (uses both v7x TensorCores) — bf16 matmul
    # output + per-tile partial BN statistics (no resident accumulator).
    y, psum, psumsq = pl.pallas_call(
        _matmul_partial_stats_kernel,
        grid=(n_tiles,),
        in_specs=[
            pl.BlockSpec((tm, Kp), lambda i: (i, 0)),
            pl.BlockSpec((Kp, Cp), lambda i: (0, 0)),
        ],
        out_specs=(
            pl.BlockSpec((tm, Cp), lambda i: (i, 0)),
            pl.BlockSpec((8, Cp), lambda i: (i, 0)),
            pl.BlockSpec((8, Cp), lambda i: (i, 0)),
        ),
        out_shape=(
            jax.ShapeDtypeStruct((Mp, Cp), jnp.bfloat16),
            jax.ShapeDtypeStruct((n_tiles * 8, Cp), jnp.float32),
            jax.ShapeDtypeStruct((n_tiles * 8, Cp), jnp.float32),
        ),
        compiler_params=pltpu.CompilerParams(
            dimension_semantics=("parallel",),
            vmem_limit_bytes=_VMEM_LIMIT),
    )(patches_p, w_p)

    # Tiny (n_tiles*8, Cp) reductions + folded BN constants in plain JAX (glue).
    inv_m = 1.0 / float(M)
    mu = jnp.sum(psum, axis=0, keepdims=True) * inv_m
    var = jnp.maximum(jnp.sum(psumsq, axis=0, keepdims=True) * inv_m - mu * mu, 0.0)
    scale = gamma_p * jax.lax.rsqrt(var + BN_EPS)
    shift = beta_p - mu * scale

    # Pass 2: folded BN + ReLU; output aliased onto the bf16 y buffer.
    out2d = pl.pallas_call(
        _bn_relu_kernel,
        grid=(n_tiles,),
        in_specs=[
            pl.BlockSpec((tm, Cp), lambda i: (i, 0)),
            pl.BlockSpec((1, Cp), lambda i: (0, 0)),
            pl.BlockSpec((1, Cp), lambda i: (0, 0)),
        ],
        out_specs=pl.BlockSpec((tm, Cp), lambda i: (i, 0)),
        out_shape=jax.ShapeDtypeStruct((Mp, Cp), jnp.bfloat16),
        input_output_aliases={0: 0},
        compiler_params=pltpu.CompilerParams(
            dimension_semantics=("parallel",),
            vmem_limit_bytes=_VMEM_LIMIT),
    )(y, scale, shift)

    return out2d[:M, :Cout].reshape(N, Ho, Wo, Cout)


# ---------------------------------------------------------------------------
# Parameters / forward.
# ---------------------------------------------------------------------------
def init_encoder_params(key, input_nc, ngf, n_downsampling):
    """Synthetic parameters matching encoder_2d.__init__ layer shapes.

    Conv bias is omitted (cancelled exactly by the training-mode BN mean
    subtraction). Returns (params_arrays, static_layer_cfg)."""
    specs = [(input_nc, ngf, 7, 1, 3)]            # (cin, cout, k, stride, reflect_pad)
    for i in range(n_downsampling):
        mult = 2 ** i
        specs.append((ngf * mult, ngf * mult * 2, 3, 2, 1))

    params, cfg = [], []
    for (ci, co, k, s, p) in specs:
        key, k_w, k_g, k_b = jax.random.split(key, 4)
        fan_in = float(k * k * ci)
        w = jax.random.normal(k_w, (k, k, ci, co), jnp.float32) / jnp.sqrt(fan_in)
        gamma = 1.0 + 0.1 * jax.random.normal(k_g, (1, co), jnp.float32)
        beta = 0.1 * jax.random.normal(k_b, (1, co), jnp.float32)
        params.append(dict(w=w, gamma=gamma, beta=beta))
        cfg.append((s, p))
    return params, tuple(cfg)


@functools.partial(jax.jit, static_argnums=(2,))
def encoder_2d_forward(x_nchw, params, layer_cfg):
    """Forward pass of encoder_2d. Input NCHW f32, output NCHW f32 (like PyTorch).

    Note: uses training-mode BatchNorm batch statistics (PyTorch .train());
    intermediate activations are bf16 (tolerance-level difference vs f32 conv)."""
    x = jnp.transpose(x_nchw, (0, 2, 3, 1)).astype(jnp.bfloat16)   # NCHW -> NHWC, bf16
    for layer, (stride, pad) in zip(params, layer_cfg):
        x = conv_bn_relu_block(
            x, layer["w"], layer["gamma"], layer["beta"], stride=stride, pad=pad)
    return jnp.transpose(x, (0, 3, 1, 2)).astype(jnp.float32)      # NHWC -> NCHW


if __name__ == "__main__":
    # Small configuration consistent with the module:
    #   input_nc=4, ngf=8, n_downsampling=3, batch=2, spatial=16x16
    INPUT_NC, NGF, N_DOWN = 4, 8, 3
    N, H, W = 2, 16, 16

    key = jax.random.PRNGKey(0)
    key, k_x = jax.random.split(key)
    x = jax.random.normal(k_x, (N, INPUT_NC, H, W), jnp.float32)   # NCHW like PyTorch

    params, cfg = init_encoder_params(key, INPUT_NC, NGF, N_DOWN)

    out = encoder_2d_forward(x, params, cfg)
    out = jax.block_until_ready(out)

    # Expected: (2, ngf*2**n_down, H/2**n_down, W/2**n_down) = (2, 64, 2, 2)
    assert out.shape == (N, NGF * 2 ** N_DOWN, H // 2 ** N_DOWN, W // 2 ** N_DOWN), out.shape
    assert bool(jnp.all(jnp.isfinite(out))) and bool(jnp.all(out >= 0.0))  # post-ReLU
    print("KERNEL_OK")
</pallas_src>

<mosaic_0001>
module attributes {stable_mosaic.version = 11 : i64} {
  func.func @_fused_conv_bn_relu_kernel(%arg0: i32, %arg1: memref<512x256xbf16, #tpu.memory_space<vmem>>, %arg2: memref<256x128xbf16, #tpu.memory_space<vmem>>, %arg3: memref<1x128xf32, #tpu.memory_space<vmem>>, %arg4: memref<1x128xf32, #tpu.memory_space<vmem>>, %arg5: memref<512x8xbf16, #tpu.memory_space<vmem>>, %arg6: memref<512x128xf32, #tpu.memory_space<vmem>>, %arg7: memref<1x128xf32, #tpu.memory_space<vmem>>, %arg8: memref<1x128xf32, #tpu.memory_space<vmem>>) attributes {dimension_semantics = [#tpu.dimension_semantics<arbitrary>], iteration_bounds = array<i64: 1>, scalar_prefetch = 0 : i64, scratch_operands = 3 : i64, tpu.core_type = #tpu.core_type<tc>, window_params = [{transform_indices = @transform_0, window_bounds = array<i64: 512, 256>}, {pipeline_mode = #tpu.pipeline_mode<synchronous>, transform_indices = @transform_1, window_bounds = array<i64: 256, 128>}, {pipeline_mode = #tpu.pipeline_mode<synchronous>, transform_indices = @transform_2, window_bounds = array<i64: 1, 128>}, {pipeline_mode = #tpu.pipeline_mode<synchronous>, transform_indices = @transform_3, window_bounds = array<i64: 1, 128>}, {pipeline_mode = #tpu.pipeline_mode<synchronous>, transform_indices = @transform_4, window_bounds = array<i64: 512, 8>}]} {
    %c0_i32 = arith.constant 0 : i32
    %0 = arith.cmpi eq, %arg0, %c0_i32 : i32
    %1 = arith.extui %0 : i1 to i32
    %c0_i32_0 = arith.constant 0 : i32
    %2 = arith.cmpi ne, %1, %c0_i32_0 : i32
    scf.if %2 {
      %cst_17 = arith.constant 0.000000e+00 : f32
      %24 = vector.broadcast %cst_17 : f32 to vector<1x128xf32>
      %c0_18 = arith.constant 0 : index
      %c0_19 = arith.constant 0 : index
      %25 = vector.load %arg7[%c0_18, %c0_19] : memref<1x128xf32, #tpu.memory_space<vmem>>, vector<1x128xf32>
      tpu.vector_store %arg7[%c0_18, %c0_19], %24 {strides = array<i32>} : memref<1x128xf32, #tpu.memory_space<vmem>>, vector<1x128xf32>,
      %cst_20 = arith.constant 0.000000e+00 : f32
      %26 = vector.broadcast %cst_20 : f32 to vector<1x128xf32>
      %c0_21 = arith.constant 0 : index
      %c0_22 = arith.constant 0 : index
      %27 = vector.load %arg8[%c0_21, %c0_22] : memref<1x128xf32, #tpu.memory_space<vmem>>, vector<1x128xf32>
      tpu.vector_store %arg8[%c0_21, %c0_22], %26 {strides = array<i32>} : memref<1x128xf32, #tpu.memory_space<vmem>>, vector<1x128xf32>,
    } else {
    }
    %c0 = arith.constant 0 : index
    %c0_1 = arith.constant 0 : index
    %3 = vector.load %arg1[%c0, %c0_1] : memref<512x256xbf16, #tpu.memory_space<vmem>>, vector<512x256xbf16>
    %c0_2 = arith.constant 0 : index
    %c0_3 = arith.constant 0 : index
    %4 = vector.load %arg2[%c0_2, %c0_3] : memref<256x128xbf16, #tpu.memory_space<vmem>>, vector<256x128xbf16>
    %cst = arith.constant dense<0.000000e+00> : vector<512x128xf32>
    %5 = tpu.matmul %3, %4, %cst {dimension_numbers = #tpu.dot_dimension_numbers<[1], [0], [0], [1], [0, 0, 1, 1], [], []>} : vector<512x256xbf16>, vector<256x128xbf16>, vector<512x128xf32> -> vector<512x128xf32>
    %c512_i32 = arith.constant 512 : i32
    %6 = arith.muli %arg0, %c512_i32 : i32
    %7 = tpu.assume_multiple %6, 512 : i32
    %8 = arith.index_cast %7 : i32 to index
    %c0_4 = arith.constant 0 : index
    %9 = vector.load %arg6[%8, %c0_4] : memref<512x128xf32, #tpu.memory_space<vmem>>, vector<512x128xf32>
    tpu.vector_store %arg6[%8, %c0_4], %5 {strides = array<i32>} : memref<512x128xf32, #tpu.memory_space<vmem>>, vector<512x128xf32>,
    %c0_5 = arith.constant 0 : index
    %c0_6 = arith.constant 0 : index
    %10 = vector.load %arg7[%c0_5, %c0_6] : memref<1x128xf32, #tpu.memory_space<vmem>>, vector<1x128xf32>
    %cst_7 = arith.constant dense<0.000000e+00> : vector<128xf32>
    %11 = vector.multi_reduction <add>, %5, %cst_7 [0] : vector<512x128xf32> to vector<128xf32>
    %12 = vector.shape_cast %11 : vector<128xf32> to vector<1x128xf32>
    %13 = arith.addf %10, %12 : vector<1x128xf32>
    %c0_8 = arith.constant 0 : index
    %c0_9 = arith.constant 0 : index
    %14 = vector.load %arg7[%c0_8, %c0_9] : memref<1x128xf32, #tpu.memory_space<vmem>>, vector<1x128xf32>
    tpu.vector_store %arg7[%c0_8, %c0_9], %13 {strides = array<i32>} : memref<1x128xf32, #tpu.memory_space<vmem>>, vector<1x128xf32>,
    %c0_10 = arith.constant 0 : index
    %c0_11 = arith.constant 0 : index
    %15 = vector.load %arg8[%c0_10, %c0_11] : memref<1x128xf32, #tpu.memory_space<vmem>>, vector<1x128xf32>
    %16 = arith.mulf %5, %5 : vector<512x128xf32>
    %cst_12 = arith.constant dense<0.000000e+00> : vector<128xf32>
    %17 = vector.multi_reduction <add>, %16, %cst_12 [0] : vector<512x128xf32> to vector<128xf32>
    %18 = vector.shape_cast %17 : vector<128xf32> to vector<1x128xf32>
    %19 = arith.addf %15, %18 : vector<1x128xf32>
    %c0_13 = arith.constant 0 : index
    %c0_14 = arith.constant 0 : index
    %20 = vector.load %arg8[%c0_13, %c0_14] : memref<1x128xf32, #tpu.memory_space<vmem>>, vector<1x128xf32>
    tpu.vector_store %arg8[%c0_13, %c0_14], %19 {strides = array<i32>} : memref<1x128xf32, #tpu.memory_space<vmem>>, vector<1x128xf32>,
    %c0_i32_15 = arith.constant 0 : i32
    %21 = arith.cmpi eq, %arg0, %c0_i32_15 : i32
    %22 = arith.extui %21 : i1 to i32
    %c0_i32_16 = arith.constant 0 : i32
    %23 = arith.cmpi ne, %22, %c0_i32_16 : i32
    scf.if %23 {
      %c0_17 = arith.constant 0 : index
      %c0_18 = arith.constant 0 : index
      %24 = vector.load %arg7[%c0_17, %c0_18] : memref<1x128xf32, #tpu.memory_space<vmem>>, vector<1x128xf32>
      %cst_19 = arith.constant 0.001953125 : f32
      %25 = vector.broadcast %cst_19 : f32 to vector<1x128xf32>
      %26 = arith.mulf %24, %25 : vector<1x128xf32>
      %c0_20 = arith.constant 0 : index
      %c0_21 = arith.constant 0 : index
      %27 = vector.load %arg8[%c0_20, %c0_21] : memref<1x128xf32, #tpu.memory_space<vmem>>, vector<1x128xf32>
      %cst_22 = arith.constant 0.001953125 : f32
      %28 = vector.broadcast %cst_22 : f32 to vector<1x128xf32>
      %29 = arith.mulf %27, %28 : vector<1x128xf32>
      %30 = arith.mulf %26, %26 : vector<1x128xf32>
      %31 = arith.subf %29, %30 : vector<1x128xf32>
      %cst_23 = arith.constant 0.000000e+00 : f32
      %32 = vector.broadcast %cst_23 : f32 to vector<1x128xf32>
      %33 = arith.maximumf %31, %32 : vector<1x128xf32>
      %c0_24 = arith.constant 0 : index
      %c0_25 = arith.constant 0 : index
      %34 = vector.load %arg3[%c0_24, %c0_25] : memref<1x128xf32, #tpu.memory_space<vmem>>, vector<1x128xf32>
      %cst_26 = arith.constant 9.99999974E-6 : f32
      %35 = vector.broadcast %cst_26 : f32 to vector<1x128xf32>
      %36 = arith.addf %33, %35 : vector<1x128xf32>
      %37 = math.rsqrt %36 : vector<1x128xf32>
      %38 = arith.mulf %34, %37 : vector<1x128xf32>
      %c0_27 = arith.constant 0 : index
      %c0_28 = arith.constant 0 : index
      %39 = vector.load %arg4[%c0_27, %c0_28] : memref<1x128xf32, #tpu.memory_space<vmem>>, vector<1x128xf32>
      %40 = arith.mulf %26, %38 : vector<1x128xf32>
      %41 = arith.subf %39, %40 : vector<1x128xf32>
      %42 = vector.shape_cast %38 : vector<1x128xf32> to vector<1x128xf32>
      %43 = vector.broadcast %42 : vector<1x128xf32> to vector<512x128xf32>
      %44 = vector.shape_cast %41 : vector<1x128xf32> to vector<1x128xf32>
      %45 = vector.broadcast %44 : vector<1x128xf32> to vector<512x128xf32>
      %c0_i32_29 = arith.constant 0 : i32
      %c512_i32_30 = arith.constant 512 : i32
      %46 = arith.muli %c0_i32_29, %c512_i32_30 : i32
      %47 = tpu.assume_multiple %46, 512 : i32
      %48 = arith.index_cast %47 : i32 to index
      %c0_31 = arith.constant 0 : index
      %49 = vector.load %arg6[%48, %c0_31] : memref<512x128xf32, #tpu.memory_space<vmem>>, vector<512x128xf32>
      %50 = arith.mulf %49, %43 : vector<512x128xf32>
      %51 = arith.addf %50, %45 : vector<512x128xf32>
      %cst_32 = arith.constant 0.000000e+00 : f32
      %52 = vector.broadcast %cst_32 : f32 to vector<512x128xf32>
      %53 = arith.maximumf %51, %52 : vector<512x128xf32>
      %54 = vector.extract_strided_slice %53 {offsets = [0, 0], sizes = [512, 8], strides = [1, 1]} : vector<512x128xf32> to vector<512x8xf32>
      %55 = arith.truncf %54 : vector<512x8xf32> to vector<512x8xbf16>
      %56 = arith.index_cast %47 : i32 to index
      %c0_33 = arith.constant 0 : index
      %57 = vector.load %arg5[%56, %c0_33] : memref<512x8xbf16, #tpu.memory_space<vmem>>, vector<512x8xbf16>
      tpu.vector_store %arg5[%56, %c0_33], %55 {strides = array<i32>} : memref<512x8xbf16, #tpu.memory_space<vmem>>, vector<512x8xbf16>,
      %c1_i32 = arith.constant 1 : i32
    } else {
    }
    return
  }
  func.func @transform_0(%arg0: i32) -> (i32, i32) {
    %c0_i32 = arith.constant 0 : i32
    %c0_i32_0 = arith.constant 0 : i32
    return %arg0, %c0_i32 : i32, i32
  }
  func.func @transform_1(%arg0: i32) -> (i32, i32) {
    %c0_i32 = arith.constant 0 : i32
    %c0_i32_0 = arith.constant 0 : i32
    %c0_i32_1 = arith.constant 0 : i32
    return %c0_i32, %c0_i32_0 : i32, i32
  }
  func.func @transform_2(%arg0: i32) -> (i32, i32) {
    %c0_i32 = arith.constant 0 : i32
    %c0_i32_0 = arith.constant 0 : i32
    %c0_i32_1 = arith.constant 0 : i32
    return %c0_i32, %c0_i32_0 : i32, i32
  }
  func.func @transform_3(%arg0: i32) -> (i32, i32) {
    %c0_i32 = arith.constant 0 : i32
    %c0_i32_0 = arith.constant 0 : i32
    %c0_i32_1 = arith.constant 0 : i32
    return %c0_i32, %c0_i32_0 : i32, i32
  }
  func.func @transform_4(%arg0: i32) -> (i32, i32) {
    %c0_i32 = arith.constant 0 : i32
    %c0_i32_0 = arith.constant 0 : i32
    %c0_i32_1 = arith.constant 0 : i32
    return %c0_i32, %c0_i32_0 : i32, i32
  }
}

module attributes {stable_mosaic.version = 11 : i64} {
  func.func @_fused_conv_bn_relu_kernel(%arg0: i32, %arg1: memref<128x128xbf16, #tpu.memory_space<vmem>>, %arg2: memref<128x128xbf16, #tpu.memory_space<vmem>>, %arg3: memref<1x128xf32, #tpu.memory_space<vmem>>, %arg4: memref<1x128xf32, #tpu.memory_space<vmem>>, %arg5: memref<128x16xbf16, #tpu.memory_space<vmem>>, %arg6: memref<128x128xf32, #tpu.memory_space<vmem>>, %arg7: memref<1x128xf32, #tpu.memory_space<vmem>>, %arg8: memref<1x128xf32, #tpu.memory_space<vmem>>) attributes {dimension_semantics = [#tpu.dimension_semantics<arbitrary>], iteration_bounds = array<i64: 1>, scalar_prefetch = 0 : i64, scratch_operands = 3 : i64, tpu.core_type = #tpu.core_type<tc>, window_params = [{transform_indices = @transform_0, window_bounds = array<i64: 128, 128>}, {pipeline_mode = #tpu.pipeline_mode<synchronous>, transform_indices = @transform_1, window_bounds = array<i64: 128, 128>}, {pipeline_mode = #tpu.pipeline_mode<synchronous>, transform_indices = @transform_2, window_bounds = array<i64: 1, 128>}, {pipeline_mode = #tpu.pipeline_mode<synchronous>, transform_indices = @transform_3, window_bounds = array<i64: 1, 128>}, {pipeline_mode = #tpu.pipeline_mode<synchronous>, transform_indices = @transform_4, window_bounds = array<i64: 128, 16>}]} {
    %c0_i32 = arith.constant 0 : i32
    %0 = arith.cmpi eq, %arg0, %c0_i32 : i32
    %1 = arith.extui %0 : i1 to i32
    %c0_i32_0 = arith.constant 0 : i32
    %2 = arith.cmpi ne, %1, %c0_i32_0 : i32
    scf.if %2 {
      %cst_17 = arith.constant 0.000000e+00 : f32
      %24 = vector.broadcast %cst_17 : f32 to vector<1x128xf32>
      %c0_18 = arith.constant 0 : index
      %c0_19 = arith.constant 0 : index
      %25 = vector.load %arg7[%c0_18, %c0_19] : memref<1x128xf32, #tpu.memory_space<vmem>>, vector<1x128xf32>
      tpu.vector_store %arg7[%c0_18, %c0_19], %24 {strides = array<i32>} : memref<1x128xf32, #tpu.memory_space<vmem>>, vector<1x128xf32>,
      %cst_20 = arith.constant 0.000000e+00 : f32
      %26 = vector.broadcast %cst_20 : f32 to vector<1x128xf32>
      %c0_21 = arith.constant 0 : index
      %c0_22 = arith.constant 0 : index
      %27 = vector.load %arg8[%c0_21, %c0_22] : memref<1x128xf32, #tpu.memory_space<vmem>>, vector<1x128xf32>
      tpu.vector_store %arg8[%c0_21, %c0_22], %26 {strides = array<i32>} : memref<1x128xf32, #tpu.memory_space<vmem>>, vector<1x128xf32>,
    } else {
    }
    %c0 = arith.constant 0 : index
    %c0_1 = arith.constant 0 : index
    %3 = vector.load %arg1[%c0, %c0_1] : memref<128x128xbf16, #tpu.memory_space<vmem>>, vector<128x128xbf16>
    %c0_2 = arith.constant 0 : index
    %c0_3 = arith.constant 0 : index
    %4 = vector.load %arg2[%c0_2, %c0_3] : memref<128x128xbf16, #tpu.memory_space<vmem>>, vector<128x128xbf16>
    %cst = arith.constant dense<0.000000e+00> : vector<128x128xf32>
    %5 = tpu.matmul %3, %4, %cst {dimension_numbers = #tpu.dot_dimension_numbers<[1], [0], [0], [1], [0, 0, 1, 1], [], []>} : vector<128x128xbf16>, vector<128x128xbf16>, vector<128x128xf32> -> vector<128x128xf32>
    %c128_i32 = arith.constant 128 : i32
    %6 = arith.muli %arg0, %c128_i32 : i32
    %7 = tpu.assume_multiple %6, 128 : i32
    %8 = arith.index_cast %7 : i32 to index
    %c0_4 = arith.constant 0 : index
    %9 = vector.load %arg6[%8, %c0_4] : memref<128x128xf32, #tpu.memory_space<vmem>>, vector<128x128xf32>
    tpu.vector_store %arg6[%8, %c0_4], %5 {strides = array<i32>} : memref<128x128xf32, #tpu.memory_space<vmem>>, vector<128x128xf32>,
    %c0_5 = arith.constant 0 : index
    %c0_6 = arith.constant 0 : index
    %10 = vector.load %arg7[%c0_5, %c0_6] : memref<1x128xf32, #tpu.memory_space<vmem>>, vector<1x128xf32>
    %cst_7 = arith.constant dense<0.000000e+00> : vector<128xf32>
    %11 = vector.multi_reduction <add>, %5, %cst_7 [0] : vector<128x128xf32> to vector<128xf32>
    %12 = vector.shape_cast %11 : vector<128xf32> to vector<1x128xf32>
    %13 = arith.addf %10, %12 : vector<1x128xf32>
    %c0_8 = arith.constant 0 : index
    %c0_9 = arith.constant 0 : index
    %14 = vector.load %arg7[%c0_8, %c0_9] : memref<1x128xf32, #tpu.memory_space<vmem>>, vector<1x128xf32>
    tpu.vector_store %arg7[%c0_8, %c0_9], %13 {strides = array<i32>} : memref<1x128xf32, #tpu.memory_space<vmem>>, vector<1x128xf32>,
    %c0_10 = arith.constant 0 : index
    %c0_11 = arith.constant 0 : index
    %15 = vector.load %arg8[%c0_10, %c0_11] : memref<1x128xf32, #tpu.memory_space<vmem>>, vector<1x128xf32>
    %16 = arith.mulf %5, %5 : vector<128x128xf32>
    %cst_12 = arith.constant dense<0.000000e+00> : vector<128xf32>
    %17 = vector.multi_reduction <add>, %16, %cst_12 [0] : vector<128x128xf32> to vector<128xf32>
    %18 = vector.shape_cast %17 : vector<128xf32> to vector<1x128xf32>
    %19 = arith.addf %15, %18 : vector<1x128xf32>
    %c0_13 = arith.constant 0 : index
    %c0_14 = arith.constant 0 : index
    %20 = vector.load %arg8[%c0_13, %c0_14] : memref<1x128xf32, #tpu.memory_space<vmem>>, vector<1x128xf32>
    tpu.vector_store %arg8[%c0_13, %c0_14], %19 {strides = array<i32>} : memref<1x128xf32, #tpu.memory_space<vmem>>, vector<1x128xf32>,
    %c0_i32_15 = arith.constant 0 : i32
    %21 = arith.cmpi eq, %arg0, %c0_i32_15 : i32
    %22 = arith.extui %21 : i1 to i32
    %c0_i32_16 = arith.constant 0 : i32
    %23 = arith.cmpi ne, %22, %c0_i32_16 : i32
    scf.if %23 {
      %c0_17 = arith.constant 0 : index
      %c0_18 = arith.constant 0 : index
      %24 = vector.load %arg7[%c0_17, %c0_18] : memref<1x128xf32, #tpu.memory_space<vmem>>, vector<1x128xf32>
      %cst_19 = arith.constant 7.812500e-03 : f32
      %25 = vector.broadcast %cst_19 : f32 to vector<1x128xf32>
      %26 = arith.mulf %24, %25 : vector<1x128xf32>
      %c0_20 = arith.constant 0 : index
      %c0_21 = arith.constant 0 : index
      %27 = vector.load %arg8[%c0_20, %c0_21] : memref<1x128xf32, #tpu.memory_space<vmem>>, vector<1x128xf32>
      %cst_22 = arith.constant 7.812500e-03 : f32
      %28 = vector.broadcast %cst_22 : f32 to vector<1x128xf32>
      %29 = arith.mulf %27, %28 : vector<1x128xf32>
      %30 = arith.mulf %26, %26 : vector<1x128xf32>
      %31 = arith.subf %29, %30 : vector<1x128xf32>
      %cst_23 = arith.constant 0.000000e+00 : f32
      %32 = vector.broadcast %cst_23 : f32 to vector<1x128xf32>
      %33 = arith.maximumf %31, %32 : vector<1x128xf32>
      %c0_24 = arith.constant 0 : index
      %c0_25 = arith.constant 0 : index
      %34 = vector.load %arg3[%c0_24, %c0_25] : memref<1x128xf32, #tpu.memory_space<vmem>>, vector<1x128xf32>
      %cst_26 = arith.constant 9.99999974E-6 : f32
      %35 = vector.broadcast %cst_26 : f32 to vector<1x128xf32>
      %36 = arith.addf %33, %35 : vector<1x128xf32>
      %37 = math.rsqrt %36 : vector<1x128xf32>
      %38 = arith.mulf %34, %37 : vector<1x128xf32>
      %c0_27 = arith.constant 0 : index
      %c0_28 = arith.constant 0 : index
      %39 = vector.load %arg4[%c0_27, %c0_28] : memref<1x128xf32, #tpu.memory_space<vmem>>, vector<1x128xf32>
      %40 = arith.mulf %26, %38 : vector<1x128xf32>
      %41 = arith.subf %39, %40 : vector<1x128xf32>
      %42 = vector.shape_cast %38 : vector<1x128xf32> to vector<1x128xf32>
      %43 = vector.broadcast %42 : vector<1x128xf32> to vector<128x128xf32>
      %44 = vector.shape_cast %41 : vector<1x128xf32> to vector<1x128xf32>
      %45 = vector.broadcast %44 : vector<1x128xf32> to vector<128x128xf32>
      %c0_i32_29 = arith.constant 0 : i32
      %c128_i32_30 = arith.constant 128 : i32
      %46 = arith.muli %c0_i32_29, %c128_i32_30 : i32
      %47 = tpu.assume_multiple %46, 128 : i32
      %48 = arith.index_cast %47 : i32 to index
      %c0_31 = arith.constant 0 : index
      %49 = vector.load %arg6[%48, %c0_31] : memref<128x128xf32, #tpu.memory_space<vmem>>, vector<128x128xf32>
      %50 = arith.mulf %49, %43 : vector<128x128xf32>
      %51 = arith.addf %50, %45 : vector<128x128xf32>
      %cst_32 = arith.constant 0.000000e+00 : f32
      %52 = vector.broadcast %cst_32 : f32 to vector<128x128xf32>
      %53 = arith.maximumf %51, %52 : vector<128x128xf32>
      %54 = vector.extract_strided_slice %53 {offsets = [0, 0], sizes = [128, 16], strides = [1, 1]} : vector<128x128xf32> to vector<128x16xf32>
      %55 = arith.truncf %54 : vector<128x16xf32> to vector<128x16xbf16>
      %56 = arith.index_cast %47 : i32 to index
      %c0_33 = arith.constant 0 : index
      %57 = vector.load %arg5[%56, %c0_33] : memref<128x16xbf16, #tpu.memory_space<vmem>>, vector<128x16xbf16>
      tpu.vector_store %arg5[%56, %c0_33], %55 {strides = array<i32>} : memref<128x16xbf16, #tpu.memory_space<vmem>>, vector<128x16xbf16>,
      %c1_i32 = arith.constant 1 : i32
    } else {
    }
    return
  }
  func.func @transform_0(%arg0: i32) -> (i32, i32) {
    %c0_i32 = arith.constant 0 : i32
    %c0_i32_0 = arith.constant 0 : i32
    return %arg0, %c0_i32 : i32, i32
  }
  func.func @transform_1(%arg0: i32) -> (i32, i32) {
    %c0_i32 = arith.constant 0 : i32
    %c0_i32_0 = arith.constant 0 : i32
    %c0_i32_1 = arith.constant 0 : i32
    return %c0_i32, %c0_i32_0 : i32, i32
  }
  func.func @transform_2(%arg0: i32) -> (i32, i32) {
    %c0_i32 = arith.constant 0 : i32
    %c0_i32_0 = arith.constant 0 : i32
    %c0_i32_1 = arith.constant 0 : i32
    return %c0_i32, %c0_i32_0 : i32, i32
  }
  func.func @transform_3(%arg0: i32) -> (i32, i32) {
    %c0_i32 = arith.constant 0 : i32
    %c0_i32_0 = arith.constant 0 : i32
    %c0_i32_1 = arith.constant 0 : i32
    return %c0_i32, %c0_i32_0 : i32, i32
  }
  func.func @transform_4(%arg0: i32) -> (i32, i32) {
    %c0_i32 = arith.constant 0 : i32
    %c0_i32_0 = arith.constant 0 : i32
    %c0_i32_1 = arith.constant 0 : i32
    return %c0_i32, %c0_i32_0 : i32, i32
  }
}

module attributes {stable_mosaic.version = 11 : i64} {
  func.func @_fused_conv_bn_relu_kernel(%arg0: i32, %arg1: memref<32x256xbf16, #tpu.memory_space<vmem>>, %arg2: memref<256x128xbf16, #tpu.memory_space<vmem>>, %arg3: memref<1x128xf32, #tpu.memory_space<vmem>>, %arg4: memref<1x128xf32, #tpu.memory_space<vmem>>, %arg5: memref<32x32xbf16, #tpu.memory_space<vmem>>, %arg6: memref<32x128xf32, #tpu.memory_space<vmem>>, %arg7: memref<1x128xf32, #tpu.memory_space<vmem>>, %arg8: memref<1x128xf32, #tpu.memory_space<vmem>>) attributes {dimension_semantics = [#tpu.dimension_semantics<arbitrary>], iteration_bounds = array<i64: 1>, scalar_prefetch = 0 : i64, scratch_operands = 3 : i64, tpu.core_type = #tpu.core_type<tc>, window_params = [{transform_indices = @transform_0, window_bounds = array<i64: 32, 256>}, {pipeline_mode = #tpu.pipeline_mode<synchronous>, transform_indices = @transform_1, window_bounds = array<i64: 256, 128>}, {pipeline_mode = #tpu.pipeline_mode<synchronous>, transform_indices = @transform_2, window_bounds = array<i64: 1, 128>}, {pipeline_mode = #tpu.pipeline_mode<synchronous>, transform_indices = @transform_3, window_bounds = array<i64: 1, 128>}, {pipeline_mode = #tpu.pipeline_mode<synchronous>, transform_indices = @transform_4, window_bounds = array<i64: 32, 32>}]} {
    %c0_i32 = arith.constant 0 : i32
    %0 = arith.cmpi eq, %arg0, %c0_i32 : i32
    %1 = arith.extui %0 : i1 to i32
    %c0_i32_0 = arith.constant 0 : i32
    %2 = arith.cmpi ne, %1, %c0_i32_0 : i32
    scf.if %2 {
      %cst_17 = arith.constant 0.000000e+00 : f32
      %24 = vector.broadcast %cst_17 : f32 to vector<1x128xf32>
      %c0_18 = arith.constant 0 : index
      %c0_19 = arith.constant 0 : index
      %25 = vector.load %arg7[%c0_18, %c0_19] : memref<1x128xf32, #tpu.memory_space<vmem>>, vector<1x128xf32>
      tpu.vector_store %arg7[%c0_18, %c0_19], %24 {strides = array<i32>} : memref<1x128xf32, #tpu.memory_space<vmem>>, vector<1x128xf32>,
      %cst_20 = arith.constant 0.000000e+00 : f32
      %26 = vector.broadcast %cst_20 : f32 to vector<1x128xf32>
      %c0_21 = arith.constant 0 : index
      %c0_22 = arith.constant 0 : index
      %27 = vector.load %arg8[%c0_21, %c0_22] : memref<1x128xf32, #tpu.memory_space<vmem>>, vector<1x128xf32>
      tpu.vector_store %arg8[%c0_21, %c0_22], %26 {strides = array<i32>} : memref<1x128xf32, #tpu.memory_space<vmem>>, vector<1x128xf32>,
    } else {
    }
    %c0 = arith.constant 0 : index
    %c0_1 = arith.constant 0 : index
    %3 = vector.load %arg1[%c0, %c0_1] : memref<32x256xbf16, #tpu.memory_space<vmem>>, vector<32x256xbf16>
    %c0_2 = arith.constant 0 : index
    %c0_3 = arith.constant 0 : index
    %4 = vector.load %arg2[%c0_2, %c0_3] : memref<256x128xbf16, #tpu.memory_space<vmem>>, vector<256x128xbf16>
    %cst = arith.constant dense<0.000000e+00> : vector<32x128xf32>
    %5 = tpu.matmul %3, %4, %cst {dimension_numbers = #tpu.dot_dimension_numbers<[1], [0], [0], [1], [0, 0, 1, 1], [], []>} : vector<32x256xbf16>, vector<256x128xbf16>, vector<32x128xf32> -> vector<32x128xf32>
    %c32_i32 = arith.constant 32 : i32
    %6 = arith.muli %arg0, %c32_i32 : i32
    %7 = tpu.assume_multiple %6, 32 : i32
    %8 = arith.index_cast %7 : i32 to index
    %c0_4 = arith.constant 0 : index
    %9 = vector.load %arg6[%8, %c0_4] : memref<32x128xf32, #tpu.memory_space<vmem>>, vector<32x128xf32>
    tpu.vector_store %arg6[%8, %c0_4], %5 {strides = array<i32>} : memref<32x128xf32, #tpu.memory_space<vmem>>, vector<32x128xf32>,
    %c0_5 = arith.constant 0 : index
    %c0_6 = arith.constant 0 : index
    %10 = vector.load %arg7[%c0_5, %c0_6] : memref<1x128xf32, #tpu.memory_space<vmem>>, vector<1x128xf32>
    %cst_7 = arith.constant dense<0.000000e+00> : vector<128xf32>
    %11 = vector.multi_reduction <add>, %5, %cst_7 [0] : vector<32x128xf32> to vector<128xf32>
    %12 = vector.shape_cast %11 : vector<128xf32> to vector<1x128xf32>
    %13 = arith.addf %10, %12 : vector<1x128xf32>
    %c0_8 = arith.constant 0 : index
    %c0_9 = arith.constant 0 : index
    %14 = vector.load %arg7[%c0_8, %c0_9] : memref<1x128xf32, #tpu.memory_space<vmem>>, vector<1x128xf32>
    tpu.vector_store %arg7[%c0_8, %c0_9], %13 {strides = array<i32>} : memref<1x128xf32, #tpu.memory_space<vmem>>, vector<1x128xf32>,
    %c0_10 = arith.constant 0 : index
    %c0_11 = arith.constant 0 : index
    %15 = vector.load %arg8[%c0_10, %c0_11] : memref<1x128xf32, #tpu.memory_space<vmem>>, vector<1x128xf32>
    %16 = arith.mulf %5, %5 : vector<32x128xf32>
    %cst_12 = arith.constant dense<0.000000e+00> : vector<128xf32>
    %17 = vector.multi_reduction <add>, %16, %cst_12 [0] : vector<32x128xf32> to vector<128xf32>
    %18 = vector.shape_cast %17 : vector<128xf32> to vector<1x128xf32>
    %19 = arith.addf %15, %18 : vector<1x128xf32>
    %c0_13 = arith.constant 0 : index
    %c0_14 = arith.constant 0 : index
    %20 = vector.load %arg8[%c0_13, %c0_14] : memref<1x128xf32, #tpu.memory_space<vmem>>, vector<1x128xf32>
    tpu.vector_store %arg8[%c0_13, %c0_14], %19 {strides = array<i32>} : memref<1x128xf32, #tpu.memory_space<vmem>>, vector<1x128xf32>,
    %c0_i32_15 = arith.constant 0 : i32
    %21 = arith.cmpi eq, %arg0, %c0_i32_15 : i32
    %22 = arith.extui %21 : i1 to i32
    %c0_i32_16 = arith.constant 0 : i32
    %23 = arith.cmpi ne, %22, %c0_i32_16 : i32
    scf.if %23 {
      %c0_17 = arith.constant 0 : index
      %c0_18 = arith.constant 0 : index
      %24 = vector.load %arg7[%c0_17, %c0_18] : memref<1x128xf32, #tpu.memory_space<vmem>>, vector<1x128xf32>
      %cst_19 = arith.constant 3.125000e-02 : f32
      %25 = vector.broadcast %cst_19 : f32 to vector<1x128xf32>
      %26 = arith.mulf %24, %25 : vector<1x128xf32>
      %c0_20 = arith.constant 0 : index
      %c0_21 = arith.constant 0 : index
      %27 = vector.load %arg8[%c0_20, %c0_21] : memref<1x128xf32, #tpu.memory_space<vmem>>, vector<1x128xf32>
      %cst_22 = arith.constant 3.125000e-02 : f32
      %28 = vector.broadcast %cst_22 : f32 to vector<1x128xf32>
      %29 = arith.mulf %27, %28 : vector<1x128xf32>
      %30 = arith.mulf %26, %26 : vector<1x128xf32>
      %31 = arith.subf %29, %30 : vector<1x128xf32>
      %cst_23 = arith.constant 0.000000e+00 : f32
      %32 = vector.broadcast %cst_23 : f32 to vector<1x128xf32>
      %33 = arith.maximumf %31, %32 : vector<1x128xf32>
      %c0_24 = arith.constant 0 : index
      %c0_25 = arith.constant 0 : index
      %34 = vector.load %arg3[%c0_24, %c0_25] : memref<1x128xf32, #tpu.memory_space<vmem>>, vector<1x128xf32>
      %cst_26 = arith.constant 9.99999974E-6 : f32
      %35 = vector.broadcast %cst_26 : f32 to vector<1x128xf32>
      %36 = arith.addf %33, %35 : vector<1x128xf32>
      %37 = math.rsqrt %36 : vector<1x128xf32>
      %38 = arith.mulf %34, %37 : vector<1x128xf32>
      %c0_27 = arith.constant 0 : index
      %c0_28 = arith.constant 0 : index
      %39 = vector.load %arg4[%c0_27, %c0_28] : memref<1x128xf32, #tpu.memory_space<vmem>>, vector<1x128xf32>
      %40 = arith.mulf %26, %38 : vector<1x128xf32>
      %41 = arith.subf %39, %40 : vector<1x128xf32>
      %42 = vector.shape_cast %38 : vector<1x128xf32> to vector<1x128xf32>
      %43 = vector.broadcast %42 : vector<1x128xf32> to vector<32x128xf32>
      %44 = vector.shape_cast %41 : vector<1x128xf32> to vector<1x128xf32>
      %45 = vector.broadcast %44 : vector<1x128xf32> to vector<32x128xf32>
      %c0_i32_29 = arith.constant 0 : i32
      %c32_i32_30 = arith.constant 32 : i32
      %46 = arith.muli %c0_i32_29, %c32_i32_30 : i32
      %47 = tpu.assume_multiple %46, 32 : i32
      %48 = arith.index_cast %47 : i32 to index
      %c0_31 = arith.constant 0 : index
      %49 = vector.load %arg6[%48, %c0_31] : memref<32x128xf32, #tpu.memory_space<vmem>>, vector<32x128xf32>
      %50 = arith.mulf %49, %43 : vector<32x128xf32>
      %51 = arith.addf %50, %45 : vector<32x128xf32>
      %cst_32 = arith.constant 0.000000e+00 : f32
      %52 = vector.broadcast %cst_32 : f32 to vector<32x128xf32>
      %53 = arith.maximumf %51, %52 : vector<32x128xf32>
      %54 = vector.extract_strided_slice %53 {offsets = [0, 0], sizes = [32, 32], strides = [1, 1]} : vector<32x128xf32> to vector<32x32xf32>
      %55 = arith.truncf %54 : vector<32x32xf32> to vector<32x32xbf16>
      %56 = arith.index_cast %47 : i32 to index
      %c0_33 = arith.constant 0 : index
      %57 = vector.load %arg5[%56, %c0_33] : memref<32x32xbf16, #tpu.memory_space<vmem>>, vector<32x32xbf16>
      tpu.vector_store %arg5[%56, %c0_33], %55 {strides = array<i32>} : memref<32x32xbf16, #tpu.memory_space<vmem>>, vector<32x32xbf16>,
      %c1_i32 = arith.constant 1 : i32
    } else {
    }
    return
  }
  func.func @transform_0(%arg0: i32) -> (i32, i32) {
    %c0_i32 = arith.constant 0 : i32
    %c0_i32_0 = arith.constant 0 : i32
    return %arg0, %c0_i32 : i32, i32
  }
  func.func @transform_1(%arg0: i32) -> (i32, i32) {
    %c0_i32 = arith.constant 0 : i32
    %c0_i32_0 = arith.constant 0 : i32
    %c0_i32_1 = arith.constant 0 : i32
    return %c0_i32, %c0_i32_0 : i32, i32
  }
  func.func @transform_2(%arg0: i32) -> (i32, i32) {
    %c0_i32 = arith.constant 0 : i32
    %c0_i32_0 = arith.constant 0 : i32
    %c0_i32_1 = arith.constant 0 : i32
    return %c0_i32, %c0_i32_0 : i32, i32
  }
  func.func @transform_3(%arg0: i32) -> (i32, i32) {
    %c0_i32 = arith.constant 0 : i32
    %c0_i32_0 = arith.constant 0 : i32
    %c0_i32_1 = arith.constant 0 : i32
    return %c0_i32, %c0_i32_0 : i32, i32
  }
  func.func @transform_4(%arg0: i32) -> (i32, i32) {
    %c0_i32 = arith.constant 0 : i32
    %c0_i32_0 = arith.constant 0 : i32
    %c0_i32_1 = arith.constant 0 : i32
    return %c0_i32, %c0_i32_0 : i32, i32
  }
}

module attributes {stable_mosaic.version = 11 : i64} {
  func.func @_fused_conv_bn_relu_kernel(%arg0: i32, %arg1: memref<8x384xbf16, #tpu.memory_space<vmem>>, %arg2: memref<384x128xbf16, #tpu.memory_space<vmem>>, %arg3: memref<1x128xf32, #tpu.memory_space<vmem>>, %arg4: memref<1x128xf32, #tpu.memory_space<vmem>>, %arg5: memref<8x64xbf16, #tpu.memory_space<vmem>>, %arg6: memref<8x128xf32, #tpu.memory_space<vmem>>, %arg7: memref<1x128xf32, #tpu.memory_space<vmem>>, %arg8: memref<1x128xf32, #tpu.memory_space<vmem>>) attributes {dimension_semantics = [#tpu.dimension_semantics<arbitrary>], iteration_bounds = array<i64: 1>, scalar_prefetch = 0 : i64, scratch_operands = 3 : i64, tpu.core_type = #tpu.core_type<tc>, window_params = [{transform_indices = @transform_0, window_bounds = array<i64: 8, 384>}, {pipeline_mode = #tpu.pipeline_mode<synchronous>, transform_indices = @transform_1, window_bounds = array<i64: 384, 128>}, {pipeline_mode = #tpu.pipeline_mode<synchronous>, transform_indices = @transform_2, window_bounds = array<i64: 1, 128>}, {pipeline_mode = #tpu.pipeline_mode<synchronous>, transform_indices = @transform_3, window_bounds = array<i64: 1, 128>}, {pipeline_mode = #tpu.pipeline_mode<synchronous>, transform_indices = @transform_4, window_bounds = array<i64: 8, 64>}]} {
    %c0_i32 = arith.constant 0 : i32
    %0 = arith.cmpi eq, %arg0, %c0_i32 : i32
    %1 = arith.extui %0 : i1 to i32
    %c0_i32_0 = arith.constant 0 : i32
    %2 = arith.cmpi ne, %1, %c0_i32_0 : i32
    scf.if %2 {
      %cst_17 = arith.constant 0.000000e+00 : f32
      %24 = vector.broadcast %cst_17 : f32 to vector<1x128xf32>
      %c0_18 = arith.constant 0 : index
      %c0_19 = arith.constant 0 : index
      %25 = vector.load %arg7[%c0_18, %c0_19] : memref<1x128xf32, #tpu.memory_space<vmem>>, vector<1x128xf32>
      tpu.vector_store %arg7[%c0_18, %c0_19], %24 {strides = array<i32>} : memref<1x128xf32, #tpu.memory_space<vmem>>, vector<1x128xf32>,
      %cst_20 = arith.constant 0.000000e+00 : f32
      %26 = vector.broadcast %cst_20 : f32 to vector<1x128xf32>
      %c0_21 = arith.constant 0 : index
      %c0_22 = arith.constant 0 : index
      %27 = vector.load %arg8[%c0_21, %c0_22] : memref<1x128xf32, #tpu.memory_space<vmem>>, vector<1x128xf32>
      tpu.vector_store %arg8[%c0_21, %c0_22], %26 {strides = array<i32>} : memref<1x128xf32, #tpu.memory_space<vmem>>, vector<1x128xf32>,
    } else {
    }
    %c0 = arith.constant 0 : index
    %c0_1 = arith.constant 0 : index
    %3 = vector.load %arg1[%c0, %c0_1] : memref<8x384xbf16, #tpu.memory_space<vmem>>, vector<8x384xbf16>
    %c0_2 = arith.constant 0 : index
    %c0_3 = arith.constant 0 : index
    %4 = vector.load %arg2[%c0_2, %c0_3] : memref<384x128xbf16, #tpu.memory_space<vmem>>, vector<384x128xbf16>
    %cst = arith.constant dense<0.000000e+00> : vector<8x128xf32>
    %5 = tpu.matmul %3, %4, %cst {dimension_numbers = #tpu.dot_dimension_numbers<[1], [0], [0], [1], [0, 0, 1, 1], [], []>} : vector<8x384xbf16>, vector<384x128xbf16>, vector<8x128xf32> -> vector<8x128xf32>
    %c8_i32 = arith.constant 8 : i32
    %6 = arith.muli %arg0, %c8_i32 : i32
    %7 = tpu.assume_multiple %6, 8 : i32
    %8 = arith.index_cast %7 : i32 to index
    %c0_4 = arith.constant 0 : index
    %9 = vector.load %arg6[%8, %c0_4] : memref<8x128xf32, #tpu.memory_space<vmem>>, vector<8x128xf32>
    tpu.vector_store %arg6[%8, %c0_4], %5 {strides = array<i32>} : memref<8x128xf32, #tpu.memory_space<vmem>>, vector<8x128xf32>,
    %c0_5 = arith.constant 0 : index
    %c0_6 = arith.constant 0 : index
    %10 = vector.load %arg7[%c0_5, %c0_6] : memref<1x128xf32, #tpu.memory_space<vmem>>, vector<1x128xf32>
    %cst_7 = arith.constant dense<0.000000e+00> : vector<128xf32>
    %11 = vector.multi_reduction <add>, %5, %cst_7 [0] : vector<8x128xf32> to vector<128xf32>
    %12 = vector.shape_cast %11 : vector<128xf32> to vector<1x128xf32>
    %13 = arith.addf %10, %12 : vector<1x128xf32>
    %c0_8 = arith.constant 0 : index
    %c0_9 = arith.constant 0 : index
    %14 = vector.load %arg7[%c0_8, %c0_9] : memref<1x128xf32, #tpu.memory_space<vmem>>, vector<1x128xf32>
    tpu.vector_store %arg7[%c0_8, %c0_9], %13 {strides = array<i32>} : memref<1x128xf32, #tpu.memory_space<vmem>>, vector<1x128xf32>,
    %c0_10 = arith.constant 0 : index
    %c0_11 = arith.constant 0 : index
    %15 = vector.load %arg8[%c0_10, %c0_11] : memref<1x128xf32, #tpu.memory_space<vmem>>, vector<1x128xf32>
    %16 = arith.mulf %5, %5 : vector<8x128xf32>
    %cst_12 = arith.constant dense<0.000000e+00> : vector<128xf32>
    %17 = vector.multi_reduction <add>, %16, %cst_12 [0] : vector<8x128xf32> to vector<128xf32>
    %18 = vector.shape_cast %17 : vector<128xf32> to vector<1x128xf32>
    %19 = arith.addf %15, %18 : vector<1x128xf32>
    %c0_13 = arith.constant 0 : index
    %c0_14 = arith.constant 0 : index
    %20 = vector.load %arg8[%c0_13, %c0_14] : memref<1x128xf32, #tpu.memory_space<vmem>>, vector<1x128xf32>
    tpu.vector_store %arg8[%c0_13, %c0_14], %19 {strides = array<i32>} : memref<1x128xf32, #tpu.memory_space<vmem>>, vector<1x128xf32>,
    %c0_i32_15 = arith.constant 0 : i32
    %21 = arith.cmpi eq, %arg0, %c0_i32_15 : i32
    %22 = arith.extui %21 : i1 to i32
    %c0_i32_16 = arith.constant 0 : i32
    %23 = arith.cmpi ne, %22, %c0_i32_16 : i32
    scf.if %23 {
      %c0_17 = arith.constant 0 : index
      %c0_18 = arith.constant 0 : index
      %24 = vector.load %arg7[%c0_17, %c0_18] : memref<1x128xf32, #tpu.memory_space<vmem>>, vector<1x128xf32>
      %cst_19 = arith.constant 1.250000e-01 : f32
      %25 = vector.broadcast %cst_19 : f32 to vector<1x128xf32>
      %26 = arith.mulf %24, %25 : vector<1x128xf32>
      %c0_20 = arith.constant 0 : index
      %c0_21 = arith.constant 0 : index
      %27 = vector.load %arg8[%c0_20, %c0_21] : memref<1x128xf32, #tpu.memory_space<vmem>>, vector<1x128xf32>
      %cst_22 = arith.constant 1.250000e-01 : f32
      %28 = vector.broadcast %cst_22 : f32 to vector<1x128xf32>
      %29 = arith.mulf %27, %28 : vector<1x128xf32>
      %30 = arith.mulf %26, %26 : vector<1x128xf32>
      %31 = arith.subf %29, %30 : vector<1x128xf32>
      %cst_23 = arith.constant 0.000000e+00 : f32
      %32 = vector.broadcast %cst_23 : f32 to vector<1x128xf32>
      %33 = arith.maximumf %31, %32 : vector<1x128xf32>
      %c0_24 = arith.constant 0 : index
      %c0_25 = arith.constant 0 : index
      %34 = vector.load %arg3[%c0_24, %c0_25] : memref<1x128xf32, #tpu.memory_space<vmem>>, vector<1x128xf32>
      %cst_26 = arith.constant 9.99999974E-6 : f32
      %35 = vector.broadcast %cst_26 : f32 to vector<1x128xf32>
      %36 = arith.addf %33, %35 : vector<1x128xf32>
      %37 = math.rsqrt %36 : vector<1x128xf32>
      %38 = arith.mulf %34, %37 : vector<1x128xf32>
      %c0_27 = arith.constant 0 : index
      %c0_28 = arith.constant 0 : index
      %39 = vector.load %arg4[%c0_27, %c0_28] : memref<1x128xf32, #tpu.memory_space<vmem>>, vector<1x128xf32>
      %40 = arith.mulf %26, %38 : vector<1x128xf32>
      %41 = arith.subf %39, %40 : vector<1x128xf32>
      %42 = vector.shape_cast %38 : vector<1x128xf32> to vector<1x128xf32>
      %43 = vector.broadcast %42 : vector<1x128xf32> to vector<8x128xf32>
      %44 = vector.shape_cast %41 : vector<1x128xf32> to vector<1x128xf32>
      %45 = vector.broadcast %44 : vector<1x128xf32> to vector<8x128xf32>
      %c0_i32_29 = arith.constant 0 : i32
      %c8_i32_30 = arith.constant 8 : i32
      %46 = arith.muli %c0_i32_29, %c8_i32_30 : i32
      %47 = tpu.assume_multiple %46, 8 : i32
      %48 = arith.index_cast %47 : i32 to index
      %c0_31 = arith.constant 0 : index
      %49 = vector.load %arg6[%48, %c0_31] : memref<8x128xf32, #tpu.memory_space<vmem>>, vector<8x128xf32>
      %50 = arith.mulf %49, %43 : vector<8x128xf32>
      %51 = arith.addf %50, %45 : vector<8x128xf32>
      %cst_32 = arith.constant 0.000000e+00 : f32
      %52 = vector.broadcast %cst_32 : f32 to vector<8x128xf32>
      %53 = arith.maximumf %51, %52 : vector<8x128xf32>
      %54 = vector.extract_strided_slice %53 {offsets = [0, 0], sizes = [8, 64], strides = [1, 1]} : vector<8x128xf32> to vector<8x64xf32>
      %55 = arith.truncf %54 : vector<8x64xf32> to vector<8x64xbf16>
      %56 = arith.index_cast %47 : i32 to index
      %c0_33 = arith.constant 0 : index
      %57 = vector.load %arg5[%56, %c0_33] : memref<8x64xbf16, #tpu.memory_space<vmem>>, vector<8x64xbf16>
      tpu.vector_store %arg5[%56, %c0_33], %55 {strides = array<i32>} : memref<8x64xbf16, #tpu.memory_space<vmem>>, vector<8x64xbf16>,
      %c1_i32 = arith.constant 1 : i32
    } else {
    }
    return
  }
  func.func @transform_0(%arg0: i32) -> (i32, i32) {
    %c0_i32 = arith.constant 0 : i32
    %c0_i32_0 = arith.constant 0 : i32
    return %arg0, %c0_i32 : i32, i32
  }
  func.func @transform_1(%arg0: i32) -> (i32, i32) {
    %c0_i32 = arith.constant 0 : i32
    %c0_i32_0 = arith.constant 0 : i32
    %c0_i32_1 = arith.constant 0 : i32
    return %c0_i32, %c0_i32_0 : i32, i32
  }
  func.func @transform_2(%arg0: i32) -> (i32, i32) {
    %c0_i32 = arith.constant 0 : i32
    %c0_i32_0 = arith.constant 0 : i32
    %c0_i32_1 = arith.constant 0 : i32
    return %c0_i32, %c0_i32_0 : i32, i32
  }
  func.func @transform_3(%arg0: i32) -> (i32, i32) {
    %c0_i32 = arith.constant 0 : i32
    %c0_i32_0 = arith.constant 0 : i32
    %c0_i32_1 = arith.constant 0 : i32
    return %c0_i32, %c0_i32_0 : i32, i32
  }
  func.func @transform_4(%arg0: i32) -> (i32, i32) {
    %c0_i32 = arith.constant 0 : i32
    %c0_i32_0 = arith.constant 0 : i32
    %c0_i32_1 = arith.constant 0 : i32
    return %c0_i32, %c0_i32_0 : i32, i32
  }
}

</mosaic_0001>

<llo_original>
// kernel: encoder_2d_forward.4
$region0: #{encoder_2d_forward.4}
  #allocation0 [shape = 'u32[]', space=smem, size = 0x4, offset = 0x4, fixed_abs, tag = 'smem constant byte address 0x4 - core index']
  #allocation1 [shape = 'u32[144,128]{1,0:T(1,128)}', space=vmem, size = 0x12000, scoped, tag = 'internal scratch']
  #allocation2 [shape = 'f32[512,128]{1,0:T(8,128)}', space=vmem, size = 0x40000, scoped, tag = 'scratch operand']
  #allocation3 [shape = 'f32[1,128]{1,0:T(1,128)}', space=vmem, size = 0x200, scoped, tag = 'scratch operand']
  #allocation4 [shape = 'f32[1,128]{1,0:T(1,128)}', space=vmem, size = 0x200, scoped, tag = 'scratch operand']
  %s0 = inlined_call_operand.vmem [shape: bf16[512,256], index: 0, kind: input, shape index: {}]
  %s1 = inlined_call_operand.vmem [shape: bf16[256,128], index: 1, kind: input, shape index: {}]
  %s2 = inlined_call_operand.vmem [shape: f32[1,128], index: 2, kind: input, shape index: {}]
  %s3 = inlined_call_operand.vmem [shape: f32[1,128], index: 3, kind: input, shape index: {}]
  %s4 = inlined_call_operand.vmem [shape: bf16[512,8], index: 4, kind: output, shape index: {}]
  %s5 = sld [smem:[#allocation0]]
  $region34: #{encoder_2d_forward.4} parent=0
    _
  %s7 = ssub.s32 1, %s5
  %s8 = scalar_select 0, %s7, %s5
  // Predicated region
  $region2: #{encoder_2d_forward.4} parent=0 // pred_check
    _
  $region3: #{encoder_2d_forward.4} parent=0 // pred_check_branch
    %10 = sbr.rel (0) target = $region5
  $region4: #{encoder_2d_forward.4} parent=0 // pred_region
    _
  $region5: #{encoder_2d_forward.4} parent=0 // pred_fallthru
    _
  // Predicated region
  $region6: #{encoder_2d_forward.4} parent=0 // pred_check
    _
  $region7: #{encoder_2d_forward.4} parent=0 // pred_check_branch
    %12 = sbr.rel (0) target = $region9
  $region8: #{encoder_2d_forward.4} parent=0 // pred_region
    _
  $region9: #{encoder_2d_forward.4} parent=0 // pred_fallthru
    _
  // Predicated region
  $region10: #{encoder_2d_forward.4} parent=0 // pred_check
    _
  $region11: #{encoder_2d_forward.4} parent=0 // pred_check_branch
    %14 = sbr.rel (0) target = $region13
  $region12: #{encoder_2d_forward.4} parent=0 // pred_region
    _
  $region13: #{encoder_2d_forward.4} parent=0 // pred_fallthru
    _
  // Predicated region
  $region14: #{encoder_2d_forward.4} parent=0 // pred_check
    _
  $region15: #{encoder_2d_forward.4} parent=0 // pred_check_branch
    %16 = sbr.rel (0) target = $region17
  $region16: #{encoder_2d_forward.4} parent=0 // pred_region
    _
  $region17: #{encoder_2d_forward.4} parent=0 // pred_fallthru
    _
  %p18 = scmp.eq.s32.totalorder 0, 0
  // Predicated region
  $region18: #{encoder_2d_forward.4} parent=0 // pred_check
    %p19 = pneg %p18
  $region19: #{encoder_2d_forward.4} parent=0 // pred_check_branch
    %21 = sbr.rel (%p19) target = $region21
  $region20: #{encoder_2d_forward.4} parent=0 // pred_region
    %22 = vst [vmem:[#allocation3] sm:$0x1] 0.0
    %23 = vst [vmem:[#allocation4] sm:$0x1] 0.0
  $region21: #{encoder_2d_forward.4} parent=0 // pred_fallthru
    _
  %v24 = vld [vmem:[%s0] sm:$0xff]
  %v25 = vld [vmem:[%s0 + $0x8] sm:$0xff]
  %v26 = vld [vmem:[%s0 + $0x10] sm:$0xff]
  %v27 = vld [vmem:[%s0 + $0x18] sm:$0xff]
  %v28 = vld [vmem:[%s0 + $0x20] sm:$0xff]
  %v29 = vld [vmem:[%s0 + $0x28] sm:$0xff]
  %v30 = vld [vmem:[%s0 + $0x30] sm:$0xff]
  %v31 = vld [vmem:[%s0 + $0x38] sm:$0xff]
  %v32 = vld [vmem:[%s0 + $0x40] sm:$0xff]
  %v33 = vld [vmem:[%s0 + $0x48] sm:$0xff]
  %v34 = vld [vmem:[%s0 + $0x50] sm:$0xff]
  %v35 = vld [vmem:[%s0 + $0x58] sm:$0xff]
  %v36 = vld [vmem:[%s0 + $0x60] sm:$0xff]
  %v37 = vld [vmem:[%s0 + $0x68] sm:$0xff]
  %v38 = vld [vmem:[%s0 + $0x70] sm:$0xff]
  %v39 = vld [vmem:[%s0 + $0x78] sm:$0xff]
  %v40 = vld [vmem:[%s0 + $0x80] sm:$0xff]
  %v41 = vld [vmem:[%s0 + $0x88] sm:$0xff]
  %v42 = vld [vmem:[%s0 + $0x90] sm:$0xff]
  %v43 = vld [vmem:[%s0 + $0x98] sm:$0xff]
  %v44 = vld [vmem:[%s0 + $0xa0] sm:$0xff]
  %v45 = vld [vmem:[%s0 + $0xa8] sm:$0xff]
  %v46 = vld [vmem:[%s0 + $0xb0] sm:$0xff]
  %v47 = vld [vmem:[%s0 + $0xb8] sm:$0xff]
  %v48 = vld [vmem:[%s0 + $0xc0] sm:$0xff]
  %v49 = vld [vmem:[%s0 + $0xc8] sm:$0xff]
  %v50 = vld [vmem:[%s0 + $0xd0] sm:$0xff]
  %v51 = vld [vmem:[%s0 + $0xd8] sm:$0xff]
  %v52 = vld [vmem:[%s0 + $0xe0] sm:$0xff]
  %v53 = vld [vmem:[%s0 + $0xe8] sm:$0xff]
  %v54 = vld [vmem:[%s0 + $0xf0] sm:$0xff]
  %v55 = vld [vmem:[%s0 + $0xf8] sm:$0xff]
  %v56 = vld [vmem:[%s0 + $0x100] sm:$0xff]
  %v57 = vld [vmem:[%s0 + $0x108] sm:$0xff]
  %v58 = vld [vmem:[%s0 + $0x110] sm:$0xff]
  %v59 = vld [vmem:[%s0 + $0x118] sm:$0xff]
  %v60 = vld [vmem:[%s0 + $0x120] sm:$0xff]
  %v61 = vld [vmem:[%s0 + $0x128] sm:$0xff]
  %v62 = vld [vmem:[%s0 + $0x130] sm:$0xff]
  %v63 = vld [vmem:[%s0 + $0x138] sm:$0xff]
  %v64 = vld [vmem:[%s0 + $0x140] sm:$0xff]
  %v65 = vld [vmem:[%s0 + $0x148] sm:$0xff]
  %v66 = vld [vmem:[%s0 + $0x150] sm:$0xff]
  %v67 = vld [vmem:[%s0 + $0x158] sm:$0xff]
  %v68 = vld [vmem:[%s0 + $0x160] sm:$0xff]
  %v69 = vld [vmem:[%s0 + $0x168] sm:$0xff]
  %v70 = vld [vmem:[%s0 + $0x170] sm:$0xff]
  %v71 = vld [vmem:[%s0 + $0x178] sm:$0xff]
  %v72 = vld [vmem:[%s0 + $0x180] sm:$0xff]
  %v73 = vld [vmem:[%s0 + $0x188] sm:$0xff]
  %v74 = vld [vmem:[%s0 + $0x190] sm:$0xff]
  %v75 = vld [vmem:[%s0 + $0x198] sm:$0xff]
  %v76 = vld [vmem:[%s0 + $0x1a0] sm:$0xff]
  %v77 = vld [vmem:[%s0 + $0x1a8] sm:$0xff]
  %v78 = vld [vmem:[%s0 + $0x1b0] sm:$0xff]
  %v79 = vld [vmem:[%s0 + $0x1b8] sm:$0xff]
  %v80 = vld [vmem:[%s0 + $0x1c0] sm:$0xff]
  %v81 = vld [vmem:[%s0 + $0x1c8] sm:$0xff]
  %v82 = vld [vmem:[%s0 + $0x1d0] sm:$0xff]
  %v83 = vld [vmem:[%s0 + $0x1d8] sm:$0xff]
  %v84 = vld [vmem:[%s0 + $0x1e0] sm:$0xff]
  %v85 = vld [vmem:[%s0 + $0x1e8] sm:$0xff]
  %v86 = vld [vmem:[%s0 + $0x1f0] sm:$0xff]
  %v87 = vld [vmem:[%s0 + $0x1f8] sm:$0xff]
  %v88 = vld [vmem:[%s1] sm:$0xf]
  %v89 = vld [vmem:[%s1 + $0x4] sm:$0xf]
  %v90 = vld [vmem:[%s1 + $0x8] sm:$0xf]
  %v91 = vld [vmem:[%s1 + $0xc] sm:$0xf]
  %v92 = vld [vmem:[%s1 + $0x10] sm:$0xf]
  %v93 = vld [vmem:[%s1 + $0x14] sm:$0xf]
  %v94 = vld [vmem:[%s1 + $0x18] sm:$0xf]
  %v95 = vld [vmem:[%s1 + $0x1c] sm:$0xf]
  %v96 = vld [vmem:[%s1 + $0x20] sm:$0xf]
  %v97 = vld [vmem:[%s1 + $0x24] sm:$0xf]
  %v98 = vld [vmem:[%s1 + $0x28] sm:$0xf]
  %v99 = vld [vmem:[%s1 + $0x2c] sm:$0xf]
  %v100 = vld [vmem:[%s1 + $0x30] sm:$0xf]
  %v101 = vld [vmem:[%s1 + $0x34] sm:$0xf]
  %v102 = vld [vmem:[%s1 + $0x38] sm:$0xf]
  %v103 = vld [vmem:[%s1 + $0x3c] sm:$0xf]
  %v104 = vld [vmem:[%s1 + $0x40] sm:$0xf]
  %v105 = vld [vmem:[%s1 + $0x44] sm:$0xf]
  %v106 = vld [vmem:[%s1 + $0x48] sm:$0xf]
  %v107 = vld [vmem:[%s1 + $0x4c] sm:$0xf]
  %v108 = vld [vmem:[%s1 + $0x50] sm:$0xf]
  %v109 = vld [vmem:[%s1 + $0x54] sm:$0xf]
  %v110 = vld [vmem:[%s1 + $0x58] sm:$0xf]
  %v111 = vld [vmem:[%s1 + $0x5c] sm:$0xf]
  %v112 = vld [vmem:[%s1 + $0x60] sm:$0xf]
  %v113 = vld [vmem:[%s1 + $0x64] sm:$0xf]
  %v114 = vld [vmem:[%s1 + $0x68] sm:$0xf]
  %v115 = vld [vmem:[%s1 + $0x6c] sm:$0xf]
  %v116 = vld [vmem:[%s1 + $0x70] sm:$0xf]
  %v117 = vld [vmem:[%s1 + $0x74] sm:$0xf]
  %v118 = vld [vmem:[%s1 + $0x78] sm:$0xf]
  %v119 = vld [vmem:[%s1 + $0x7c] sm:$0xf]
  %v184 = vunpack.c.l.b16 %v24
  %v185 = vunpack.c.h.b16 %v24
  %v186 = vunpack.c.l.b16 %v25
  %v187 = vunpack.c.h.b16 %v25
  %v188 = vunpack.c.l.b16 %v26
  %v189 = vunpack.c.h.b16 %v26
  %v190 = vunpack.c.l.b16 %v27
  %v191 = vunpack.c.h.b16 %v27
  %v192 = vunpack.c.l.b16 %v28
  %v193 = vunpack.c.h.b16 %v28
  %v194 = vunpack.c.l.b16 %v29
  %v195 = vunpack.c.h.b16 %v29
  %v196 = vunpack.c.l.b16 %v30
  %v197 = vunpack.c.h.b16 %v30
  %v198 = vunpack.c.l.b16 %v31
  %v199 = vunpack.c.h.b16 %v31
  %v200 = vunpack.c.l.b16 %v32
  %v201 = vunpack.c.h.b16 %v32
  %v202 = vunpack.c.l.b16 %v33
  %v203 = vunpack.c.h.b16 %v33
  %v204 = vunpack.c.l.b16 %v34
  %v205 = vunpack.c.h.b16 %v34
  %v206 = vunpack.c.l.b16 %v35
  %v207 = vunpack.c.h.b16 %v35
  %v208 = vunpack.c.l.b16 %v36
  %v209 = vunpack.c.h.b16 %v36
  %v210 = vunpack.c.l.b16 %v37
  %v211 = vunpack.c.h.b16 %v37
  %v212 = vunpack.c.l.b16 %v38
  %v213 = vunpack.c.h.b16 %v38
  %v214 = vunpack.c.l.b16 %v39
  %v215 = vunpack.c.h.b16 %v39
  %v216 = vunpack.c.l.b16 %v40
  %v217 = vunpack.c.h.b16 %v40
  %v218 = vunpack.c.l.b16 %v41
  %v219 = vunpack.c.h.b16 %v41
  %v220 = vunpack.c.l.b16 %v42
  %v221 = vunpack.c.h.b16 %v42
  %v222 = vunpack.c.l.b16 %v43
  %v223 = vunpack.c.h.b16 %v43
  %v224 = vunpack.c.l.b16 %v44
  %v225 = vunpack.c.h.b16 %v44
  %v226 = vunpack.c.l.b16 %v45
  %v227 = vunpack.c.h.b16 %v45
  %v228 = vunpack.c.l.b16 %v46
  %v229 = vunpack.c.h.b16 %v46
  %v230 = vunpack.c.l.b16 %v47
  %v231 = vunpack.c.h.b16 %v47
  %v232 = vunpack.c.l.b16 %v48
  %v233 = vunpack.c.h.b16 %v48
  %v234 = vunpack.c.l.b16 %v49
  %v235 = vunpack.c.h.b16 %v49
  %v236 = vunpack.c.l.b16 %v50
  %v237 = vunpack.c.h.b16 %v50
  %v238 = vunpack.c.l.b16 %v51
  %v239 = vunpack.c.h.b16 %v51
  %v240 = vunpack.c.l.b16 %v52
  %v241 = vunpack.c.h.b16 %v52
  %v242 = vunpack.c.l.b16 %v53
  %v243 = vunpack.c.h.b16 %v53
  %v244 = vunpack.c.l.b16 %v54
  %v245 = vunpack.c.h.b16 %v54
  %v246 = vunpack.c.l.b16 %v55
  %v247 = vunpack.c.h.b16 %v55
  %v248 = vunpack.c.l.b16 %v56
  %v249 = vunpack.c.h.b16 %v56
  %v250 = vunpack.c.l.b16 %v57
  %v251 = vunpack.c.h.b16 %v57
  %v252 = vunpack.c.l.b16 %v58
  %v253 = vunpack.c.h.b16 %v58
  %v254 = vunpack.c.l.b16 %v59
  %v255 = vunpack.c.h.b16 %v59
  %v256 = vunpack.c.l.b16 %v60
  %v257 = vunpack.c.h.b16 %v60
  %v258 = vunpack.c.l.b16 %v61
  %v259 = vunpack.c.h.b16 %v61
  %v260 = vunpack.c.l.b16 %v62
  %v261 = vunpack.c.h.b16 %v62
  %v262 = vunpack.c.l.b16 %v63
  %v263 = vunpack.c.h.b16 %v63
  %v264 = vunpack.c.l.b16 %v64
  %v265 = vunpack.c.h.b16 %v64
  %v266 = vunpack.c.l.b16 %v65
  %v267 = vunpack.c.h.b16 %v65
  %v268 = vunpack.c.l.b16 %v66
  %v269 = vunpack.c.h.b16 %v66
  %v270 = vunpack.c.l.b16 %v67
  %v271 = vunpack.c.h.b16 %v67
  %v272 = vunpack.c.l.b16 %v68
  %v273 = vunpack.c.h.b16 %v68
  %v274 = vunpack.c.l.b16 %v69
  %v275 = vunpack.c.h.b16 %v69
  %v276 = vunpack.c.l.b16 %v70
  %v277 = vunpack.c.h.b16 %v70
  %v278 = vunpack.c.l.b16 %v71
  %v279 = vunpack.c.h.b16 %v71
  %v280 = vunpack.c.l.b16 %v72
  %v281 = vunpack.c.h.b16 %v72
  %v282 = vunpack.c.l.b16 %v73
  %v283 = vunpack.c.h.b16 %v73
  %v284 = vunpack.c.l.b16 %v74
  %v285 = vunpack.c.h.b16 %v74
  %v286 = vunpack.c.l.b16 %v75
  %v287 = vunpack.c.h.b16 %v75
  %v288 = vunpack.c.l.b16 %v76
  %v289 = vunpack.c.h.b16 %v76
  %v290 = vunpack.c.l.b16 %v77
  %v291 = vunpack.c.h.b16 %v77
  %v292 = vunpack.c.l.b16 %v78
  %v293 = vunpack.c.h.b16 %v78
  %v294 = vunpack.c.l.b16 %v79
  %v295 = vunpack.c.h.b16 %v79
  %v296 = vunpack.c.l.b16 %v80
  %v297 = vunpack.c.h.b16 %v80
  %v298 = vunpack.c.l.b16 %v81
  %v299 = vunpack.c.h.b16 %v81
  %v300 = vunpack.c.l.b16 %v82
  %v301 = vunpack.c.h.b16 %v82
  %v302 = vunpack.c.l.b16 %v83
  %v303 = vunpack.c.h.b16 %v83
  %v304 = vunpack.c.l.b16 %v84
  %v305 = vunpack.c.h.b16 %v84
  %v306 = vunpack.c.l.b16 %v85
  %v307 = vunpack.c.h.b16 %v85
  %v308 = vunpack.c.l.b16 %v86
  %v309 = vunpack.c.h.b16 %v86
  %v310 = vunpack.c.l.b16 %v87
  %v311 = vunpack.c.h.b16 %v87
  %v312 = vpack.c.b16 %v186, %v184
  %v313 = vpack.c.b16 %v187, %v185
  %v314 = vpack.c.b16 %v190, %v188
  %v315 = vpack.c.b16 %v191, %v189
  %v316 = vpack.c.b16 %v194, %v192
  %v317 = vpack.c.b16 %v195, %v193
  %v318 = vpack.c.b16 %v198, %v196
  %v319 = vpack.c.b16 %v199, %v197
  %v320 = vpack.c.b16 %v202, %v200
  %v321 = vpack.c.b16 %v203, %v201
  %v322 = vpack.c.b16 %v206, %v204
  %v323 = vpack.c.b16 %v207, %v205
  %v324 = vpack.c.b16 %v210, %v208
  %v325 = vpack.c.b16 %v211, %v209
  %v326 = vpack.c.b16 %v214, %v212
  %v327 = vpack.c.b16 %v215, %v213
  %v328 = vpack.c.b16 %v218, %v216
  %v329 = vpack.c.b16 %v219, %v217
  %v330 = vpack.c.b16 %v222, %v220
  %v331 = vpack.c.b16 %v223, %v221
  %v332 = vpack.c.b16 %v226, %v224
  %v333 = vpack.c.b16 %v227, %v225
  %v334 = vpack.c.b16 %v230, %v228
  %v335 = vpack.c.b16 %v231, %v229
  %v336 = vpack.c.b16 %v234, %v232
  %v337 = vpack.c.b16 %v235, %v233
  %v338 = vpack.c.b16 %v238, %v236
  %v339 = vpack.c.b16 %v239, %v237
  %v340 = vpack.c.b16 %v242, %v240
  %v341 = vpack.c.b16 %v243, %v241
  %v342 = vpack.c.b16 %v246, %v244
  %v343 = vpack.c.b16 %v247, %v245
  %v344 = vpack.c.b16 %v250, %v248
  %v345 = vpack.c.b16 %v251, %v249
  %v346 = vpack.c.b16 %v254, %v252
  %v347 = vpack.c.b16 %v255, %v253
  %v348 = vpack.c.b16 %v258, %v256
  %v349 = vpack.c.b16 %v259, %v257
  %v350 = vpack.c.b16 %v262, %v260
  %v351 = vpack.c.b16 %v263, %v261
  %v352 = vpack.c.b16 %v266, %v264
  %v353 = vpack.c.b16 %v267, %v265
  %v354 = vpack.c.b16 %v270, %v268
  %v355 = vpack.c.b16 %v271, %v269
  %v356 = vpack.c.b16 %v274, %v272
  %v357 = vpack.c.b16 %v275, %v273
  %v358 = vpack.c.b16 %v278, %v276
  %v359 = vpack.c.b16 %v279, %v277
  %v360 = vpack.c.b16 %v282, %v280
  %v361 = vpack.c.b16 %v283, %v281
  %v362 = vpack.c.b16 %v286, %v284
  %v363 = vpack.c.b16 %v287, %v285
  %v364 = vpack.c.b16 %v290, %v288
  %v365 = vpack.c.b16 %v291, %v289
  %v366 = vpack.c.b16 %v294, %v292
  %v367 = vpack.c.b16 %v295, %v293
  %v368 = vpack.c.b16 %v298, %v296
  %v369 = vpack.c.b16 %v299, %v297
  %v370 = vpack.c.b16 %v302, %v300
  %v371 = vpack.c.b16 %v303, %v301
  %v372 = vpack.c.b16 %v306, %v304
  %v373 = vpack.c.b16 %v307, %v305
  %v374 = vpack.c.b16 %v310, %v308
  %v375 = vpack.c.b16 %v311, %v309
  %v472 = vunpack.c.l.b16 %v88
  %v473 = vunpack.c.l.b16 %v89
  %v474 = vunpack.c.l.b16 %v90
  %v475 = vunpack.c.l.b16 %v91
  %v476 = vunpack.c.l.b16 %v92
  %v477 = vunpack.c.l.b16 %v93
  %v478 = vunpack.c.l.b16 %v94
  %v479 = vunpack.c.l.b16 %v95
  %v480 = vunpack.c.l.b16 %v96
  %v481 = vunpack.c.l.b16 %v97
  %v482 = vunpack.c.l.b16 %v98
  %v483 = vunpack.c.l.b16 %v99
  %v484 = vunpack.c.l.b16 %v100
  %v485 = vunpack.c.l.b16 %v101
  %v486 = vunpack.c.l.b16 %v102
  %v487 = vunpack.c.l.b16 %v103
  %v488 = vunpack.c.l.b16 %v104
  %v489 = vunpack.c.l.b16 %v105
  %v490 = vunpack.c.l.b16 %v106
  %v491 = vunpack.c.l.b16 %v107
  %v492 = vunpack.c.l.b16 %v108
  %v493 = vunpack.c.l.b16 %v109
  %v494 = vunpack.c.l.b16 %v110
  %v495 = vunpack.c.l.b16 %v111
  %v496 = vunpack.c.l.b16 %v112
  %v497 = vunpack.c.l.b16 %v113
  %v498 = vunpack.c.l.b16 %v114
  %v499 = vunpack.c.l.b16 %v115
  %v500 = vunpack.c.l.b16 %v116
  %v501 = vunpack.c.l.b16 %v117
  %v502 = vunpack.c.l.b16 %v118
  %v503 = vunpack.c.l.b16 %v119
  %v504 = vpack.c.b16 %v473, %v472
  %v505 = vpack.c.b16 %v475, %v474
  %v506 = vpack.c.b16 %v477, %v476
  %v507 = vpack.c.b16 %v479, %v478
  %v508 = vpack.c.b16 %v481, %v480
  %v509 = vpack.c.b16 %v483, %v482
  %v510 = vpack.c.b16 %v485, %v484
  %v511 = vpack.c.b16 %v487, %v486
  %v512 = vpack.c.b16 %v489, %v488
  %v513 = vpack.c.b16 %v491, %v490
  %v514 = vpack.c.b16 %v493, %v492
  %v515 = vpack.c.b16 %v495, %v494
  %v516 = vpack.c.b16 %v497, %v496
  %v517 = vpack.c.b16 %v499, %v498
  %v518 = vpack.c.b16 %v501, %v500
  %v519 = vpack.c.b16 %v503, %v502
  %536 = vmatprep.subr.bf16.mxu0 0
  %537 = vmatpush1.bf16.msra.mxu0 %v504
  %538 = vmatprep.subr.bf16.mxu0 0
  %539 = vmatpush1.bf16.msra.mxu0 %v505
  %540 = vmatprep.subr.bf16.mxu0 0
  %541 = vmatpush1.bf16.msra.mxu0 %v506
  %542 = vmatprep.subr.bf16.mxu0 0
  %543 = vmatpush1.bf16.msra.mxu0 %v507
  %544 = vmatprep.subr.bf16.mxu0 0
  %545 = vmatpush1.bf16.msra.mxu0 %v508
  %546 = vmatprep.subr.bf16.mxu0 0
  %547 = vmatpush1.bf16.msra.mxu0 %v509
  %548 = vmatprep.subr.bf16.mxu0 0
  %549 = vmatpush1.bf16.msra.mxu0 %v510
  %550 = vmatprep.subr.bf16.mxu0 0
  %551 = vmatpush1.bf16.msra.mxu0 %v511
  %552 = vmatprep.subr.bf16.mxu0 0
  %553 = vmatpush1.bf16.msra.mxu0 %v512
  %554 = vmatprep.subr.bf16.mxu0 0
  %555 = vmatpush1.bf16.msra.mxu0 %v513
  %556 = vmatprep.subr.bf16.mxu0 0
  %557 = vmatpush1.bf16.msra.mxu0 %v514
  %558 = vmatprep.subr.bf16.mxu0 0
  %559 = vmatpush1.bf16.msra.mxu0 %v515
  %560 = vmatprep.subr.bf16.mxu0 0
  %561 = vmatpush1.bf16.msra.mxu0 %v516
  %562 = vmatprep.subr.bf16.mxu0 0
  %563 = vmatpush1.bf16.msra.mxu0 %v517
  %564 = vmatprep.subr.bf16.mxu0 0
  %565 = vmatpush1.bf16.msra.mxu0 %v518
  %566 = vmatprep.subr.bf16.mxu0 0
  %567 = vmatpush1.bf16.msra.mxu0 %v519
  %568 = vmatprep.mubr.bf16.mxu0 %v313
  %569 = vmatmul.mubr.bf16.gmra.mrb[0].mxu0 %v312
  %v570 = vpop.f32.mrb[0].mxu0
  %v571 = vadd.f32 0.0, %v570
  %v572 = vpop.f32.mrb[0].mxu0
  %v573 = vpop.f32.mrb[0].mxu0
  %v574 = vadd.f32 0.0, %v573
  %v575 = vpop.f32.mrb[0].mxu0
  %576 = vmatprep.mubr.bf16.mxu0 %v315
  %577 = vmatmul.mubr.bf16.gmra.mrb[0].mxu0 %v314
  %v578 = vpop.f32.mrb[0].mxu0
  %v579 = vadd.f32 0.0, %v578
  %v580 = vpop.f32.mrb[0].mxu0
  %v581 = vpop.f32.mrb[0].mxu0
  %v582 = vadd.f32 0.0, %v581
  %v583 = vpop.f32.mrb[0].mxu0
  %584 = vmatprep.mubr.bf16.mxu0 %v317
  %585 = vmatmul.mubr.bf16.gmra.mrb[0].mxu0 %v316
  %v586 = vpop.f32.mrb[0].mxu0
  %v587 = vadd.f32 0.0, %v586
  %v588 = vpop.f32.mrb[0].mxu0
  %v589 = vpop.f32.mrb[0].mxu0
  %v590 = vadd.f32 0.0, %v589
  %v591 = vpop.f32.mrb[0].mxu0
  %592 = vmatprep.mubr.bf16.mxu0 %v319
  %593 = vmatmul.mubr.bf16.gmra.mrb[0].mxu0 %v318
  %v594 = vpop.f32.mrb[0].mxu0
  %v595 = vadd.f32 0.0, %v594
  %v596 = vpop.f32.mrb[0].mxu0
  %v597 = vpop.f32.mrb[0].mxu0
  %v598 = vadd.f32 0.0, %v597
  %v599 = vpop.f32.mrb[0].mxu0
  %600 = vmatprep.mubr.bf16.mxu0 %v321
  %601 = vmatmul.mubr.bf16.gmra.mrb[0].mxu0 %v320
  %v602 = vpop.f32.mrb[0].mxu0
  %v603 = vadd.f32 0.0, %v602
  %v604 = vpop.f32.mrb[0].mxu0
  %v605 = vpop.f32.mrb[0].mxu0
  %v606 = vadd.f32 0.0, %v605
  %v607 = vpop.f32.mrb[0].mxu0
  %608 = vmatprep.mubr.bf16.mxu0 %v323
  %609 = vmatmul.mubr.bf16.gmra.mrb[0].mxu0 %v322
  %v610 = vpop.f32.mrb[0].mxu0
  %v611 = vadd.f32 0.0, %v610
  %v612 = vpop.f32.mrb[0].mxu0
  %v613 = vpop.f32.mrb[0].mxu0
  %v614 = vadd.f32 0.0, %v613
  %v615 = vpop.f32.mrb[0].mxu0
  %616 = vmatprep.mubr.bf16.mxu0 %v325
  %617 = vmatmul.mubr.bf16.gmra.mrb[0].mxu0 %v324
  %v618 = vpop.f32.mrb[0].mxu0
  %v619 = vadd.f32 0.0, %v618
  %v620 = vpop.f32.mrb[0].mxu0
  %v621 = vpop.f32.mrb[0].mxu0
  %v622 = vadd.f32 0.0, %v621
  %v623 = vpop.f32.mrb[0].mxu0
  %624 = vmatprep.mubr.bf16.mxu0 %v327
  %625 = vmatmul.mubr.bf16.gmra.mrb[0].mxu0 %v326
  %v626 = vpop.f32.mrb[0].mxu0
  %v627 = vadd.f32 0.0, %v626
  %v628 = vpop.f32.mrb[0].mxu0
  %v629 = vpop.f32.mrb[0].mxu0
  %v630 = vadd.f32 0.0, %v629
  %v631 = vpop.f32.mrb[0].mxu0
  %632 = vmatprep.mubr.bf16.mxu0 %v329
  %633 = vmatmul.mubr.bf16.gmra.mrb[0].mxu0 %v328
  %v634 = vpop.f32.mrb[0].mxu0
  %v635 = vadd.f32 0.0, %v634
  %v636 = vpop.f32.mrb[0].mxu0
  %v637 = vpop.f32.mrb[0].mxu0
  %v638 = vadd.f32 0.0, %v637
  %v639 = vpop.f32.mrb[0].mxu0
  %640 = vmatprep.mubr.bf16.mxu0 %v331
  %641 = vmatmul.mubr.bf16.gmra.mrb[0].mxu0 %v330
  %v642 = vpop.f32.mrb[0].mxu0
  %v643 = vadd.f32 0.0, %v642
  %v644 = vpop.f32.mrb[0].mxu0
  %v645 = vpop.f32.mrb[0].mxu0
  %v646 = vadd.f32 0.0, %v645
  %v647 = vpop.f32.mrb[0].mxu0
  %648 = vmatprep.mubr.bf16.mxu0 %v333
  %649 = vmatmul.mubr.bf16.gmra.mrb[0].mxu0 %v332
  %v650 = vpop.f32.mrb[0].mxu0
  %v651 = vadd.f32 0.0, %v650
  %v652 = vpop.f32.mrb[0].mxu0
  %v653 = vpop.f32.mrb[0].mxu0
  %v654 = vadd.f32 0.0, %v653
  %v655 = vpop.f32.mrb[0].mxu0
  %656 = vmatprep.mubr.bf16.mxu0 %v335
  %657 = vmatmul.mubr.bf16.gmra.mrb[0].mxu0 %v334
  %v658 = vpop.f32.mrb[0].mxu0
  %v659 = vadd.f32 0.0, %v658
  %v660 = vpop.f32.mrb[0].mxu0
  %v661 = vpop.f32.mrb[0].mxu0
  %v662 = vadd.f32 0.0, %v661
  %v663 = vpop.f32.mrb[0].mxu0
  %664 = vmatprep.mubr.bf16.mxu0 %v337
  %665 = vmatmul.mubr.bf16.gmra.mrb[0].mxu0 %v336
  %v666 = vpop.f32.mrb[0].mxu0
  %v667 = vadd.f32 0.0, %v666
  %v668 = vpop.f32.mrb[0].mxu0
  %v669 = vpop.f32.mrb[0].mxu0
  %v670 = vadd.f32 0.0, %v669
  %v671 = vpop.f32.mrb[0].mxu0
  %672 = vmatprep.mubr.bf16.mxu0 %v339
  %673 = vmatmul.mubr.bf16.gmra.mrb[0].mxu0 %v338
  %v674 = vpop.f32.mrb[0].mxu0
  %v675 = vadd.f32 0.0, %v674
  %v676 = vpop.f32.mrb[0].mxu0
  %v677 = vpop.f32.mrb[0].mxu0
  %v678 = vadd.f32 0.0, %v677
  %v679 = vpop.f32.mrb[0].mxu0
  %680 = vmatprep.mubr.bf16.mxu0 %v341
  %681 = vmatmul.mubr.bf16.gmra.mrb[0].mxu0 %v340
  %v682 = vpop.f32.mrb[0].mxu0
  %v683 = vadd.f32 0.0, %v682
  %v684 = vpop.f32.mrb[0].mxu0
  %v685 = vpop.f32.mrb[0].mxu0
  %v686 = vadd.f32 0.0, %v685
  %v687 = vpop.f32.mrb[0].mxu0
  %688 = vmatprep.mubr.bf16.mxu0 %v343
  %689 = vmatmul.mubr.bf16.gmra.mrb[0].mxu0 %v342
  %v690 = vpop.f32.mrb[0].mxu0
  %v691 = vadd.f32 0.0, %v690
  %v692 = vpop.f32.mrb[0].mxu0
  %v693 = vpop.f32.mrb[0].mxu0
  %v694 = vadd.f32 0.0, %v693
  %v695 = vpop.f32.mrb[0].mxu0
  %696 = vmatprep.mubr.bf16.mxu0 %v345
  %697 = vmatmul.mubr.bf16.gmra.mrb[0].mxu0 %v344
  %v698 = vpop.f32.mrb[0].mxu0
  %v699 = vadd.f32 0.0, %v698
  %v700 = vpop.f32.mrb[0].mxu0
  %v701 = vpop.f32.mrb[0].mxu0
  %v702 = vadd.f32 0.0, %v701
  %v703 = vpop.f32.mrb[0].mxu0
  %704 = vmatprep.mubr.bf16.mxu0 %v347
  %705 = vmatmul.mubr.bf16.gmra.mrb[0].mxu0 %v346
  %v706 = vpop.f32.mrb[0].mxu0
  %v707 = vadd.f32 0.0, %v706
  %v708 = vpop.f32.mrb[0].mxu0
  %v709 = vpop.f32.mrb[0].mxu0
  %v710 = vadd.f32 0.0, %v709
  %v711 = vpop.f32.mrb[0].mxu0
  %712 = vmatprep.mubr.bf16.mxu0 %v349
  %713 = vmatmul.mubr.bf16.gmra.mrb[0].mxu0 %v348
  %v714 = vpop.f32.mrb[0].mxu0
  %v715 = vadd.f32 0.0, %v714
  %v716 = vpop.f32.mrb[0].mxu0
  %v717 = vpop.f32.mrb[0].mxu0
  %v718 = vadd.f32 0.0, %v717
  %v719 = vpop.f32.mrb[0].mxu0
  %720 = vmatprep.mubr.bf16.mxu0 %v351
  %721 = vmatmul.mubr.bf16.gmra.mrb[0].mxu0 %v350
  %v722 = vpop.f32.mrb[0].mxu0
  %v723 = vadd.f32 0.0, %v722
  %v724 = vpop.f32.mrb[0].mxu0
  %v725 = vpop.f32.mrb[0].mxu0
  %v726 = vadd.f32 0.0, %v725
  %v727 = vpop.f32.mrb[0].mxu0
  %728 = vmatprep.mubr.bf16.mxu0 %v353
  %729 = vmatmul.mubr.bf16.gmra.mrb[0].mxu0 %v352
  %v730 = vpop.f32.mrb[0].mxu0
  %v731 = vadd.f32 0.0, %v730
  %v732 = vpop.f32.mrb[0].mxu0
  %v733 = vpop.f32.mrb[0].mxu0
  %v734 = vadd.f32 0.0, %v733
  %v735 = vpop.f32.mrb[0].mxu0
  %736 = vmatprep.mubr.bf16.mxu0 %v355
  %737 = vmatmul.mubr.bf16.gmra.mrb[0].mxu0 %v354
  %v738 = vpop.f32.mrb[0].mxu0
  %v739 = vadd.f32 0.0, %v738
  %v740 = vpop.f32.mrb[0].mxu0
  %v741 = vpop.f32.mrb[0].mxu0
  %v742 = vadd.f32 0.0, %v741
  %v743 = vpop.f32.mrb[0].mxu0
  %744 = vmatprep.mubr.bf16.mxu0 %v357
  %745 = vmatmul.mubr.bf16.gmra.mrb[0].mxu0 %v356
  %v746 = vpop.f32.mrb[0].mxu0
  %v747 = vadd.f32 0.0, %v746
  %v748 = vpop.f32.mrb[0].mxu0
  %v749 = vpop.f32.mrb[0].mxu0
  %v750 = vadd.f32 0.0, %v749
  %v751 = vpop.f32.mrb[0].mxu0
  %752 = vmatprep.mubr.bf16.mxu0 %v359
  %753 = vmatmul.mubr.bf16.gmra.mrb[0].mxu0 %v358
  %v754 = vpop.f32.mrb[0].mxu0
  %v755 = vadd.f32 0.0, %v754
  %v756 = vpop.f32.mrb[0].mxu0
  %v757 = vpop.f32.mrb[0].mxu0
  %v758 = vadd.f32 0.0, %v757
  %v759 = vpop.f32.mrb[0].mxu0
  %760 = vmatprep.mubr.bf16.mxu0 %v361
  %761 = vmatmul.mubr.bf16.gmra.mrb[0].mxu0 %v360
  %v762 = vpop.f32.mrb[0].mxu0
  %v763 = vadd.f32 0.0, %v762
  %v764 = vpop.f32.mrb[0].mxu0
  %v765 = vpop.f32.mrb[0].mxu0
  %v766 = vadd.f32 0.0, %v765
  %v767 = vpop.f32.mrb[0].mxu0
  %768 = vmatprep.mubr.bf16.mxu0 %v363
  %769 = vmatmul.mubr.bf16.gmra.mrb[0].mxu0 %v362
  %v770 = vpop.f32.mrb[0].mxu0
  %v771 = vadd.f32 0.0, %v770
  %v772 = vpop.f32.mrb[0].mxu0
  %v773 = vpop.f32.mrb[0].mxu0
  %v774 = vadd.f32 0.0, %v773
  %v775 = vpop.f32.mrb[0].mxu0
  %776 = vmatprep.mubr.bf16.mxu0 %v365
  %777 = vmatmul.mubr.bf16.gmra.mrb[0].mxu0 %v364
  %v778 = vpop.f32.mrb[0].mxu0
  %v779 = vadd.f32 0.0, %v778
  %v780 = vpop.f32.mrb[0].mxu0
  %v781 = vpop.f32.mrb[0].mxu0
  %v782 = vadd.f32 0.0, %v781
  %v783 = vpop.f32.mrb[0].mxu0
  %784 = vmatprep.mubr.bf16.mxu0 %v367
  %785 = vmatmul.mubr.bf16.gmra.mrb[0].mxu0 %v366
  %v786 = vpop.f32.mrb[0].mxu0
  %v787 = vadd.f32 0.0, %v786
  %v788 = vpop.f32.mrb[0].mxu0
  %v789 = vpop.f32.mrb[0].mxu0
  %v790 = vadd.f32 0.0, %v789
  %v791 = vpop.f32.mrb[0].mxu0
  %792 = vmatprep.mubr.bf16.mxu0 %v369
  %793 = vmatmul.mubr.bf16.gmra.mrb[0].mxu0 %v368
  %v794 = vpop.f32.mrb[0].mxu0
  %v795 = vadd.f32 0.0, %v794
  %v796 = vpop.f32.mrb[0].mxu0
  %v797 = vpop.f32.mrb[0].mxu0
  %v798 = vadd.f32 0.0, %v797
  %v799 = vpop.f32.mrb[0].mxu0
  %800 = vmatprep.mubr.bf16.mxu0 %v371
  %801 = vmatmul.mubr.bf16.gmra.mrb[0].mxu0 %v370
  %v802 = vpop.f32.mrb[0].mxu0
  %v803 = vadd.f32 0.0, %v802
  %v804 = vpop.f32.mrb[0].mxu0
  %v805 = vpop.f32.mrb[0].mxu0
  %v806 = vadd.f32 0.0, %v805
  %v807 = vpop.f32.mrb[0].mxu0
  %808 = vmatprep.mubr.bf16.mxu0 %v373
  %809 = vmatmul.mubr.bf16.gmra.mrb[0].mxu0 %v372
  %v810 = vpop.f32.mrb[0].mxu0
  %v811 = vadd.f32 0.0, %v810
  %v812 = vpop.f32.mrb[0].mxu0
  %v813 = vpop.f32.mrb[0].mxu0
  %v814 = vadd.f32 0.0, %v813
  %v815 = vpop.f32.mrb[0].mxu0
  %816 = vmatprep.mubr.bf16.mxu0 %v375
  %817 = vmatmul.mubr.bf16.gmra.mrb[0].mxu0 %v374
  %v818 = vpop.f32.mrb[0].mxu0
  %v819 = vadd.f32 0.0, %v818
  %v820 = vpop.f32.mrb[0].mxu0
  %v821 = vpop.f32.mrb[0].mxu0
  %v822 = vadd.f32 0.0, %v821
  %v823 = vpop.f32.mrb[0].mxu0
  %824 = vdwg.mxu0
  %s825 = smul.u32 0, 512
  %s826 = scalar_lea.vmem [#allocation2], %s825
  %827 = vst [vmem:[%s826] sm:$0xff] %v571
  %828 = vst [vmem:[%s826 + $0x8] sm:$0xff] %v574
  %829 = vst [vmem:[%s826 + $0x10] sm:$0xff] %v579
  %830 = vst [vmem:[%s826 + $0x18] sm:$0xff] %v582
  %831 = vst [vmem:[%s826 + $0x20] sm:$0xff] %v587
  %832 = vst [vmem:[%s826 + $0x28] sm:$0xff] %v590
  %833 = vst [vmem:[%s826 + $0x30] sm:$0xff] %v595
  %834 = vst [vmem:[%s826 + $0x38] sm:$0xff] %v598
  %835 = vst [vmem:[%s826 + $0x40] sm:$0xff] %v603
  %836 = vst [vmem:[%s826 + $0x48] sm:$0xff] %v606
  %837 = vst [vmem:[%s826 + $0x50] sm:$0xff] %v611
  %838 = vst [vmem:[%s826 + $0x58] sm:$0xff] %v614
  %839 = vst [vmem:[%s826 + $0x60] sm:$0xff] %v619
  %840 = vst [vmem:[%s826 + $0x68] sm:$0xff] %v622
  %841 = vst [vmem:[%s826 + $0x70] sm:$0xff] %v627
  %842 = vst [vmem:[%s826 + $0x78] sm:$0xff] %v630
  %843 = vst [vmem:[%s826 + $0x80] sm:$0xff] %v635
  %844 = vst [vmem:[%s826 + $0x88] sm:$0xff] %v638
  %845 = vst [vmem:[%s826 + $0x90] sm:$0xff] %v643
  %846 = vst [vmem:[%s826 + $0x98] sm:$0xff] %v646
  %847 = vst [vmem:[%s826 + $0xa0] sm:$0xff] %v651
  %848 = vst [vmem:[%s826 + $0xa8] sm:$0xff] %v654
  %849 = vst [vmem:[%s826 + $0xb0] sm:$0xff] %v659
  %850 = vst [vmem:[%s826 + $0xb8] sm:$0xff] %v662
  %851 = vst [vmem:[%s826 + $0xc0] sm:$0xff] %v667
  %852 = vst [vmem:[%s826 + $0xc8] sm:$0xff] %v670
  %853 = vst [vmem:[%s826 + $0xd0] sm:$0xff] %v675
  %854 = vst [vmem:[%s826 + $0xd8] sm:$0xff] %v678
  %855 = vst [vmem:[%s826 + $0xe0] sm:$0xff] %v683
  %856 = vst [vmem:[%s826 + $0xe8] sm:$0xff] %v686
  %857 = vst [vmem:[%s826 + $0xf0] sm:$0xff] %v691
  %858 = vst [vmem:[%s826 + $0xf8] sm:$0xff] %v694
  %859 = vst [vmem:[%s826 + $0x100] sm:$0xff] %v699
  %860 = vst [vmem:[%s826 + $0x108] sm:$0xff] %v702
  %861 = vst [vmem:[%s826 + $0x110] sm:$0xff] %v707
  %862 = vst [vmem:[%s826 + $0x118] sm:$0xff] %v710
  %863 = vst [vmem:[%s826 + $0x120] sm:$0xff] %v715
  %864 = vst [vmem:[%s826 + $0x128] sm:$0xff] %v718
  %865 = vst [vmem:[%s826 + $0x130] sm:$0xff] %v723
  %866 = vst [vmem:[%s826 + $0x138] sm:$0xff] %v726
  %867 = vst [vmem:[%s826 + $0x140] sm:$0xff] %v731
  %868 = vst [vmem:[%s826 + $0x148] sm:$0xff] %v734
  %869 = vst [vmem:[%s826 + $0x150] sm:$0xff] %v739
  %870 = vst [vmem:[%s826 + $0x158] sm:$0xff] %v742
  %871 = vst [vmem:[%s826 + $0x160] sm:$0xff] %v747
  %872 = vst [vmem:[%s826 + $0x168] sm:$0xff] %v750
  %873 = vst [vmem:[%s826 + $0x170] sm:$0xff] %v755
  %874 = vst [vmem:[%s826 + $0x178] sm:$0xff] %v758
  %875 = vst [vmem:[%s826 + $0x180] sm:$0xff] %v763
  %876 = vst [vmem:[%s826 + $0x188] sm:$0xff] %v766
  %877 = vst [vmem:[%s826 + $0x190] sm:$0xff] %v771
  %878 = vst [vmem:[%s826 + $0x198] sm:$0xff] %v774
  %879 = vst [vmem:[%s826 + $0x1a0] sm:$0xff] %v779
  %880 = vst [vmem:[%s826 + $0x1a8] sm:$0xff] %v782
  %881 = vst [vmem:[%s826 + $0x1b0] sm:$0xff] %v787
  %882 = vst [vmem:[%s826 + $0x1b8] sm:$0xff] %v790
  %883 = vst [vmem:[%s826 + $0x1c0] sm:$0xff] %v795
  %884 = vst [vmem:[%s826 + $0x1c8] sm:$0xff] %v798
  %885 = vst [vmem:[%s826 + $0x1d0] sm:$0xff] %v803
  %886 = vst [vmem:[%s826 + $0x1d8] sm:$0xff] %v806
  %887 = vst [vmem:[%s826 + $0x1e0] sm:$0xff] %v811
  %888 = vst [vmem:[%s826 + $0x1e8] sm:$0xff] %v814
  %889 = vst [vmem:[%s826 + $0x1f0] sm:$0xff] %v819
  %890 = vst [vmem:[%s826 + $0x1f8] sm:$0xff] %v822
  %v891 = vld [vmem:[#allocation3] sm:$0x1]
  %v892 = vadd.f32 %v571, %v574
  %v893 = vadd.f32 %v892, %v579
  %v894 = vadd.f32 %v893, %v582
  %v895 = vadd.f32 %v894, %v587
  %v896 = vadd.f32 %v895, %v590
  %v897 = vadd.f32 %v896, %v595
  %v898 = vadd.f32 %v897, %v598
  %v899 = vadd.f32 %v898, %v603
  %v900 = vadd.f32 %v899, %v606
  %v901 = vadd.f32 %v900, %v611
  %v902 = vadd.f32 %v901, %v614
  %v903 = vadd.f32 %v902, %v619
  %v904 = vadd.f32 %v903, %v622
  %v905 = vadd.f32 %v904, %v627
  %v906 = vadd.f32 %v905, %v630
  %v907 = vadd.f32 %v906, %v635
  %v908 = vadd.f32 %v907, %v638
  %v909 = vadd.f32 %v908, %v643
  %v910 = vadd.f32 %v909, %v646
  %v911 = vadd.f32 %v910, %v651
  %v912 = vadd.f32 %v911, %v654
  %v913 = vadd.f32 %v912, %v659
  %v914 = vadd.f32 %v913, %v662
  %v915 = vadd.f32 %v914, %v667
  %v916 = vadd.f32 %v915, %v670
  %v917 = vadd.f32 %v916, %v675
  %v918 = vadd.f32 %v917, %v678
  %v919 = vadd.f32 %v918, %v683
  %v920 = vadd.f32 %v919, %v686
  %v921 = vadd.f32 %v920, %v691
  %v922 = vadd.f32 %v921, %v694
  %v923 = vadd.f32 %v922, %v699
  %v924 = vadd.f32 %v923, %v702
  %v925 = vadd.f32 %v924, %v707
  %v926 = vadd.f32 %v925, %v710
  %v927 = vadd.f32 %v926, %v715
  %v928 = vadd.f32 %v927, %v718
  %v929 = vadd.f32 %v928, %v723
  %v930 = vadd.f32 %v929, %v726
  %v931 = vadd.f32 %v930, %v731
  %v932 = vadd.f32 %v931, %v734
  %v933 = vadd.f32 %v932, %v739
  %v934 = vadd.f32 %v933, %v742
  %v935 = vadd.f32 %v934, %v747
  %v936 = vadd.f32 %v935, %v750
  %v937 = vadd.f32 %v936, %v755
  %v938 = vadd.f32 %v937, %v758
  %v939 = vadd.f32 %v938, %v763
  %v940 = vadd.f32 %v939, %v766
  %v941 = vadd.f32 %v940, %v771
  %v942 = vadd.f32 %v941, %v774
  %v943 = vadd.f32 %v942, %v779
  %v944 = vadd.f32 %v943, %v782
  %v945 = vadd.f32 %v944, %v787
  %v946 = vadd.f32 %v945, %v790
  %v947 = vadd.f32 %v946, %v795
  %v948 = vadd.f32 %v947, %v798
  %v949 = vadd.f32 %v948, %v803
  %v950 = vadd.f32 %v949, %v806
  %v951 = vadd.f32 %v950, %v811
  %v952 = vadd.f32 %v951, %v814
  %v953 = vadd.f32 %v952, %v819
  %v954 = vadd.f32 %v953, %v822
  %v955 = vrot.slane %v954, 4
  %v956 = vadd.f32 %v954, %v955
  %v957 = vrot.slane %v956, 2
  %v958 = vadd.f32 %v956, %v957
  %v959 = vrot.slane %v958, 1
  %v960 = vadd.f32 %v958, %v959
  %v961 = vadd.f32 %v891, %v960
  %962 = vst [vmem:[#allocation3] sm:$0x1] %v961
  %v963 = vld [vmem:[#allocation4] sm:$0x1]
  %v964 = vmul.f32 %v571, %v571
  %v965 = vmul.f32 %v574, %v574
  %v966 = vmul.f32 %v579, %v579
  %v967 = vmul.f32 %v582, %v582
  %v968 = vmul.f32 %v587, %v587
  %v969 = vmul.f32 %v590, %v590
  %v970 = vmul.f32 %v595, %v595
  %v971 = vmul.f32 %v598, %v598
  %v972 = vmul.f32 %v603, %v603
  %v973 = vmul.f32 %v606, %v606
  %v974 = vmul.f32 %v611, %v611
  %v975 = vmul.f32 %v614, %v614
  %v976 = vmul.f32 %v619, %v619
  %v977 = vmul.f32 %v622, %v622
  %v978 = vmul.f32 %v627, %v627
  %v979 = vmul.f32 %v630, %v630
  %v980 = vmul.f32 %v635, %v635
  %v981 = vmul.f32 %v638, %v638
  %v982 = vmul.f32 %v643, %v643
  %v983 = vmul.f32 %v646, %v646
  %v984 = vmul.f32 %v651, %v651
  %v985 = vmul.f32 %v654, %v654
  %v986 = vmul.f32 %v659, %v659
  %v987 = vmul.f32 %v662, %v662
  %v988 = vmul.f32 %v667, %v667
  %v989 = vmul.f32 %v670, %v670
  %v990 = vmul.f32 %v675, %v675
  %v991 = vmul.f32 %v678, %v678
  %v992 = vmul.f32 %v683, %v683
  %v993 = vmul.f32 %v686, %v686
  %v994 = vmul.f32 %v691, %v691
  %v995 = vmul.f32 %v694, %v694
  %v996 = vmul.f32 %v699, %v699
  %v997 = vmul.f32 %v702, %v702
  %v998 = vmul.f32 %v707, %v707
  %v999 = vmul.f32 %v710, %v710
  %v1000 = vmul.f32 %v715, %v715
  %v1001 = vmul.f32 %v718, %v718
  %v1002 = vmul.f32 %v723, %v723
  %v1003 = vmul.f32 %v726, %v726
  %v1004 = vmul.f32 %v731, %v731
  %v1005 = vmul.f32 %v734, %v734
  %v1006 = vmul.f32 %v739, %v739
  %v1007 = vmul.f32 %v742, %v742
  %v1008 = vmul.f32 %v747, %v747
  %v1009 = vmul.f32 %v750, %v750
  %v1010 = vmul.f32 %v755, %v755
  %v1011 = vmul.f32 %v758, %v758
  %v1012 = vmul.f32 %v763, %v763
  %v1013 = vmul.f32 %v766, %v766
  %v1014 = vmul.f32 %v771, %v771
  %v1015 = vmul.f32 %v774, %v774
  %v1016 = vmul.f32 %v779, %v779
  %v1017 = vmul.f32 %v782, %v782
  %v1018 = vmul.f32 %v787, %v787
  %v1019 = vmul.f32 %v790, %v790
  %v1020 = vmul.f32 %v795, %v795
  %v1021 = vmul.f32 %v798, %v798
  %v1022 = vmul.f32 %v803, %v803
  %v1023 = vmul.f32 %v806, %v806
  %v1024 = vmul.f32 %v811, %v811
  %v1025 = vmul.f32 %v814, %v814
  %v1026 = vmul.f32 %v819, %v819
  %v1027 = vmul.f32 %v822, %v822
  %v1028 = vadd.f32 %v964, %v965
  %v1029 = vadd.f32 %v1028, %v966
  %v1030 = vadd.f32 %v1029, %v967
  %v1031 = vadd.f32 %v1030, %v968
  %v1032 = vadd.f32 %v1031, %v969
  %v1033 = vadd.f32 %v1032, %v970
  %v1034 = vadd.f32 %v1033, %v971
  %v1035 = vadd.f32 %v1034, %v972
  %v1036 = vadd.f32 %v1035, %v973
  %v1037 = vadd.f32 %v1036, %v974
  %v1038 = vadd.f32 %v1037, %v975
  %v1039 = vadd.f32 %v1038, %v976
  %v1040 = vadd.f32 %v1039, %v977
  %v1041 = vadd.f32 %v1040, %v978
  %v1042 = vadd.f32 %v1041, %v979
  %v1043 = vadd.f32 %v1042, %v980
  %v1044 = vadd.f32 %v1043, %v981
  %v1045 = vadd.f32 %v1044, %v982
  %v1046 = vadd.f32 %v1045, %v983
  %v1047 = vadd.f32 %v1046, %v984
  %v1048 = vadd.f32 %v1047, %v985
  %v1049 = vadd.f32 %v1048, %v986
  %v1050 = vadd.f32 %v1049, %v987
  %v1051 = vadd.f32 %v1050, %v988
  %v1052 = vadd.f32 %v1051, %v989
  %v1053 = vadd.f32 %v1052, %v990
  %v1054 = vadd.f32 %v1053, %v991
  %v1055 = vadd.f32 %v1054, %v992
  %v1056 = vadd.f32 %v1055, %v993
  %v1057 = vadd.f32 %v1056, %v994
  %v1058 = vadd.f32 %v1057, %v995
  %v1059 = vadd.f32 %v1058, %v996
  %v1060 = vadd.f32 %v1059, %v997
  %v1061 = vadd.f32 %v1060, %v998
  %v1062 = vadd.f32 %v1061, %v999
  %v1063 = vadd.f32 %v1062, %v1000
  %v1064 = vadd.f32 %v1063, %v1001
  %v1065 = vadd.f32 %v1064, %v1002
  %v1066 = vadd.f32 %v1065, %v1003
  %v1067 = vadd.f32 %v1066, %v1004
  %v1068 = vadd.f32 %v1067, %v1005
  %v1069 = vadd.f32 %v1068, %v1006
  %v1070 = vadd.f32 %v1069, %v1007
  %v1071 = vadd.f32 %v1070, %v1008
  %v1072 = vadd.f32 %v1071, %v1009
  %v1073 = vadd.f32 %v1072, %v1010
  %v1074 = vadd.f32 %v1073, %v1011
  %v1075 = vadd.f32 %v1074, %v1012
  %v1076 = vadd.f32 %v1075, %v1013
  %v1077 = vadd.f32 %v1076, %v1014
  %v1078 = vadd.f32 %v1077, %v1015
  %v1079 = vadd.f32 %v1078, %v1016
  %v1080 = vadd.f32 %v1079, %v1017
  %v1081 = vadd.f32 %v1080, %v1018
  %v1082 = vadd.f32 %v1081, %v1019
  %v1083 = vadd.f32 %v1082, %v1020
  %v1084 = vadd.f32 %v1083, %v1021
  %v1085 = vadd.f32 %v1084, %v1022
  %v1086 = vadd.f32 %v1085, %v1023
  %v1087 = vadd.f32 %v1086, %v1024
  %v1088 = vadd.f32 %v1087, %v1025
  %v1089 = vadd.f32 %v1088, %v1026
  %v1090 = vadd.f32 %v1089, %v1027
  %v1091 = vrot.slane %v1090, 4
  %v1092 = vadd.f32 %v1090, %v1091
  %v1093 = vrot.slane %v1092, 2
  %v1094 = vadd.f32 %v1092, %v1093
  %v1095 = vrot.slane %v1094, 1
  %v1096 = vadd.f32 %v1094, %v1095
  %v1097 = vadd.f32 %v963, %v1096
  %1098 = vst [vmem:[#allocation4] sm:$0x1] %v1097
  // Predicated region
  $region22: #{encoder_2d_forward.4} parent=0 // pred_check
    %p1099 = pneg %p18
  $region23: #{encoder_2d_forward.4} parent=0 // pred_check_branch
    %1101 = sbr.rel (%p1099) target = $region25
  $region24: #{encoder_2d_forward.4} parent=0 // pred_region
    %v1102 = vld [vmem:[#allocation3] sm:$0x1]
    %v1103 = vmul.f32 %v1102, 0.001953125
    %v1104 = vld [vmem:[#allocation4] sm:$0x1]
    %v1105 = vmul.f32 %v1104, 0.001953125
    %v1106 = vmul.f32 %v1103, %v1103
    %v1107 = vsub.f32 %v1105, %v1106
    %v1108 = vmax.f32 %v1107, 0.0
    %v1109 = vld [vmem:[%s2] sm:$0x1]
    %v1110 = vadd.f32 %v1108, 1e-05
    %v1111 = vrsqrt.pop %v1110
    %v1112 = vmul.f32 %v1109, %v1111
    %v1113 = vld [vmem:[%s3] sm:$0x1]
    %v1114 = vmul.f32 %v1103, %v1112
    %v1115 = vsub.f32 %v1113, %v1114
    %v1117 = vlaneseq
    %v1118 = vshrl.u32 %v1117, 7
    %v1119 = vsub.s32 0, %v1118
    %v1120 = vrot.slane %v1112, %v1119
    %v1123 = vlaneseq
    %v1124 = vshrl.u32 %v1123, 7
    %v1125 = vsub.s32 0, %v1124
    %v1126 = vrot.slane %v1115, %v1125
    %v1128 = vld [vmem:[#allocation2] sm:$0xff]
    %v1129 = vld [vmem:[#allocation2 + $0x8] sm:$0xff]
    %v1130 = vld [vmem:[#allocation2 + $0x10] sm:$0xff]
    %v1131 = vld [vmem:[#allocation2 + $0x18] sm:$0xff]
    %v1132 = vld [vmem:[#allocation2 + $0x20] sm:$0xff]
    %v1133 = vld [vmem:[#allocation2 + $0x28] sm:$0xff]
    %v1134 = vld [vmem:[#allocation2 + $0x30] sm:$0xff]
    %v1135 = vld [vmem:[#allocation2 + $0x38] sm:$0xff]
    %v1136 = vld [vmem:[#allocation2 + $0x40] sm:$0xff]
    %v1137 = vld [vmem:[#allocation2 + $0x48] sm:$0xff]
    %v1138 = vld [vmem:[#allocation2 + $0x50] sm:$0xff]
    %v1139 = vld [vmem:[#allocation2 + $0x58] sm:$0xff]
    %v1140 = vld [vmem:[#allocation2 + $0x60] sm:$0xff]
    %v1141 = vld [vmem:[#allocation2 + $0x68] sm:$0xff]
    %v1142 = vld [vmem:[#allocation2 + $0x70] sm:$0xff]
    %v1143 = vld [vmem:[#allocation2 + $0x78] sm:$0xff]
    %v1144 = vld [vmem:[#allocation2 + $0x80] sm:$0xff]
    %v1145 = vld [vmem:[#allocation2 + $0x88] sm:$0xff]
    %v1146 = vld [vmem:[#allocation2 + $0x90] sm:$0xff]
    %v1147 = vld [vmem:[#allocation2 + $0x98] sm:$0xff]
    %v1148 = vld [vmem:[#allocation2 + $0xa0] sm:$0xff]
    %v1149 = vld [vmem:[#allocation2 + $0xa8] sm:$0xff]
    %v1150 = vld [vmem:[#allocation2 + $0xb0] sm:$0xff]
    %v1151 = vld [vmem:[#allocation2 + $0xb8] sm:$0xff]
    %v1152 = vld [vmem:[#allocation2 + $0xc0] sm:$0xff]
    %v1153 = vld [vmem:[#allocation2 + $0xc8] sm:$0xff]
    %v1154 = vld [vmem:[#allocation2 + $0xd0] sm:$0xff]
    %v1155 = vld [vmem:[#allocation2 + $0xd8] sm:$0xff]
    %v1156 = vld [vmem:[#allocation2 + $0xe0] sm:$0xff]
    %v1157 = vld [vmem:[#allocation2 + $0xe8] sm:$0xff]
    %v1158 = vld [vmem:[#allocation2 + $0xf0] sm:$0xff]
    %v1159 = vld [vmem:[#allocation2 + $0xf8] sm:$0xff]
    %v1160 = vld [vmem:[#allocation2 + $0x100] sm:$0xff]
    %v1161 = vld [vmem:[#allocation2 + $0x108] sm:$0xff]
    %v1162 = vld [vmem:[#allocation2 + $0x110] sm:$0xff]
    %v1163 = vld [vmem:[#allocation2 + $0x118] sm:$0xff]
    %v1164 = vld [vmem:[#allocation2 + $0x120] sm:$0xff]
    %v1165 = vld [vmem:[#allocation2 + $0x128] sm:$0xff]
    %v1166 = vld [vmem:[#allocation2 + $0x130] sm:$0xff]
    %v1167 = vld [vmem:[#allocation2 + $0x138] sm:$0xff]
    %v1168 = vld [vmem:[#allocation2 + $0x140] sm:$0xff]
    %v1169 = vld [vmem:[#allocation2 + $0x148] sm:$0xff]
    %v1170 = vld [vmem:[#allocation2 + $0x150] sm:$0xff]
    %v1171 = vld [vmem:[#allocation2 + $0x158] sm:$0xff]
    %v1172 = vld [vmem:[#allocation2 + $0x160] sm:$0xff]
    %v1173 = vld [vmem:[#allocation2 + $0x168] sm:$0xff]
    %v1174 = vld [vmem:[#allocation2 + $0x170] sm:$0xff]
    %v1175 = vld [vmem:[#allocation2 + $0x178] sm:$0xff]
    %v1176 = vld [vmem:[#allocation2 + $0x180] sm:$0xff]
    %v1177 = vld [vmem:[#allocation2 + $0x188] sm:$0xff]
    %v1178 = vld [vmem:[#allocation2 + $0x190] sm:$0xff]
    %v1179 = vld [vmem:[#allocation2 + $0x198] sm:$0xff]
    %v1180 = vld [vmem:[#allocation2 + $0x1a0] sm:$0xff]
    %v1181 = vld [vmem:[#allocation2 + $0x1a8] sm:$0xff]
    %v1182 = vld [vmem:[#allocation2 + $0x1b0] sm:$0xff]
    %v1183 = vld [vmem:[#allocation2 + $0x1b8] sm:$0xff]
    %v1184 = vld [vmem:[#allocation2 + $0x1c0] sm:$0xff]
    %v1185 = vld [vmem:[#allocation2 + $0x1c8] sm:$0xff]
    %v1186 = vld [vmem:[#allocation2 + $0x1d0] sm:$0xff]
    %v1187 = vld [vmem:[#allocation2 + $0x1d8] sm:$0xff]
    %v1188 = vld [vmem:[#allocation2 + $0x1e0] sm:$0xff]
    %v1189 = vld [vmem:[#allocation2 + $0x1e8] sm:$0xff]
    %v1190 = vld [vmem:[#allocation2 + $0x1f0] sm:$0xff]
    %v1191 = vld [vmem:[#allocation2 + $0x1f8] sm:$0xff]
    %v1192 = vmul.f32 %v1128, %v1120
    %v1193 = vmul.f32 %v1129, %v1120
    %v1194 = vmul.f32 %v1130, %v1120
    %v1195 = vmul.f32 %v1131, %v1120
    %v1196 = vmul.f32 %v1132, %v1120
    %v1197 = vmul.f32 %v1133, %v1120
    %v1198 = vmul.f32 %v1134, %v1120
    %v1199 = vmul.f32 %v1135, %v1120
    %v1200 = vmul.f32 %v1136, %v1120
    %v1201 = vmul.f32 %v1137, %v1120
    %v1202 = vmul.f32 %v1138, %v1120
    %v1203 = vmul.f32 %v1139, %v1120
    %v1204 = vmul.f32 %v1140, %v1120
    %v1205 = vmul.f32 %v1141, %v1120
    %v1206 = vmul.f32 %v1142, %v1120
    %v1207 = vmul.f32 %v1143, %v1120
    %v1208 = vmul.f32 %v1144, %v1120
    %v1209 = vmul.f32 %v1145, %v1120
    %v1210 = vmul.f32 %v1146, %v1120
    %v1211 = vmul.f32 %v1147, %v1120
    %v1212 = vmul.f32 %v1148, %v1120
    %v1213 = vmul.f32 %v1149, %v1120
    %v1214 = vmul.f32 %v1150, %v1120
    %v1215 = vmul.f32 %v1151, %v1120
    %v1216 = vmul.f32 %v1152, %v1120
    %v1217 = vmul.f32 %v1153, %v1120
    %v1218 = vmul.f32 %v1154, %v1120
    %v1219 = vmul.f32 %v1155, %v1120
    %v1220 = vmul.f32 %v1156, %v1120
    %v1221 = vmul.f32 %v1157, %v1120
    %v1222 = vmul.f32 %v1158, %v1120
    %v1223 = vmul.f32 %v1159, %v1120
    %v1224 = vmul.f32 %v1160, %v1120
    %v1225 = vmul.f32 %v1161, %v1120
    %v1226 = vmul.f32 %v1162, %v1120
    %v1227 = vmul.f32 %v1163, %v1120
    %v1228 = vmul.f32 %v1164, %v1120
    %v1229 = vmul.f32 %v1165, %v1120
    %v1230 = vmul.f32 %v1166, %v1120
    %v1231 = vmul.f32 %v1167, %v1120
    %v1232 = vmul.f32 %v1168, %v1120
    %v1233 = vmul.f32 %v1169, %v1120
    %v1234 = vmul.f32 %v1170, %v1120
    %v1235 = vmul.f32 %v1171, %v1120
    %v1236 = vmul.f32 %v1172, %v1120
    %v1237 = vmul.f32 %v1173, %v1120
    %v1238 = vmul.f32 %v1174, %v1120
    %v1239 = vmul.f32 %v1175, %v1120
    %v1240 = vmul.f32 %v1176, %v1120
    %v1241 = vmul.f32 %v1177, %v1120
    %v1242 = vmul.f32 %v1178, %v1120
    %v1243 = vmul.f32 %v1179, %v1120
    %v1244 = vmul.f32 %v1180, %v1120
    %v1245 = vmul.f32 %v1181, %v1120
    %v1246 = vmul.f32 %v1182, %v1120
    %v1247 = vmul.f32 %v1183, %v1120
    %v1248 = vmul.f32 %v1184, %v1120
    %v1249 = vmul.f32 %v1185, %v1120
    %v1250 = vmul.f32 %v1186, %v1120
    %v1251 = vmul.f32 %v1187, %v1120
    %v1252 = vmul.f32 %v1188, %v1120
    %v1253 = vmul.f32 %v1189, %v1120
    %v1254 = vmul.f32 %v1190, %v1120
    %v1255 = vmul.f32 %v1191, %v1120
    %v1256 = vadd.f32 %v1192, %v1126
    %v1257 = vadd.f32 %v1193, %v1126
    %v1258 = vadd.f32 %v1194, %v1126
    %v1259 = vadd.f32 %v1195, %v1126
    %v1260 = vadd.f32 %v1196, %v1126
    %v1261 = vadd.f32 %v1197, %v1126
    %v1262 = vadd.f32 %v1198, %v1126
    %v1263 = vadd.f32 %v1199, %v1126
    %v1264 = vadd.f32 %v1200, %v1126
    %v1265 = vadd.f32 %v1201, %v1126
    %v1266 = vadd.f32 %v1202, %v1126
    %v1267 = vadd.f32 %v1203, %v1126
    %v1268 = vadd.f32 %v1204, %v1126
    %v1269 = vadd.f32 %v1205, %v1126
    %v1270 = vadd.f32 %v1206, %v1126
    %v1271 = vadd.f32 %v1207, %v1126
    %v1272 = vadd.f32 %v1208, %v1126
    %v1273 = vadd.f32 %v1209, %v1126
    %v1274 = vadd.f32 %v1210, %v1126
    %v1275 = vadd.f32 %v1211, %v1126
    %v1276 = vadd.f32 %v1212, %v1126
    %v1277 = vadd.f32 %v1213, %v1126
    %v1278 = vadd.f32 %v1214, %v1126
    %v1279 = vadd.f32 %v1215, %v1126
    %v1280 = vadd.f32 %v1216, %v1126
    %v1281 = vadd.f32 %v1217, %v1126
    %v1282 = vadd.f32 %v1218, %v1126
    %v1283 = vadd.f32 %v1219, %v1126
    %v1284 = vadd.f32 %v1220, %v1126
    %v1285 = vadd.f32 %v1221, %v1126
    %v1286 = vadd.f32 %v1222, %v1126
    %v1287 = vadd.f32 %v1223, %v1126
    %v1288 = vadd.f32 %v1224, %v1126
    %v1289 = vadd.f32 %v1225, %v1126
    %v1290 = vadd.f32 %v1226, %v1126
    %v1291 = vadd.f32 %v1227, %v1126
    %v1292 = vadd.f32 %v1228, %v1126
    %v1293 = vadd.f32 %v1229, %v1126
    %v1294 = vadd.f32 %v1230, %v1126
    %v1295 = vadd.f32 %v1231, %v1126
    %v1296 = vadd.f32 %v1232, %v1126
    %v1297 = vadd.f32 %v1233, %v1126
    %v1298 = vadd.f32 %v1234, %v1126
    %v1299 = vadd.f32 %v1235, %v1126
    %v1300 = vadd.f32 %v1236, %v1126
    %v1301 = vadd.f32 %v1237, %v1126
    %v1302 = vadd.f32 %v1238, %v1126
    %v1303 = vadd.f32 %v1239, %v1126
    %v1304 = vadd.f32 %v1240, %v1126
    %v1305 = vadd.f32 %v1241, %v1126
    %v1306 = vadd.f32 %v1242, %v1126
    %v1307 = vadd.f32 %v1243, %v1126
    %v1308 = vadd.f32 %v1244, %v1126
    %v1309 = vadd.f32 %v1245, %v1126
    %v1310 = vadd.f32 %v1246, %v1126
    %v1311 = vadd.f32 %v1247, %v1126
    %v1312 = vadd.f32 %v1248, %v1126
    %v1313 = vadd.f32 %v1249, %v1126
    %v1314 = vadd.f32 %v1250, %v1126
    %v1315 = vadd.f32 %v1251, %v1126
    %v1316 = vadd.f32 %v1252, %v1126
    %v1317 = vadd.f32 %v1253, %v1126
    %v1318 = vadd.f32 %v1254, %v1126
    %v1319 = vadd.f32 %v1255, %v1126
    %v1320 = vmax.f32 %v1256, 0.0
    %v1321 = vmax.f32 %v1257, 0.0
    %v1322 = vmax.f32 %v1258, 0.0
    %v1323 = vmax.f32 %v1259, 0.0
    %v1324 = vmax.f32 %v1260, 0.0
    %v1325 = vmax.f32 %v1261, 0.0
    %v1326 = vmax.f32 %v1262, 0.0
    %v1327 = vmax.f32 %v1263, 0.0
    %v1328 = vmax.f32 %v1264, 0.0
    %v1329 = vmax.f32 %v1265, 0.0
    %v1330 = vmax.f32 %v1266, 0.0
    %v1331 = vmax.f32 %v1267, 0.0
    %v1332 = vmax.f32 %v1268, 0.0
    %v1333 = vmax.f32 %v1269, 0.0
    %v1334 = vmax.f32 %v1270, 0.0
    %v1335 = vmax.f32 %v1271, 0.0
    %v1336 = vmax.f32 %v1272, 0.0
    %v1337 = vmax.f32 %v1273, 0.0
    %v1338 = vmax.f32 %v1274, 0.0
    %v1339 = vmax.f32 %v1275, 0.0
    %v1340 = vmax.f32 %v1276, 0.0
    %v1341 = vmax.f32 %v1277, 0.0
    %v1342 = vmax.f32 %v1278, 0.0
    %v1343 = vmax.f32 %v1279, 0.0
    %v1344 = vmax.f32 %v1280, 0.0
    %v1345 = vmax.f32 %v1281, 0.0
    %v1346 = vmax.f32 %v1282, 0.0
    %v1347 = vmax.f32 %v1283, 0.0
    %v1348 = vmax.f32 %v1284, 0.0
    %v1349 = vmax.f32 %v1285, 0.0
    %v1350 = vmax.f32 %v1286, 0.0
    %v1351 = vmax.f32 %v1287, 0.0
    %v1352 = vmax.f32 %v1288, 0.0
    %v1353 = vmax.f32 %v1289, 0.0
    %v1354 = vmax.f32 %v1290, 0.0
    %v1355 = vmax.f32 %v1291, 0.0
    %v1356 = vmax.f32 %v1292, 0.0
    %v1357 = vmax.f32 %v1293, 0.0
    %v1358 = vmax.f32 %v1294, 0.0
    %v1359 = vmax.f32 %v1295, 0.0
    %v1360 = vmax.f32 %v1296, 0.0
    %v1361 = vmax.f32 %v1297, 0.0
    %v1362 = vmax.f32 %v1298, 0.0
    %v1363 = vmax.f32 %v1299, 0.0
    %v1364 = vmax.f32 %v1300, 0.0
    %v1365 = vmax.f32 %v1301, 0.0
    %v1366 = vmax.f32 %v1302, 0.0
    %v1367 = vmax.f32 %v1303, 0.0
    %v1368 = vmax.f32 %v1304, 0.0
    %v1369 = vmax.f32 %v1305, 0.0
    %v1370 = vmax.f32 %v1306, 0.0
    %v1371 = vmax.f32 %v1307, 0.0
    %v1372 = vmax.f32 %v1308, 0.0
    %v1373 = vmax.f32 %v1309, 0.0
    %v1374 = vmax.f32 %v1310, 0.0
    %v1375 = vmax.f32 %v1311, 0.0
    %v1376 = vmax.f32 %v1312, 0.0
    %v1377 = vmax.f32 %v1313, 0.0
    %v1378 = vmax.f32 %v1314, 0.0
    %v1379 = vmax.f32 %v1315, 0.0
    %v1380 = vmax.f32 %v1316, 0.0
    %v1381 = vmax.f32 %v1317, 0.0
    %v1382 = vmax.f32 %v1318, 0.0
    %v1383 = vmax.f32 %v1319, 0.0
    %v1384 = vpack.c.bf16 %v1321, %v1320
    %v1385 = vpack.c.bf16 %v1323, %v1322
    %v1386 = vpack.c.bf16 %v1325, %v1324
    %v1387 = vpack.c.bf16 %v1327, %v1326
    %v1388 = vpack.c.bf16 %v1329, %v1328
    %v1389 = vpack.c.bf16 %v1331, %v1330
    %v1390 = vpack.c.bf16 %v1333, %v1332
    %v1391 = vpack.c.bf16 %v1335, %v1334
    %v1392 = vpack.c.bf16 %v1337, %v1336
    %v1393 = vpack.c.bf16 %v1339, %v1338
    %v1394 = vpack.c.bf16 %v1341, %v1340
    %v1395 = vpack.c.bf16 %v1343, %v1342
    %v1396 = vpack.c.bf16 %v1345, %v1344
    %v1397 = vpack.c.bf16 %v1347, %v1346
    %v1398 = vpack.c.bf16 %v1349, %v1348
    %v1399 = vpack.c.bf16 %v1351, %v1350
    %v1400 = vpack.c.bf16 %v1353, %v1352
    %v1401 = vpack.c.bf16 %v1355, %v1354
    %v1402 = vpack.c.bf16 %v1357, %v1356
    %v1403 = vpack.c.bf16 %v1359, %v1358
    %v1404 = vpack.c.bf16 %v1361, %v1360
    %v1405 = vpack.c.bf16 %v1363, %v1362
    %v1406 = vpack.c.bf16 %v1365, %v1364
    %v1407 = vpack.c.bf16 %v1367, %v1366
    %v1408 = vpack.c.bf16 %v1369, %v1368
    %v1409 = vpack.c.bf16 %v1371, %v1370
    %v1410 = vpack.c.bf16 %v1373, %v1372
    %v1411 = vpack.c.bf16 %v1375, %v1374
    %v1412 = vpack.c.bf16 %v1377, %v1376
    %v1413 = vpack.c.bf16 %v1379, %v1378
    %v1414 = vpack.c.bf16 %v1381, %v1380
    %v1415 = vpack.c.bf16 %v1383, %v1382
    %v1448 = vunpack.c.l.b16 %v1384
    %v1449 = vunpack.c.h.b16 %v1384
    %v1450 = vunpack.c.l.b16 %v1385
    %v1451 = vunpack.c.h.b16 %v1385
    %v1452 = vunpack.c.l.b16 %v1386
    %v1453 = vunpack.c.h.b16 %v1386
    %v1454 = vunpack.c.l.b16 %v1387
    %v1455 = vunpack.c.h.b16 %v1387
    %v1456 = vunpack.c.l.b16 %v1388
    %v1457 = vunpack.c.h.b16 %v1388
    %v1458 = vunpack.c.l.b16 %v1389
    %v1459 = vunpack.c.h.b16 %v1389
    %v1460 = vunpack.c.l.b16 %v1390
    %v1461 = vunpack.c.h.b16 %v1390
    %v1462 = vunpack.c.l.b16 %v1391
    %v1463 = vunpack.c.h.b16 %v1391
    %v1464 = vunpack.c.l.b16 %v1392
    %v1465 = vunpack.c.h.b16 %v1392
    %v1466 = vunpack.c.l.b16 %v1393
    %v1467 = vunpack.c.h.b16 %v1393
    %v1468 = vunpack.c.l.b16 %v1394
    %v1469 = vunpack.c.h.b16 %v1394
    %v1470 = vunpack.c.l.b16 %v1395
    %v1471 = vunpack.c.h.b16 %v1395
    %v1472 = vunpack.c.l.b16 %v1396
    %v1473 = vunpack.c.h.b16 %v1396
    %v1474 = vunpack.c.l.b16 %v1397
    %v1475 = vunpack.c.h.b16 %v1397
    %v1476 = vunpack.c.l.b16 %v1398
    %v1477 = vunpack.c.h.b16 %v1398
    %v1478 = vunpack.c.l.b16 %v1399
    %v1479 = vunpack.c.h.b16 %v1399
    %v1480 = vunpack.c.l.b16 %v1400
    %v1481 = vunpack.c.h.b16 %v1400
    %v1482 = vunpack.c.l.b16 %v1401
    %v1483 = vunpack.c.h.b16 %v1401
    %v1484 = vunpack.c.l.b16 %v1402
    %v1485 = vunpack.c.h.b16 %v1402
    %v1486 = vunpack.c.l.b16 %v1403
    %v1487 = vunpack.c.h.b16 %v1403
    %v1488 = vunpack.c.l.b16 %v1404
    %v1489 = vunpack.c.h.b16 %v1404
    %v1490 = vunpack.c.l.b16 %v1405
    %v1491 = vunpack.c.h.b16 %v1405
    %v1492 = vunpack.c.l.b16 %v1406
    %v1493 = vunpack.c.h.b16 %v1406
    %v1494 = vunpack.c.l.b16 %v1407
    %v1495 = vunpack.c.h.b16 %v1407
    %v1496 = vunpack.c.l.b16 %v1408
    %v1497 = vunpack.c.h.b16 %v1408
    %v1498 = vunpack.c.l.b16 %v1409
    %v1499 = vunpack.c.h.b16 %v1409
    %v1500 = vunpack.c.l.b16 %v1410
    %v1501 = vunpack.c.h.b16 %v1410
    %v1502 = vunpack.c.l.b16 %v1411
    %v1503 = vunpack.c.h.b16 %v1411
    %v1504 = vunpack.c.l.b16 %v1412
    %v1505 = vunpack.c.h.b16 %v1412
    %v1506 = vunpack.c.l.b16 %v1413
    %v1507 = vunpack.c.h.b16 %v1413
    %v1508 = vunpack.c.l.b16 %v1414
    %v1509 = vunpack.c.h.b16 %v1414
    %v1510 = vunpack.c.l.b16 %v1415
    %v1511 = vunpack.c.h.b16 %v1415
    %v1512 = vpack.c.b16 %v1448, %v1448
    %v1513 = vpack.c.b16 %v1449, %v1449
    %v1514 = vpack.c.b16 %v1450, %v1450
    %v1515 = vpack.c.b16 %v1451, %v1451
    %v1516 = vpack.c.b16 %v1452, %v1452
    %v1517 = vpack.c.b16 %v1453, %v1453
    %v1518 = vpack.c.b16 %v1454, %v1454
    %v1519 = vpack.c.b16 %v1455, %v1455
    %v1520 = vpack.c.b16 %v1456, %v1456
    %v1521 = vpack.c.b16 %v1457, %v1457
    %v1522 = vpack.c.b16 %v1458, %v1458
    %v1523 = vpack.c.b16 %v1459, %v1459
    %v1524 = vpack.c.b16 %v1460, %v1460
    %v1525 = vpack.c.b16 %v1461, %v1461
    %v1526 = vpack.c.b16 %v1462, %v1462
    %v1527 = vpack.c.b16 %v1463, %v1463
    %v1528 = vpack.c.b16 %v1464, %v1464
    %v1529 = vpack.c.b16 %v1465, %v1465
    %v1530 = vpack.c.b16 %v1466, %v1466
    %v1531 = vpack.c.b16 %v1467, %v1467
    %v1532 = vpack.c.b16 %v1468, %v1468
    %v1533 = vpack.c.b16 %v1469, %v1469
    %v1534 = vpack.c.b16 %v1470, %v1470
    %v1535 = vpack.c.b16 %v1471, %v1471
    %v1536 = vpack.c.b16 %v1472, %v1472
    %v1537 = vpack.c.b16 %v1473, %v1473
    %v1538 = vpack.c.b16 %v1474, %v1474
    %v1539 = vpack.c.b16 %v1475, %v1475
    %v1540 = vpack.c.b16 %v1476, %v1476
    %v1541 = vpack.c.b16 %v1477, %v1477
    %v1542 = vpack.c.b16 %v1478, %v1478
    %v1543 = vpack.c.b16 %v1479, %v1479
    %v1544 = vpack.c.b16 %v1480, %v1480
    %v1545 = vpack.c.b16 %v1481, %v1481
    %v1546 = vpack.c.b16 %v1482, %v1482
    %v1547 = vpack.c.b16 %v1483, %v1483
    %v1548 = vpack.c.b16 %v1484, %v1484
    %v1549 = vpack.c.b16 %v1485, %v1485
    %v1550 = vpack.c.b16 %v1486, %v1486
    %v1551 = vpack.c.b16 %v1487, %v1487
    %v1552 = vpack.c.b16 %v1488, %v1488
    %v1553 = vpack.c.b16 %v1489, %v1489
    %v1554 = vpack.c.b16 %v1490, %v1490
    %v1555 = vpack.c.b16 %v1491, %v1491
    %v1556 = vpack.c.b16 %v1492, %v1492
    %v1557 = vpack.c.b16 %v1493, %v1493
    %v1558 = vpack.c.b16 %v1494, %v1494
    %v1559 = vpack.c.b16 %v1495, %v1495
    %v1560 = vpack.c.b16 %v1496, %v1496
    %v1561 = vpack.c.b16 %v1497, %v1497
    %v1562 = vpack.c.b16 %v1498, %v1498
    %v1563 = vpack.c.b16 %v1499, %v1499
    %v1564 = vpack.c.b16 %v1500, %v1500
    %v1565 = vpack.c.b16 %v1501, %v1501
    %v1566 = vpack.c.b16 %v1502, %v1502
    %v1567 = vpack.c.b16 %v1503, %v1503
    %v1568 = vpack.c.b16 %v1504, %v1504
    %v1569 = vpack.c.b16 %v1505, %v1505
    %v1570 = vpack.c.b16 %v1506, %v1506
    %v1571 = vpack.c.b16 %v1507, %v1507
    %v1572 = vpack.c.b16 %v1508, %v1508
    %v1573 = vpack.c.b16 %v1509, %v1509
    %v1574 = vpack.c.b16 %v1510, %v1510
    %v1575 = vpack.c.b16 %v1511, %v1511
    %vm1640 = vcmask 60416
    %1641 = vst.msk [vmem:[%s4] sm:$0xf] %vm1640, %v1512
    %1642 = vst.msk [vmem:[%s4 + $0x4] sm:$0xf] %vm1640, %v1513
    %1643 = vst.msk [vmem:[%s4 + $0x8] sm:$0xf] %vm1640, %v1514
    %1644 = vst.msk [vmem:[%s4 + $0xc] sm:$0xf] %vm1640, %v1515
    %1645 = vst.msk [vmem:[%s4 + $0x10] sm:$0xf] %vm1640, %v1516
    %1646 = vst.msk [vmem:[%s4 + $0x14] sm:$0xf] %vm1640, %v1517
    %1647 = vst.msk [vmem:[%s4 + $0x18] sm:$0xf] %vm1640, %v1518
    %1648 = vst.msk [vmem:[%s4 + $0x1c] sm:$0xf] %vm1640, %v1519
    %1649 = vst.msk [vmem:[%s4 + $0x20] sm:$0xf] %vm1640, %v1520
    %1650 = vst.msk [vmem:[%s4 + $0x24] sm:$0xf] %vm1640, %v1521
    %1651 = vst.msk [vmem:[%s4 + $0x28] sm:$0xf] %vm1640, %v1522
    %1652 = vst.msk [vmem:[%s4 + $0x2c] sm:$0xf] %vm1640, %v1523
    %1653 = vst.msk [vmem:[%s4 + $0x30] sm:$0xf] %vm1640, %v1524
    %1654 = vst.msk [vmem:[%s4 + $0x34] sm:$0xf] %vm1640, %v1525
    %1655 = vst.msk [vmem:[%s4 + $0x38] sm:$0xf] %vm1640, %v1526
    %1656 = vst.msk [vmem:[%s4 + $0x3c] sm:$0xf] %vm1640, %v1527
    %1657 = vst.msk [vmem:[%s4 + $0x40] sm:$0xf] %vm1640, %v1528
    %1658 = vst.msk [vmem:[%s4 + $0x44] sm:$0xf] %vm1640, %v1529
    %1659 = vst.msk [vmem:[%s4 + $0x48] sm:$0xf] %vm1640, %v1530
    %1660 = vst.msk [vmem:[%s4 + $0x4c] sm:$0xf] %vm1640, %v1531
    %1661 = vst.msk [vmem:[%s4 + $0x50] sm:$0xf] %vm1640, %v1532
    %1662 = vst.msk [vmem:[%s4 + $0x54] sm:$0xf] %vm1640, %v1533
    %1663 = vst.msk [vmem:[%s4 + $0x58] sm:$0xf] %vm1640, %v1534
    %1664 = vst.msk [vmem:[%s4 + $0x5c] sm:$0xf] %vm1640, %v1535
    %1665 = vst.msk [vmem:[%s4 + $0x60] sm:$0xf] %vm1640, %v1536
    %1666 = vst.msk [vmem:[%s4 + $0x64] sm:$0xf] %vm1640, %v1537
    %1667 = vst.msk [vmem:[%s4 + $0x68] sm:$0xf] %vm1640, %v1538
    %1668 = vst.msk [vmem:[%s4 + $0x6c] sm:$0xf] %vm1640, %v1539
    %1669 = vst.msk [vmem:[%s4 + $0x70] sm:$0xf] %vm1640, %v1540
    %1670 = vst.msk [vmem:[%s4 + $0x74] sm:$0xf] %vm1640, %v1541
    %1671 = vst.msk [vmem:[%s4 + $0x78] sm:$0xf] %vm1640, %v1542
    %1672 = vst.msk [vmem:[%s4 + $0x7c] sm:$0xf] %vm1640, %v1543
    %1673 = vst.msk [vmem:[%s4 + $0x80] sm:$0xf] %vm1640, %v1544
    %1674 = vst.msk [vmem:[%s4 + $0x84] sm:$0xf] %vm1640, %v1545
    %1675 = vst.msk [vmem:[%s4 + $0x88] sm:$0xf] %vm1640, %v1546
    %1676 = vst.msk [vmem:[%s4 + $0x8c] sm:$0xf] %vm1640, %v1547
    %1677 = vst.msk [vmem:[%s4 + $0x90] sm:$0xf] %vm1640, %v1548
    %1678 = vst.msk [vmem:[%s4 + $0x94] sm:$0xf] %vm1640, %v1549
    %1679 = vst.msk [vmem:[%s4 + $0x98] sm:$0xf] %vm1640, %v1550
    %1680 = vst.msk [vmem:[%s4 + $0x9c] sm:$0xf] %vm1640, %v1551
    %1681 = vst.msk [vmem:[%s4 + $0xa0] sm:$0xf] %vm1640, %v1552
    %1682 = vst.msk [vmem:[%s4 + $0xa4] sm:$0xf] %vm1640, %v1553
    %1683 = vst.msk [vmem:[%s4 + $0xa8] sm:$0xf] %vm1640, %v1554
    %1684 = vst.msk [vmem:[%s4 + $0xac] sm:$0xf] %vm1640, %v1555
    %1685 = vst.msk [vmem:[%s4 + $0xb0] sm:$0xf] %vm1640, %v1556
    %1686 = vst.msk [vmem:[%s4 + $0xb4] sm:$0xf] %vm1640, %v1557
    %1687 = vst.msk [vmem:[%s4 + $0xb8] sm:$0xf] %vm1640, %v1558
    %1688 = vst.msk [vmem:[%s4 + $0xbc] sm:$0xf] %vm1640, %v1559
    %1689 = vst.msk [vmem:[%s4 + $0xc0] sm:$0xf] %vm1640, %v1560
    %1690 = vst.msk [vmem:[%s4 + $0xc4] sm:$0xf] %vm1640, %v1561
    %1691 = vst.msk [vmem:[%s4 + $0xc8] sm:$0xf] %vm1640, %v1562
    %1692 = vst.msk [vmem:[%s4 + $0xcc] sm:$0xf] %vm1640, %v1563
    %1693 = vst.msk [vmem:[%s4 + $0xd0] sm:$0xf] %vm1640, %v1564
    %1694 = vst.msk [vmem:[%s4 + $0xd4] sm:$0xf] %vm1640, %v1565
    %1695 = vst.msk [vmem:[%s4 + $0xd8] sm:$0xf] %vm1640, %v1566
    %1696 = vst.msk [vmem:[%s4 + $0xdc] sm:$0xf] %vm1640, %v1567
    %1697 = vst.msk [vmem:[%s4 + $0xe0] sm:$0xf] %vm1640, %v1568
    %1698 = vst.msk [vmem:[%s4 + $0xe4] sm:$0xf] %vm1640, %v1569
    %1699 = vst.msk [vmem:[%s4 + $0xe8] sm:$0xf] %vm1640, %v1570
    %1700 = vst.msk [vmem:[%s4 + $0xec] sm:$0xf] %vm1640, %v1571
    %1701 = vst.msk [vmem:[%s4 + $0xf0] sm:$0xf] %vm1640, %v1572
    %1702 = vst.msk [vmem:[%s4 + $0xf4] sm:$0xf] %vm1640, %v1573
    %1703 = vst.msk [vmem:[%s4 + $0xf8] sm:$0xf] %vm1640, %v1574
    %1704 = vst.msk [vmem:[%s4 + $0xfc] sm:$0xf] %vm1640, %v1575
  $region25: #{encoder_2d_forward.4} parent=0 // pred_fallthru
    _
  // Predicated region
  $region26: #{encoder_2d_forward.4} parent=0 // pred_check
    _
  $region27: #{encoder_2d_forward.4} parent=0 // pred_check_branch
    %1706 = sbr.rel (0) target = $region29
  $region28: #{encoder_2d_forward.4} parent=0 // pred_region
    _
  $region29: #{encoder_2d_forward.4} parent=0 // pred_fallthru
    _
  // Predicated region
  $region30: #{encoder_2d_forward.4} parent=0 // pred_check
    _
  $region31: #{encoder_2d_forward.4} parent=0 // pred_check_branch
    %1708 = sbr.rel (0) target = $region33
  $region32: #{encoder_2d_forward.4} parent=0 // pred_region
    _
  $region33: #{encoder_2d_forward.4} parent=0 // pred_fallthru
    _

// kernel: encoder_2d_forward.5
$region0: #{encoder_2d_forward.5}
  #allocation0 [shape = 'u32[]', space=smem, size = 0x4, offset = 0x4, fixed_abs, tag = 'smem constant byte address 0x4 - core index']
  #allocation1 [shape = 'u32[144,128]{1,0:T(1,128)}', space=vmem, size = 0x12000, scoped, tag = 'internal scratch']
  #allocation2 [shape = 'f32[128,128]{1,0:T(8,128)}', space=vmem, size = 0x10000, scoped, tag = 'scratch operand']
  #allocation3 [shape = 'f32[1,128]{1,0:T(1,128)}', space=vmem, size = 0x200, scoped, tag = 'scratch operand']
  #allocation4 [shape = 'f32[1,128]{1,0:T(1,128)}', space=vmem, size = 0x200, scoped, tag = 'scratch operand']
  %s0 = inlined_call_operand.vmem [shape: bf16[128,128], index: 0, kind: input, shape index: {}]
  %s1 = inlined_call_operand.vmem [shape: bf16[128,128], index: 1, kind: input, shape index: {}]
  %s2 = inlined_call_operand.vmem [shape: f32[1,128], index: 2, kind: input, shape index: {}]
  %s3 = inlined_call_operand.vmem [shape: f32[1,128], index: 3, kind: input, shape index: {}]
  %s4 = inlined_call_operand.vmem [shape: bf16[128,16], index: 4, kind: output, shape index: {}]
  %s5 = sld [smem:[#allocation0]]
  $region34: #{encoder_2d_forward.5} parent=0
    _
  %s7 = ssub.s32 1, %s5
  %s8 = scalar_select 0, %s7, %s5
  // Predicated region
  $region2: #{encoder_2d_forward.5} parent=0 // pred_check
    _
  $region3: #{encoder_2d_forward.5} parent=0 // pred_check_branch
    %10 = sbr.rel (0) target = $region5
  $region4: #{encoder_2d_forward.5} parent=0 // pred_region
    _
  $region5: #{encoder_2d_forward.5} parent=0 // pred_fallthru
    _
  // Predicated region
  $region6: #{encoder_2d_forward.5} parent=0 // pred_check
    _
  $region7: #{encoder_2d_forward.5} parent=0 // pred_check_branch
    %12 = sbr.rel (0) target = $region9
  $region8: #{encoder_2d_forward.5} parent=0 // pred_region
    _
  $region9: #{encoder_2d_forward.5} parent=0 // pred_fallthru
    _
  // Predicated region
  $region10: #{encoder_2d_forward.5} parent=0 // pred_check
    _
  $region11: #{encoder_2d_forward.5} parent=0 // pred_check_branch
    %14 = sbr.rel (0) target = $region13
  $region12: #{encoder_2d_forward.5} parent=0 // pred_region
    _
  $region13: #{encoder_2d_forward.5} parent=0 // pred_fallthru
    _
  // Predicated region
  $region14: #{encoder_2d_forward.5} parent=0 // pred_check
    _
  $region15: #{encoder_2d_forward.5} parent=0 // pred_check_branch
    %16 = sbr.rel (0) target = $region17
  $region16: #{encoder_2d_forward.5} parent=0 // pred_region
    _
  $region17: #{encoder_2d_forward.5} parent=0 // pred_fallthru
    _
  %p18 = scmp.eq.s32.totalorder 0, 0
  // Predicated region
  $region18: #{encoder_2d_forward.5} parent=0 // pred_check
    %p19 = pneg %p18
  $region19: #{encoder_2d_forward.5} parent=0 // pred_check_branch
    %21 = sbr.rel (%p19) target = $region21
  $region20: #{encoder_2d_forward.5} parent=0 // pred_region
    %22 = vst [vmem:[#allocation3] sm:$0x1] 0.0
    %23 = vst [vmem:[#allocation4] sm:$0x1] 0.0
  $region21: #{encoder_2d_forward.5} parent=0 // pred_fallthru
    _
  %v24 = vld [vmem:[%s0] sm:$0xf]
  %v25 = vld [vmem:[%s0 + $0x4] sm:$0xf]
  %v26 = vld [vmem:[%s0 + $0x8] sm:$0xf]
  %v27 = vld [vmem:[%s0 + $0xc] sm:$0xf]
  %v28 = vld [vmem:[%s0 + $0x10] sm:$0xf]
  %v29 = vld [vmem:[%s0 + $0x14] sm:$0xf]
  %v30 = vld [vmem:[%s0 + $0x18] sm:$0xf]
  %v31 = vld [vmem:[%s0 + $0x1c] sm:$0xf]
  %v32 = vld [vmem:[%s0 + $0x20] sm:$0xf]
  %v33 = vld [vmem:[%s0 + $0x24] sm:$0xf]
  %v34 = vld [vmem:[%s0 + $0x28] sm:$0xf]
  %v35 = vld [vmem:[%s0 + $0x2c] sm:$0xf]
  %v36 = vld [vmem:[%s0 + $0x30] sm:$0xf]
  %v37 = vld [vmem:[%s0 + $0x34] sm:$0xf]
  %v38 = vld [vmem:[%s0 + $0x38] sm:$0xf]
  %v39 = vld [vmem:[%s0 + $0x3c] sm:$0xf]
  %v40 = vld [vmem:[%s1] sm:$0xf]
  %v41 = vld [vmem:[%s1 + $0x4] sm:$0xf]
  %v42 = vld [vmem:[%s1 + $0x8] sm:$0xf]
  %v43 = vld [vmem:[%s1 + $0xc] sm:$0xf]
  %v44 = vld [vmem:[%s1 + $0x10] sm:$0xf]
  %v45 = vld [vmem:[%s1 + $0x14] sm:$0xf]
  %v46 = vld [vmem:[%s1 + $0x18] sm:$0xf]
  %v47 = vld [vmem:[%s1 + $0x1c] sm:$0xf]
  %v48 = vld [vmem:[%s1 + $0x20] sm:$0xf]
  %v49 = vld [vmem:[%s1 + $0x24] sm:$0xf]
  %v50 = vld [vmem:[%s1 + $0x28] sm:$0xf]
  %v51 = vld [vmem:[%s1 + $0x2c] sm:$0xf]
  %v52 = vld [vmem:[%s1 + $0x30] sm:$0xf]
  %v53 = vld [vmem:[%s1 + $0x34] sm:$0xf]
  %v54 = vld [vmem:[%s1 + $0x38] sm:$0xf]
  %v55 = vld [vmem:[%s1 + $0x3c] sm:$0xf]
  %v72 = vunpack.c.l.b16 %v24
  %v73 = vunpack.c.l.b16 %v25
  %v74 = vunpack.c.l.b16 %v26
  %v75 = vunpack.c.l.b16 %v27
  %v76 = vunpack.c.l.b16 %v28
  %v77 = vunpack.c.l.b16 %v29
  %v78 = vunpack.c.l.b16 %v30
  %v79 = vunpack.c.l.b16 %v31
  %v80 = vunpack.c.l.b16 %v32
  %v81 = vunpack.c.l.b16 %v33
  %v82 = vunpack.c.l.b16 %v34
  %v83 = vunpack.c.l.b16 %v35
  %v84 = vunpack.c.l.b16 %v36
  %v85 = vunpack.c.l.b16 %v37
  %v86 = vunpack.c.l.b16 %v38
  %v87 = vunpack.c.l.b16 %v39
  %v88 = vpack.c.b16 %v73, %v72
  %v89 = vpack.c.b16 %v75, %v74
  %v90 = vpack.c.b16 %v77, %v76
  %v91 = vpack.c.b16 %v79, %v78
  %v92 = vpack.c.b16 %v81, %v80
  %v93 = vpack.c.b16 %v83, %v82
  %v94 = vpack.c.b16 %v85, %v84
  %v95 = vpack.c.b16 %v87, %v86
  %v120 = vunpack.c.l.b16 %v40
  %v121 = vunpack.c.l.b16 %v41
  %v122 = vunpack.c.l.b16 %v42
  %v123 = vunpack.c.l.b16 %v43
  %v124 = vunpack.c.l.b16 %v44
  %v125 = vunpack.c.l.b16 %v45
  %v126 = vunpack.c.l.b16 %v46
  %v127 = vunpack.c.l.b16 %v47
  %v128 = vunpack.c.l.b16 %v48
  %v129 = vunpack.c.l.b16 %v49
  %v130 = vunpack.c.l.b16 %v50
  %v131 = vunpack.c.l.b16 %v51
  %v132 = vunpack.c.l.b16 %v52
  %v133 = vunpack.c.l.b16 %v53
  %v134 = vunpack.c.l.b16 %v54
  %v135 = vunpack.c.l.b16 %v55
  %v136 = vpack.c.b16 %v121, %v120
  %v137 = vpack.c.b16 %v123, %v122
  %v138 = vpack.c.b16 %v125, %v124
  %v139 = vpack.c.b16 %v127, %v126
  %v140 = vpack.c.b16 %v129, %v128
  %v141 = vpack.c.b16 %v131, %v130
  %v142 = vpack.c.b16 %v133, %v132
  %v143 = vpack.c.b16 %v135, %v134
  %152 = vmatprep.subr.bf16.mxu0 0
  %153 = vmatpush1.bf16.msra.mxu0 %v136
  %154 = vmatprep.subr.bf16.mxu0 0
  %155 = vmatpush1.bf16.msra.mxu0 %v137
  %156 = vmatprep.subr.bf16.mxu0 0
  %157 = vmatpush1.bf16.msra.mxu0 %v138
  %158 = vmatprep.subr.bf16.mxu0 0
  %159 = vmatpush1.bf16.msra.mxu0 %v139
  %160 = vmatprep.subr.bf16.mxu0 0
  %161 = vmatpush1.bf16.msra.mxu0 %v140
  %162 = vmatprep.subr.bf16.mxu0 0
  %163 = vmatpush1.bf16.msra.mxu0 %v141
  %164 = vmatprep.subr.bf16.mxu0 0
  %165 = vmatpush1.bf16.msra.mxu0 %v142
  %166 = vmatprep.subr.bf16.mxu0 0
  %167 = vmatpush1.bf16.msra.mxu0 %v143
  %168 = vmatprep.subr.bf16.mxu0 0
  %169 = vmatpush1.bf16.msra.mxu0 0
  %170 = vmatprep.subr.bf16.mxu0 0
  %171 = vmatpush1.bf16.msra.mxu0 0
  %172 = vmatprep.subr.bf16.mxu0 0
  %173 = vmatpush1.bf16.msra.mxu0 0
  %174 = vmatprep.subr.bf16.mxu0 0
  %175 = vmatpush1.bf16.msra.mxu0 0
  %176 = vmatprep.subr.bf16.mxu0 0
  %177 = vmatpush1.bf16.msra.mxu0 0
  %178 = vmatprep.subr.bf16.mxu0 0
  %179 = vmatpush1.bf16.msra.mxu0 0
  %180 = vmatprep.subr.bf16.mxu0 0
  %181 = vmatpush1.bf16.msra.mxu0 0
  %182 = vmatprep.subr.bf16.mxu0 0
  %183 = vmatpush1.bf16.msra.mxu0 0
  %184 = vmatprep.mubr.bf16.mxu0 0
  %185 = vmatmul.mubr.bf16.gmra.mrb[0].mxu0 %v88
  %v186 = vpop.f32.mrb[0].mxu0
  %v187 = vadd.f32 0.0, %v186
  %v188 = vpop.f32.mrb[0].mxu0
  %v189 = vpop.f32.mrb[0].mxu0
  %v190 = vadd.f32 0.0, %v189
  %v191 = vpop.f32.mrb[0].mxu0
  %192 = vmatprep.mubr.bf16.mxu0 0
  %193 = vmatmul.mubr.bf16.gmra.mrb[0].mxu0 %v89
  %v194 = vpop.f32.mrb[0].mxu0
  %v195 = vadd.f32 0.0, %v194
  %v196 = vpop.f32.mrb[0].mxu0
  %v197 = vpop.f32.mrb[0].mxu0
  %v198 = vadd.f32 0.0, %v197
  %v199 = vpop.f32.mrb[0].mxu0
  %200 = vmatprep.mubr.bf16.mxu0 0
  %201 = vmatmul.mubr.bf16.gmra.mrb[0].mxu0 %v90
  %v202 = vpop.f32.mrb[0].mxu0
  %v203 = vadd.f32 0.0, %v202
  %v204 = vpop.f32.mrb[0].mxu0
  %v205 = vpop.f32.mrb[0].mxu0
  %v206 = vadd.f32 0.0, %v205
  %v207 = vpop.f32.mrb[0].mxu0
  %208 = vmatprep.mubr.bf16.mxu0 0
  %209 = vmatmul.mubr.bf16.gmra.mrb[0].mxu0 %v91
  %v210 = vpop.f32.mrb[0].mxu0
  %v211 = vadd.f32 0.0, %v210
  %v212 = vpop.f32.mrb[0].mxu0
  %v213 = vpop.f32.mrb[0].mxu0
  %v214 = vadd.f32 0.0, %v213
  %v215 = vpop.f32.mrb[0].mxu0
  %216 = vmatprep.mubr.bf16.mxu0 0
  %217 = vmatmul.mubr.bf16.gmra.mrb[0].mxu0 %v92
  %v218 = vpop.f32.mrb[0].mxu0
  %v219 = vadd.f32 0.0, %v218
  %v220 = vpop.f32.mrb[0].mxu0
  %v221 = vpop.f32.mrb[0].mxu0
  %v222 = vadd.f32 0.0, %v221
  %v223 = vpop.f32.mrb[0].mxu0
  %224 = vmatprep.mubr.bf16.mxu0 0
  %225 = vmatmul.mubr.bf16.gmra.mrb[0].mxu0 %v93
  %v226 = vpop.f32.mrb[0].mxu0
  %v227 = vadd.f32 0.0, %v226
  %v228 = vpop.f32.mrb[0].mxu0
  %v229 = vpop.f32.mrb[0].mxu0
  %v230 = vadd.f32 0.0, %v229
  %v231 = vpop.f32.mrb[0].mxu0
  %232 = vmatprep.mubr.bf16.mxu0 0
  %233 = vmatmul.mubr.bf16.gmra.mrb[0].mxu0 %v94
  %v234 = vpop.f32.mrb[0].mxu0
  %v235 = vadd.f32 0.0, %v234
  %v236 = vpop.f32.mrb[0].mxu0
  %v237 = vpop.f32.mrb[0].mxu0
  %v238 = vadd.f32 0.0, %v237
  %v239 = vpop.f32.mrb[0].mxu0
  %240 = vmatprep.mubr.bf16.mxu0 0
  %241 = vmatmul.mubr.bf16.gmra.mrb[0].mxu0 %v95
  %v242 = vpop.f32.mrb[0].mxu0
  %v243 = vadd.f32 0.0, %v242
  %v244 = vpop.f32.mrb[0].mxu0
  %v245 = vpop.f32.mrb[0].mxu0
  %v246 = vadd.f32 0.0, %v245
  %v247 = vpop.f32.mrb[0].mxu0
  %248 = vdwg.mxu0
  %s249 = smul.u32 0, 128
  %s250 = scalar_lea.vmem [#allocation2], %s249
  %251 = vst [vmem:[%s250] sm:$0xff] %v187
  %252 = vst [vmem:[%s250 + $0x8] sm:$0xff] %v190
  %253 = vst [vmem:[%s250 + $0x10] sm:$0xff] %v195
  %254 = vst [vmem:[%s250 + $0x18] sm:$0xff] %v198
  %255 = vst [vmem:[%s250 + $0x20] sm:$0xff] %v203
  %256 = vst [vmem:[%s250 + $0x28] sm:$0xff] %v206
  %257 = vst [vmem:[%s250 + $0x30] sm:$0xff] %v211
  %258 = vst [vmem:[%s250 + $0x38] sm:$0xff] %v214
  %259 = vst [vmem:[%s250 + $0x40] sm:$0xff] %v219
  %260 = vst [vmem:[%s250 + $0x48] sm:$0xff] %v222
  %261 = vst [vmem:[%s250 + $0x50] sm:$0xff] %v227
  %262 = vst [vmem:[%s250 + $0x58] sm:$0xff] %v230
  %263 = vst [vmem:[%s250 + $0x60] sm:$0xff] %v235
  %264 = vst [vmem:[%s250 + $0x68] sm:$0xff] %v238
  %265 = vst [vmem:[%s250 + $0x70] sm:$0xff] %v243
  %266 = vst [vmem:[%s250 + $0x78] sm:$0xff] %v246
  %v267 = vld [vmem:[#allocation3] sm:$0x1]
  %v268 = vadd.f32 %v187, %v190
  %v269 = vadd.f32 %v268, %v195
  %v270 = vadd.f32 %v269, %v198
  %v271 = vadd.f32 %v270, %v203
  %v272 = vadd.f32 %v271, %v206
  %v273 = vadd.f32 %v272, %v211
  %v274 = vadd.f32 %v273, %v214
  %v275 = vadd.f32 %v274, %v219
  %v276 = vadd.f32 %v275, %v222
  %v277 = vadd.f32 %v276, %v227
  %v278 = vadd.f32 %v277, %v230
  %v279 = vadd.f32 %v278, %v235
  %v280 = vadd.f32 %v279, %v238
  %v281 = vadd.f32 %v280, %v243
  %v282 = vadd.f32 %v281, %v246
  %v283 = vrot.slane %v282, 4
  %v284 = vadd.f32 %v282, %v283
  %v285 = vrot.slane %v284, 2
  %v286 = vadd.f32 %v284, %v285
  %v287 = vrot.slane %v286, 1
  %v288 = vadd.f32 %v286, %v287
  %v289 = vadd.f32 %v267, %v288
  %290 = vst [vmem:[#allocation3] sm:$0x1] %v289
  %v291 = vld [vmem:[#allocation4] sm:$0x1]
  %v292 = vmul.f32 %v187, %v187
  %v293 = vmul.f32 %v190, %v190
  %v294 = vmul.f32 %v195, %v195
  %v295 = vmul.f32 %v198, %v198
  %v296 = vmul.f32 %v203, %v203
  %v297 = vmul.f32 %v206, %v206
  %v298 = vmul.f32 %v211, %v211
  %v299 = vmul.f32 %v214, %v214
  %v300 = vmul.f32 %v219, %v219
  %v301 = vmul.f32 %v222, %v222
  %v302 = vmul.f32 %v227, %v227
  %v303 = vmul.f32 %v230, %v230
  %v304 = vmul.f32 %v235, %v235
  %v305 = vmul.f32 %v238, %v238
  %v306 = vmul.f32 %v243, %v243
  %v307 = vmul.f32 %v246, %v246
  %v308 = vadd.f32 %v292, %v293
  %v309 = vadd.f32 %v308, %v294
  %v310 = vadd.f32 %v309, %v295
  %v311 = vadd.f32 %v310, %v296
  %v312 = vadd.f32 %v311, %v297
  %v313 = vadd.f32 %v312, %v298
  %v314 = vadd.f32 %v313, %v299
  %v315 = vadd.f32 %v314, %v300
  %v316 = vadd.f32 %v315, %v301
  %v317 = vadd.f32 %v316, %v302
  %v318 = vadd.f32 %v317, %v303
  %v319 = vadd.f32 %v318, %v304
  %v320 = vadd.f32 %v319, %v305
  %v321 = vadd.f32 %v320, %v306
  %v322 = vadd.f32 %v321, %v307
  %v323 = vrot.slane %v322, 4
  %v324 = vadd.f32 %v322, %v323
  %v325 = vrot.slane %v324, 2
  %v326 = vadd.f32 %v324, %v325
  %v327 = vrot.slane %v326, 1
  %v328 = vadd.f32 %v326, %v327
  %v329 = vadd.f32 %v291, %v328
  %330 = vst [vmem:[#allocation4] sm:$0x1] %v329
  // Predicated region
  $region22: #{encoder_2d_forward.5} parent=0 // pred_check
    %p331 = pneg %p18
  $region23: #{encoder_2d_forward.5} parent=0 // pred_check_branch
    %333 = sbr.rel (%p331) target = $region25
  $region24: #{encoder_2d_forward.5} parent=0 // pred_region
    %v334 = vld [vmem:[#allocation3] sm:$0x1]
    %v335 = vmul.f32 %v334, 0.0078125
    %v336 = vld [vmem:[#allocation4] sm:$0x1]
    %v337 = vmul.f32 %v336, 0.0078125
    %v338 = vmul.f32 %v335, %v335
    %v339 = vsub.f32 %v337, %v338
    %v340 = vmax.f32 %v339, 0.0
    %v341 = vld [vmem:[%s2] sm:$0x1]
    %v342 = vadd.f32 %v340, 1e-05
    %v343 = vrsqrt.pop %v342
    %v344 = vmul.f32 %v341, %v343
    %v345 = vld [vmem:[%s3] sm:$0x1]
    %v346 = vmul.f32 %v335, %v344
    %v347 = vsub.f32 %v345, %v346
    %v349 = vlaneseq
    %v350 = vshrl.u32 %v349, 7
    %v351 = vsub.s32 0, %v350
    %v352 = vrot.slane %v344, %v351
    %v355 = vlaneseq
    %v356 = vshrl.u32 %v355, 7
    %v357 = vsub.s32 0, %v356
    %v358 = vrot.slane %v347, %v357
    %v360 = vld [vmem:[#allocation2] sm:$0xff]
    %v361 = vld [vmem:[#allocation2 + $0x8] sm:$0xff]
    %v362 = vld [vmem:[#allocation2 + $0x10] sm:$0xff]
    %v363 = vld [vmem:[#allocation2 + $0x18] sm:$0xff]
    %v364 = vld [vmem:[#allocation2 + $0x20] sm:$0xff]
    %v365 = vld [vmem:[#allocation2 + $0x28] sm:$0xff]
    %v366 = vld [vmem:[#allocation2 + $0x30] sm:$0xff]
    %v367 = vld [vmem:[#allocation2 + $0x38] sm:$0xff]
    %v368 = vld [vmem:[#allocation2 + $0x40] sm:$0xff]
    %v369 = vld [vmem:[#allocation2 + $0x48] sm:$0xff]
    %v370 = vld [vmem:[#allocation2 + $0x50] sm:$0xff]
    %v371 = vld [vmem:[#allocation2 + $0x58] sm:$0xff]
    %v372 = vld [vmem:[#allocation2 + $0x60] sm:$0xff]
    %v373 = vld [vmem:[#allocation2 + $0x68] sm:$0xff]
    %v374 = vld [vmem:[#allocation2 + $0x70] sm:$0xff]
    %v375 = vld [vmem:[#allocation2 + $0x78] sm:$0xff]
    %v376 = vmul.f32 %v360, %v352
    %v377 = vmul.f32 %v361, %v352
    %v378 = vmul.f32 %v362, %v352
    %v379 = vmul.f32 %v363, %v352
    %v380 = vmul.f32 %v364, %v352
    %v381 = vmul.f32 %v365, %v352
    %v382 = vmul.f32 %v366, %v352
    %v383 = vmul.f32 %v367, %v352
    %v384 = vmul.f32 %v368, %v352
    %v385 = vmul.f32 %v369, %v352
    %v386 = vmul.f32 %v370, %v352
    %v387 = vmul.f32 %v371, %v352
    %v388 = vmul.f32 %v372, %v352
    %v389 = vmul.f32 %v373, %v352
    %v390 = vmul.f32 %v374, %v352
    %v391 = vmul.f32 %v375, %v352
    %v392 = vadd.f32 %v376, %v358
    %v393 = vadd.f32 %v377, %v358
    %v394 = vadd.f32 %v378, %v358
    %v395 = vadd.f32 %v379, %v358
    %v396 = vadd.f32 %v380, %v358
    %v397 = vadd.f32 %v381, %v358
    %v398 = vadd.f32 %v382, %v358
    %v399 = vadd.f32 %v383, %v358
    %v400 = vadd.f32 %v384, %v358
    %v401 = vadd.f32 %v385, %v358
    %v402 = vadd.f32 %v386, %v358
    %v403 = vadd.f32 %v387, %v358
    %v404 = vadd.f32 %v388, %v358
    %v405 = vadd.f32 %v389, %v358
    %v406 = vadd.f32 %v390, %v358
    %v407 = vadd.f32 %v391, %v358
    %v408 = vmax.f32 %v392, 0.0
    %v409 = vmax.f32 %v393, 0.0
    %v410 = vmax.f32 %v394, 0.0
    %v411 = vmax.f32 %v395, 0.0
    %v412 = vmax.f32 %v396, 0.0
    %v413 = vmax.f32 %v397, 0.0
    %v414 = vmax.f32 %v398, 0.0
    %v415 = vmax.f32 %v399, 0.0
    %v416 = vmax.f32 %v400, 0.0
    %v417 = vmax.f32 %v401, 0.0
    %v418 = vmax.f32 %v402, 0.0
    %v419 = vmax.f32 %v403, 0.0
    %v420 = vmax.f32 %v404, 0.0
    %v421 = vmax.f32 %v405, 0.0
    %v422 = vmax.f32 %v406, 0.0
    %v423 = vmax.f32 %v407, 0.0
    %v424 = vpack.c.bf16 %v409, %v408
    %v425 = vpack.c.bf16 %v411, %v410
    %v426 = vpack.c.bf16 %v413, %v412
    %v427 = vpack.c.bf16 %v415, %v414
    %v428 = vpack.c.bf16 %v417, %v416
    %v429 = vpack.c.bf16 %v419, %v418
    %v430 = vpack.c.bf16 %v421, %v420
    %v431 = vpack.c.bf16 %v423, %v422
    %v440 = vunpack.c.l.b16 %v424
    %v441 = vunpack.c.h.b16 %v424
    %v442 = vunpack.c.l.b16 %v425
    %v443 = vunpack.c.h.b16 %v425
    %v444 = vunpack.c.l.b16 %v426
    %v445 = vunpack.c.h.b16 %v426
    %v446 = vunpack.c.l.b16 %v427
    %v447 = vunpack.c.h.b16 %v427
    %v448 = vunpack.c.l.b16 %v428
    %v449 = vunpack.c.h.b16 %v428
    %v450 = vunpack.c.l.b16 %v429
    %v451 = vunpack.c.h.b16 %v429
    %v452 = vunpack.c.l.b16 %v430
    %v453 = vunpack.c.h.b16 %v430
    %v454 = vunpack.c.l.b16 %v431
    %v455 = vunpack.c.h.b16 %v431
    %v456 = vpack.c.b16 %v440, %v440
    %v457 = vpack.c.b16 %v441, %v441
    %v458 = vpack.c.b16 %v442, %v442
    %v459 = vpack.c.b16 %v443, %v443
    %v460 = vpack.c.b16 %v444, %v444
    %v461 = vpack.c.b16 %v445, %v445
    %v462 = vpack.c.b16 %v446, %v446
    %v463 = vpack.c.b16 %v447, %v447
    %v464 = vpack.c.b16 %v448, %v448
    %v465 = vpack.c.b16 %v449, %v449
    %v466 = vpack.c.b16 %v450, %v450
    %v467 = vpack.c.b16 %v451, %v451
    %v468 = vpack.c.b16 %v452, %v452
    %v469 = vpack.c.b16 %v453, %v453
    %v470 = vpack.c.b16 %v454, %v454
    %v471 = vpack.c.b16 %v455, %v455
    %vm488 = vcmask 125952
    %489 = vst.msk [vmem:[%s4] sm:$0xf] %vm488, %v456
    %490 = vst.msk [vmem:[%s4 + $0x4] sm:$0xf] %vm488, %v457
    %491 = vst.msk [vmem:[%s4 + $0x8] sm:$0xf] %vm488, %v458
    %492 = vst.msk [vmem:[%s4 + $0xc] sm:$0xf] %vm488, %v459
    %493 = vst.msk [vmem:[%s4 + $0x10] sm:$0xf] %vm488, %v460
    %494 = vst.msk [vmem:[%s4 + $0x14] sm:$0xf] %vm488, %v461
    %495 = vst.msk [vmem:[%s4 + $0x18] sm:$0xf] %vm488, %v462
    %496 = vst.msk [vmem:[%s4 + $0x1c] sm:$0xf] %vm488, %v463
    %497 = vst.msk [vmem:[%s4 + $0x20] sm:$0xf] %vm488, %v464
    %498 = vst.msk [vmem:[%s4 + $0x24] sm:$0xf] %vm488, %v465
    %499 = vst.msk [vmem:[%s4 + $0x28] sm:$0xf] %vm488, %v466
    %500 = vst.msk [vmem:[%s4 + $0x2c] sm:$0xf] %vm488, %v467
    %501 = vst.msk [vmem:[%s4 + $0x30] sm:$0xf] %vm488, %v468
    %502 = vst.msk [vmem:[%s4 + $0x34] sm:$0xf] %vm488, %v469
    %503 = vst.msk [vmem:[%s4 + $0x38] sm:$0xf] %vm488, %v470
    %504 = vst.msk [vmem:[%s4 + $0x3c] sm:$0xf] %vm488, %v471
  $region25: #{encoder_2d_forward.5} parent=0 // pred_fallthru
    _
  // Predicated region
  $region26: #{encoder_2d_forward.5} parent=0 // pred_check
    _
  $region27: #{encoder_2d_forward.5} parent=0 // pred_check_branch
    %506 = sbr.rel (0) target = $region29
  $region28: #{encoder_2d_forward.5} parent=0 // pred_region
    _
  $region29: #{encoder_2d_forward.5} parent=0 // pred_fallthru
    _
  // Predicated region
  $region30: #{encoder_2d_forward.5} parent=0 // pred_check
    _
  $region31: #{encoder_2d_forward.5} parent=0 // pred_check_branch
    %508 = sbr.rel (0) target = $region33
  $region32: #{encoder_2d_forward.5} parent=0 // pred_region
    _
  $region33: #{encoder_2d_forward.5} parent=0 // pred_fallthru
    _

// kernel: encoder_2d_forward.6
$region0: #{encoder_2d_forward.6}
  #allocation0 [shape = 'u32[]', space=smem, size = 0x4, offset = 0x4, fixed_abs, tag = 'smem constant byte address 0x4 - core index']
  #allocation1 [shape = 'u32[144,128]{1,0:T(1,128)}', space=vmem, size = 0x12000, scoped, tag = 'internal scratch']
  #allocation2 [shape = 'f32[32,128]{1,0:T(8,128)}', space=vmem, size = 0x4000, scoped, tag = 'scratch operand']
  #allocation3 [shape = 'f32[1,128]{1,0:T(1,128)}', space=vmem, size = 0x200, scoped, tag = 'scratch operand']
  #allocation4 [shape = 'f32[1,128]{1,0:T(1,128)}', space=vmem, size = 0x200, scoped, tag = 'scratch operand']
  %s0 = inlined_call_operand.vmem [shape: bf16[32,256], index: 0, kind: input, shape index: {}]
  %s1 = inlined_call_operand.vmem [shape: bf16[256,128], index: 1, kind: input, shape index: {}]
  %s2 = inlined_call_operand.vmem [shape: f32[1,128], index: 2, kind: input, shape index: {}]
  %s3 = inlined_call_operand.vmem [shape: f32[1,128], index: 3, kind: input, shape index: {}]
  %s4 = inlined_call_operand.vmem [shape: bf16[32,32], index: 4, kind: output, shape index: {}]
  %s5 = sld [smem:[#allocation0]]
  $region34: #{encoder_2d_forward.6} parent=0
    _
  %s7 = ssub.s32 1, %s5
  %s8 = scalar_select 0, %s7, %s5
  // Predicated region
  $region2: #{encoder_2d_forward.6} parent=0 // pred_check
    _
  $region3: #{encoder_2d_forward.6} parent=0 // pred_check_branch
    %10 = sbr.rel (0) target = $region5
  $region4: #{encoder_2d_forward.6} parent=0 // pred_region
    _
  $region5: #{encoder_2d_forward.6} parent=0 // pred_fallthru
    _
  // Predicated region
  $region6: #{encoder_2d_forward.6} parent=0 // pred_check
    _
  $region7: #{encoder_2d_forward.6} parent=0 // pred_check_branch
    %12 = sbr.rel (0) target = $region9
  $region8: #{encoder_2d_forward.6} parent=0 // pred_region
    _
  $region9: #{encoder_2d_forward.6} parent=0 // pred_fallthru
    _
  // Predicated region
  $region10: #{encoder_2d_forward.6} parent=0 // pred_check
    _
  $region11: #{encoder_2d_forward.6} parent=0 // pred_check_branch
    %14 = sbr.rel (0) target = $region13
  $region12: #{encoder_2d_forward.6} parent=0 // pred_region
    _
  $region13: #{encoder_2d_forward.6} parent=0 // pred_fallthru
    _
  // Predicated region
  $region14: #{encoder_2d_forward.6} parent=0 // pred_check
    _
  $region15: #{encoder_2d_forward.6} parent=0 // pred_check_branch
    %16 = sbr.rel (0) target = $region17
  $region16: #{encoder_2d_forward.6} parent=0 // pred_region
    _
  $region17: #{encoder_2d_forward.6} parent=0 // pred_fallthru
    _
  %p18 = scmp.eq.s32.totalorder 0, 0
  // Predicated region
  $region18: #{encoder_2d_forward.6} parent=0 // pred_check
    %p19 = pneg %p18
  $region19: #{encoder_2d_forward.6} parent=0 // pred_check_branch
    %21 = sbr.rel (%p19) target = $region21
  $region20: #{encoder_2d_forward.6} parent=0 // pred_region
    %22 = vst [vmem:[#allocation3] sm:$0x1] 0.0
    %23 = vst [vmem:[#allocation4] sm:$0x1] 0.0
  $region21: #{encoder_2d_forward.6} parent=0 // pred_fallthru
    _
  %v24 = vld [vmem:[%s0] sm:$0xff]
  %v25 = vld [vmem:[%s0 + $0x8] sm:$0xff]
  %v26 = vld [vmem:[%s0 + $0x10] sm:$0xff]
  %v27 = vld [vmem:[%s0 + $0x18] sm:$0xff]
  %v28 = vld [vmem:[%s1] sm:$0xf]
  %v29 = vld [vmem:[%s1 + $0x4] sm:$0xf]
  %v30 = vld [vmem:[%s1 + $0x8] sm:$0xf]
  %v31 = vld [vmem:[%s1 + $0xc] sm:$0xf]
  %v32 = vld [vmem:[%s1 + $0x10] sm:$0xf]
  %v33 = vld [vmem:[%s1 + $0x14] sm:$0xf]
  %v34 = vld [vmem:[%s1 + $0x18] sm:$0xf]
  %v35 = vld [vmem:[%s1 + $0x1c] sm:$0xf]
  %v36 = vld [vmem:[%s1 + $0x20] sm:$0xf]
  %v37 = vld [vmem:[%s1 + $0x24] sm:$0xf]
  %v38 = vld [vmem:[%s1 + $0x28] sm:$0xf]
  %v39 = vld [vmem:[%s1 + $0x2c] sm:$0xf]
  %v40 = vld [vmem:[%s1 + $0x30] sm:$0xf]
  %v41 = vld [vmem:[%s1 + $0x34] sm:$0xf]
  %v42 = vld [vmem:[%s1 + $0x38] sm:$0xf]
  %v43 = vld [vmem:[%s1 + $0x3c] sm:$0xf]
  %v44 = vld [vmem:[%s1 + $0x40] sm:$0xf]
  %v45 = vld [vmem:[%s1 + $0x44] sm:$0xf]
  %v46 = vld [vmem:[%s1 + $0x48] sm:$0xf]
  %v47 = vld [vmem:[%s1 + $0x4c] sm:$0xf]
  %v48 = vld [vmem:[%s1 + $0x50] sm:$0xf]
  %v49 = vld [vmem:[%s1 + $0x54] sm:$0xf]
  %v50 = vld [vmem:[%s1 + $0x58] sm:$0xf]
  %v51 = vld [vmem:[%s1 + $0x5c] sm:$0xf]
  %v52 = vld [vmem:[%s1 + $0x60] sm:$0xf]
  %v53 = vld [vmem:[%s1 + $0x64] sm:$0xf]
  %v54 = vld [vmem:[%s1 + $0x68] sm:$0xf]
  %v55 = vld [vmem:[%s1 + $0x6c] sm:$0xf]
  %v56 = vld [vmem:[%s1 + $0x70] sm:$0xf]
  %v57 = vld [vmem:[%s1 + $0x74] sm:$0xf]
  %v58 = vld [vmem:[%s1 + $0x78] sm:$0xf]
  %v59 = vld [vmem:[%s1 + $0x7c] sm:$0xf]
  %v64 = vunpack.c.l.b16 %v24
  %v65 = vunpack.c.h.b16 %v24
  %v66 = vunpack.c.l.b16 %v25
  %v67 = vunpack.c.h.b16 %v25
  %v68 = vunpack.c.l.b16 %v26
  %v69 = vunpack.c.h.b16 %v26
  %v70 = vunpack.c.l.b16 %v27
  %v71 = vunpack.c.h.b16 %v27
  %v72 = vpack.c.b16 %v66, %v64
  %v73 = vpack.c.b16 %v67, %v65
  %v74 = vpack.c.b16 %v70, %v68
  %v75 = vpack.c.b16 %v71, %v69
  %v112 = vunpack.c.l.b16 %v28
  %v113 = vunpack.c.l.b16 %v29
  %v114 = vunpack.c.l.b16 %v30
  %v115 = vunpack.c.l.b16 %v31
  %v116 = vunpack.c.l.b16 %v32
  %v117 = vunpack.c.l.b16 %v33
  %v118 = vunpack.c.l.b16 %v34
  %v119 = vunpack.c.l.b16 %v35
  %v120 = vunpack.c.l.b16 %v36
  %v121 = vunpack.c.l.b16 %v37
  %v122 = vunpack.c.l.b16 %v38
  %v123 = vunpack.c.l.b16 %v39
  %v124 = vunpack.c.l.b16 %v40
  %v125 = vunpack.c.l.b16 %v41
  %v126 = vunpack.c.l.b16 %v42
  %v127 = vunpack.c.l.b16 %v43
  %v128 = vunpack.c.l.b16 %v44
  %v129 = vunpack.c.l.b16 %v45
  %v130 = vunpack.c.l.b16 %v46
  %v131 = vunpack.c.l.b16 %v47
  %v132 = vunpack.c.l.b16 %v48
  %v133 = vunpack.c.l.b16 %v49
  %v134 = vunpack.c.l.b16 %v50
  %v135 = vunpack.c.l.b16 %v51
  %v136 = vunpack.c.l.b16 %v52
  %v137 = vunpack.c.l.b16 %v53
  %v138 = vunpack.c.l.b16 %v54
  %v139 = vunpack.c.l.b16 %v55
  %v140 = vunpack.c.l.b16 %v56
  %v141 = vunpack.c.l.b16 %v57
  %v142 = vunpack.c.l.b16 %v58
  %v143 = vunpack.c.l.b16 %v59
  %v144 = vpack.c.b16 %v113, %v112
  %v145 = vpack.c.b16 %v115, %v114
  %v146 = vpack.c.b16 %v117, %v116
  %v147 = vpack.c.b16 %v119, %v118
  %v148 = vpack.c.b16 %v121, %v120
  %v149 = vpack.c.b16 %v123, %v122
  %v150 = vpack.c.b16 %v125, %v124
  %v151 = vpack.c.b16 %v127, %v126
  %v152 = vpack.c.b16 %v129, %v128
  %v153 = vpack.c.b16 %v131, %v130
  %v154 = vpack.c.b16 %v133, %v132
  %v155 = vpack.c.b16 %v135, %v134
  %v156 = vpack.c.b16 %v137, %v136
  %v157 = vpack.c.b16 %v139, %v138
  %v158 = vpack.c.b16 %v141, %v140
  %v159 = vpack.c.b16 %v143, %v142
  %176 = vmatprep.subr.bf16.mxu0 0
  %177 = vmatpush1.bf16.msra.mxu0 %v144
  %178 = vmatprep.subr.bf16.mxu0 0
  %179 = vmatpush1.bf16.msra.mxu0 %v145
  %180 = vmatprep.subr.bf16.mxu0 0
  %181 = vmatpush1.bf16.msra.mxu0 %v146
  %182 = vmatprep.subr.bf16.mxu0 0
  %183 = vmatpush1.bf16.msra.mxu0 %v147
  %184 = vmatprep.subr.bf16.mxu0 0
  %185 = vmatpush1.bf16.msra.mxu0 %v148
  %186 = vmatprep.subr.bf16.mxu0 0
  %187 = vmatpush1.bf16.msra.mxu0 %v149
  %188 = vmatprep.subr.bf16.mxu0 0
  %189 = vmatpush1.bf16.msra.mxu0 %v150
  %190 = vmatprep.subr.bf16.mxu0 0
  %191 = vmatpush1.bf16.msra.mxu0 %v151
  %192 = vmatprep.subr.bf16.mxu0 0
  %193 = vmatpush1.bf16.msra.mxu0 %v152
  %194 = vmatprep.subr.bf16.mxu0 0
  %195 = vmatpush1.bf16.msra.mxu0 %v153
  %196 = vmatprep.subr.bf16.mxu0 0
  %197 = vmatpush1.bf16.msra.mxu0 %v154
  %198 = vmatprep.subr.bf16.mxu0 0
  %199 = vmatpush1.bf16.msra.mxu0 %v155
  %200 = vmatprep.subr.bf16.mxu0 0
  %201 = vmatpush1.bf16.msra.mxu0 %v156
  %202 = vmatprep.subr.bf16.mxu0 0
  %203 = vmatpush1.bf16.msra.mxu0 %v157
  %204 = vmatprep.subr.bf16.mxu0 0
  %205 = vmatpush1.bf16.msra.mxu0 %v158
  %206 = vmatprep.subr.bf16.mxu0 0
  %207 = vmatpush1.bf16.msra.mxu0 %v159
  %208 = vmatprep.mubr.bf16.mxu0 %v73
  %209 = vmatmul.mubr.bf16.gmra.mrb[0].mxu0 %v72
  %v210 = vpop.f32.mrb[0].mxu0
  %v211 = vadd.f32 0.0, %v210
  %v212 = vpop.f32.mrb[0].mxu0
  %v213 = vpop.f32.mrb[0].mxu0
  %v214 = vadd.f32 0.0, %v213
  %v215 = vpop.f32.mrb[0].mxu0
  %216 = vmatprep.mubr.bf16.mxu0 %v75
  %217 = vmatmul.mubr.bf16.gmra.mrb[0].mxu0 %v74
  %v218 = vpop.f32.mrb[0].mxu0
  %v219 = vadd.f32 0.0, %v218
  %v220 = vpop.f32.mrb[0].mxu0
  %v221 = vpop.f32.mrb[0].mxu0
  %v222 = vadd.f32 0.0, %v221
  %v223 = vpop.f32.mrb[0].mxu0
  %224 = vdwg.mxu0
  %s225 = smul.u32 0, 32
  %s226 = scalar_lea.vmem [#allocation2], %s225
  %227 = vst [vmem:[%s226] sm:$0xff] %v211
  %228 = vst [vmem:[%s226 + $0x8] sm:$0xff] %v214
  %229 = vst [vmem:[%s226 + $0x10] sm:$0xff] %v219
  %230 = vst [vmem:[%s226 + $0x18] sm:$0xff] %v222
  %v231 = vld [vmem:[#allocation3] sm:$0x1]
  %v232 = vadd.f32 %v211, %v214
  %v233 = vadd.f32 %v232, %v219
  %v234 = vadd.f32 %v233, %v222
  %v235 = vrot.slane %v234, 4
  %v236 = vadd.f32 %v234, %v235
  %v237 = vrot.slane %v236, 2
  %v238 = vadd.f32 %v236, %v237
  %v239 = vrot.slane %v238, 1
  %v240 = vadd.f32 %v238, %v239
  %v241 = vadd.f32 %v231, %v240
  %242 = vst [vmem:[#allocation3] sm:$0x1] %v241
  %v243 = vld [vmem:[#allocation4] sm:$0x1]
  %v244 = vmul.f32 %v211, %v211
  %v245 = vmul.f32 %v214, %v214
  %v246 = vmul.f32 %v219, %v219
  %v247 = vmul.f32 %v222, %v222
  %v248 = vadd.f32 %v244, %v245
  %v249 = vadd.f32 %v248, %v246
  %v250 = vadd.f32 %v249, %v247
  %v251 = vrot.slane %v250, 4
  %v252 = vadd.f32 %v250, %v251
  %v253 = vrot.slane %v252, 2
  %v254 = vadd.f32 %v252, %v253
  %v255 = vrot.slane %v254, 1
  %v256 = vadd.f32 %v254, %v255
  %v257 = vadd.f32 %v243, %v256
  %258 = vst [vmem:[#allocation4] sm:$0x1] %v257
  // Predicated region
  $region22: #{encoder_2d_forward.6} parent=0 // pred_check
    %p259 = pneg %p18
  $region23: #{encoder_2d_forward.6} parent=0 // pred_check_branch
    %261 = sbr.rel (%p259) target = $region25
  $region24: #{encoder_2d_forward.6} parent=0 // pred_region
    %v262 = vld [vmem:[#allocation3] sm:$0x1]
    %v263 = vmul.f32 %v262, 0.03125
    %v264 = vld [vmem:[#allocation4] sm:$0x1]
    %v265 = vmul.f32 %v264, 0.03125
    %v266 = vmul.f32 %v263, %v263
    %v267 = vsub.f32 %v265, %v266
    %v268 = vmax.f32 %v267, 0.0
    %v269 = vld [vmem:[%s2] sm:$0x1]
    %v270 = vadd.f32 %v268, 1e-05
    %v271 = vrsqrt.pop %v270
    %v272 = vmul.f32 %v269, %v271
    %v273 = vld [vmem:[%s3] sm:$0x1]
    %v274 = vmul.f32 %v263, %v272
    %v275 = vsub.f32 %v273, %v274
    %v277 = vlaneseq
    %v278 = vshrl.u32 %v277, 7
    %v279 = vsub.s32 0, %v278
    %v280 = vrot.slane %v272, %v279
    %v283 = vlaneseq
    %v284 = vshrl.u32 %v283, 7
    %v285 = vsub.s32 0, %v284
    %v286 = vrot.slane %v275, %v285
    %v288 = vld [vmem:[#allocation2] sm:$0xff]
    %v289 = vld [vmem:[#allocation2 + $0x8] sm:$0xff]
    %v290 = vld [vmem:[#allocation2 + $0x10] sm:$0xff]
    %v291 = vld [vmem:[#allocation2 + $0x18] sm:$0xff]
    %v292 = vmul.f32 %v288, %v280
    %v293 = vmul.f32 %v289, %v280
    %v294 = vmul.f32 %v290, %v280
    %v295 = vmul.f32 %v291, %v280
    %v296 = vadd.f32 %v292, %v286
    %v297 = vadd.f32 %v293, %v286
    %v298 = vadd.f32 %v294, %v286
    %v299 = vadd.f32 %v295, %v286
    %v300 = vmax.f32 %v296, 0.0
    %v301 = vmax.f32 %v297, 0.0
    %v302 = vmax.f32 %v298, 0.0
    %v303 = vmax.f32 %v299, 0.0
    %v304 = vpack.c.bf16 %v301, %v300
    %v305 = vpack.c.bf16 %v303, %v302
    %v308 = vunpack.c.l.b16 %v304
    %v309 = vunpack.c.h.b16 %v304
    %v310 = vunpack.c.l.b16 %v305
    %v311 = vunpack.c.h.b16 %v305
    %v312 = vpack.c.b16 %v308, %v308
    %v313 = vpack.c.b16 %v309, %v309
    %v314 = vpack.c.b16 %v310, %v310
    %v315 = vpack.c.b16 %v311, %v311
    %vm320 = vcmask 257024
    %321 = vst.msk [vmem:[%s4] sm:$0xf] %vm320, %v312
    %322 = vst.msk [vmem:[%s4 + $0x4] sm:$0xf] %vm320, %v313
    %323 = vst.msk [vmem:[%s4 + $0x8] sm:$0xf] %vm320, %v314
    %324 = vst.msk [vmem:[%s4 + $0xc] sm:$0xf] %vm320, %v315
  $region25: #{encoder_2d_forward.6} parent=0 // pred_fallthru
    _
  // Predicated region
  $region26: #{encoder_2d_forward.6} parent=0 // pred_check
    _
  $region27: #{encoder_2d_forward.6} parent=0 // pred_check_branch
    %326 = sbr.rel (0) target = $region29
  $region28: #{encoder_2d_forward.6} parent=0 // pred_region
    _
  $region29: #{encoder_2d_forward.6} parent=0 // pred_fallthru
    _
  // Predicated region
  $region30: #{encoder_2d_forward.6} parent=0 // pred_check
    _
  $region31: #{encoder_2d_forward.6} parent=0 // pred_check_branch
    %328 = sbr.rel (0) target = $region33
  $region32: #{encoder_2d_forward.6} parent=0 // pred_region
    _
  $region33: #{encoder_2d_forward.6} parent=0 // pred_fallthru
    _

// kernel: encoder_2d_forward.7
$region0: #{encoder_2d_forward.7}
  #allocation0 [shape = 'u32[]', space=smem, size = 0x4, offset = 0x4, fixed_abs, tag = 'smem constant byte address 0x4 - core index']
  #allocation1 [shape = 'u32[144,128]{1,0:T(1,128)}', space=vmem, size = 0x12000, scoped, tag = 'internal scratch']
  #allocation2 [shape = 'f32[8,128]{1,0:T(8,128)}', space=vmem, size = 0x1000, scoped, tag = 'scratch operand']
  #allocation3 [shape = 'f32[1,128]{1,0:T(1,128)}', space=vmem, size = 0x200, scoped, tag = 'scratch operand']
  #allocation4 [shape = 'f32[1,128]{1,0:T(1,128)}', space=vmem, size = 0x200, scoped, tag = 'scratch operand']
  %s0 = inlined_call_operand.vmem [shape: bf16[8,384], index: 0, kind: input, shape index: {}]
  %s1 = inlined_call_operand.vmem [shape: bf16[384,128], index: 1, kind: input, shape index: {}]
  %s2 = inlined_call_operand.vmem [shape: f32[1,128], index: 2, kind: input, shape index: {}]
  %s3 = inlined_call_operand.vmem [shape: f32[1,128], index: 3, kind: input, shape index: {}]
  %s4 = inlined_call_operand.vmem [shape: bf16[8,64], index: 4, kind: output, shape index: {}]
  %s5 = sld [smem:[#allocation0]]
  $region34: #{encoder_2d_forward.7} parent=0
    _
  %s7 = ssub.s32 1, %s5
  %s8 = scalar_select 0, %s7, %s5
  // Predicated region
  $region2: #{encoder_2d_forward.7} parent=0 // pred_check
    _
  $region3: #{encoder_2d_forward.7} parent=0 // pred_check_branch
    %10 = sbr.rel (0) target = $region5
  $region4: #{encoder_2d_forward.7} parent=0 // pred_region
    _
  $region5: #{encoder_2d_forward.7} parent=0 // pred_fallthru
    _
  // Predicated region
  $region6: #{encoder_2d_forward.7} parent=0 // pred_check
    _
  $region7: #{encoder_2d_forward.7} parent=0 // pred_check_branch
    %12 = sbr.rel (0) target = $region9
  $region8: #{encoder_2d_forward.7} parent=0 // pred_region
    _
  $region9: #{encoder_2d_forward.7} parent=0 // pred_fallthru
    _
  // Predicated region
  $region10: #{encoder_2d_forward.7} parent=0 // pred_check
    _
  $region11: #{encoder_2d_forward.7} parent=0 // pred_check_branch
    %14 = sbr.rel (0) target = $region13
  $region12: #{encoder_2d_forward.7} parent=0 // pred_region
    _
  $region13: #{encoder_2d_forward.7} parent=0 // pred_fallthru
    _
  // Predicated region
  $region14: #{encoder_2d_forward.7} parent=0 // pred_check
    _
  $region15: #{encoder_2d_forward.7} parent=0 // pred_check_branch
    %16 = sbr.rel (0) target = $region17
  $region16: #{encoder_2d_forward.7} parent=0 // pred_region
    _
  $region17: #{encoder_2d_forward.7} parent=0 // pred_fallthru
    _
  %p18 = scmp.eq.s32.totalorder 0, 0
  // Predicated region
  $region18: #{encoder_2d_forward.7} parent=0 // pred_check
    %p19 = pneg %p18
  $region19: #{encoder_2d_forward.7} parent=0 // pred_check_branch
    %21 = sbr.rel (%p19) target = $region21
  $region20: #{encoder_2d_forward.7} parent=0 // pred_region
    %22 = vst [vmem:[#allocation3] sm:$0x1] 0.0
    %23 = vst [vmem:[#allocation4] sm:$0x1] 0.0
  $region21: #{encoder_2d_forward.7} parent=0 // pred_fallthru
    _
  %v24 = vld [vmem:[%s0] sm:$0xff]
  %v25 = vld [vmem:[%s0 + $0x8] sm:$0xf]
  %v26 = vld [vmem:[%s1] sm:$0xf]
  %v27 = vld [vmem:[%s1 + $0x4] sm:$0xf]
  %v28 = vld [vmem:[%s1 + $0x8] sm:$0xf]
  %v29 = vld [vmem:[%s1 + $0xc] sm:$0xf]
  %v30 = vld [vmem:[%s1 + $0x10] sm:$0xf]
  %v31 = vld [vmem:[%s1 + $0x14] sm:$0xf]
  %v32 = vld [vmem:[%s1 + $0x18] sm:$0xf]
  %v33 = vld [vmem:[%s1 + $0x1c] sm:$0xf]
  %v34 = vld [vmem:[%s1 + $0x20] sm:$0xf]
  %v35 = vld [vmem:[%s1 + $0x24] sm:$0xf]
  %v36 = vld [vmem:[%s1 + $0x28] sm:$0xf]
  %v37 = vld [vmem:[%s1 + $0x2c] sm:$0xf]
  %v38 = vld [vmem:[%s1 + $0x30] sm:$0xf]
  %v39 = vld [vmem:[%s1 + $0x34] sm:$0xf]
  %v40 = vld [vmem:[%s1 + $0x38] sm:$0xf]
  %v41 = vld [vmem:[%s1 + $0x3c] sm:$0xf]
  %v42 = vld [vmem:[%s1 + $0x40] sm:$0xf]
  %v43 = vld [vmem:[%s1 + $0x44] sm:$0xf]
  %v44 = vld [vmem:[%s1 + $0x48] sm:$0xf]
  %v45 = vld [vmem:[%s1 + $0x4c] sm:$0xf]
  %v46 = vld [vmem:[%s1 + $0x50] sm:$0xf]
  %v47 = vld [vmem:[%s1 + $0x54] sm:$0xf]
  %v48 = vld [vmem:[%s1 + $0x58] sm:$0xf]
  %v49 = vld [vmem:[%s1 + $0x5c] sm:$0xf]
  %v50 = vld [vmem:[%s1 + $0x60] sm:$0xf]
  %v51 = vld [vmem:[%s1 + $0x64] sm:$0xf]
  %v52 = vld [vmem:[%s1 + $0x68] sm:$0xf]
  %v53 = vld [vmem:[%s1 + $0x6c] sm:$0xf]
  %v54 = vld [vmem:[%s1 + $0x70] sm:$0xf]
  %v55 = vld [vmem:[%s1 + $0x74] sm:$0xf]
  %v56 = vld [vmem:[%s1 + $0x78] sm:$0xf]
  %v57 = vld [vmem:[%s1 + $0x7c] sm:$0xf]
  %v58 = vld [vmem:[%s1 + $0x80] sm:$0xf]
  %v59 = vld [vmem:[%s1 + $0x84] sm:$0xf]
  %v60 = vld [vmem:[%s1 + $0x88] sm:$0xf]
  %v61 = vld [vmem:[%s1 + $0x8c] sm:$0xf]
  %v62 = vld [vmem:[%s1 + $0x90] sm:$0xf]
  %v63 = vld [vmem:[%s1 + $0x94] sm:$0xf]
  %v64 = vld [vmem:[%s1 + $0x98] sm:$0xf]
  %v65 = vld [vmem:[%s1 + $0x9c] sm:$0xf]
  %v66 = vld [vmem:[%s1 + $0xa0] sm:$0xf]
  %v67 = vld [vmem:[%s1 + $0xa4] sm:$0xf]
  %v68 = vld [vmem:[%s1 + $0xa8] sm:$0xf]
  %v69 = vld [vmem:[%s1 + $0xac] sm:$0xf]
  %v70 = vld [vmem:[%s1 + $0xb0] sm:$0xf]
  %v71 = vld [vmem:[%s1 + $0xb4] sm:$0xf]
  %v72 = vld [vmem:[%s1 + $0xb8] sm:$0xf]
  %v73 = vld [vmem:[%s1 + $0xbc] sm:$0xf]
  %v76 = vunpack.c.l.b16 %v24
  %v77 = vunpack.c.h.b16 %v24
  %v78 = vunpack.c.l.b16 %v25
  %v79 = vpack.c.b16 %v76, %v76
  %v80 = vpack.c.b16 %v77, %v77
  %v81 = vpack.c.b16 %v78, %v78
  %v133 = vunpack.c.l.b16 %v26
  %v134 = vunpack.c.l.b16 %v27
  %v135 = vunpack.c.l.b16 %v28
  %v136 = vunpack.c.l.b16 %v29
  %v137 = vunpack.c.l.b16 %v30
  %v138 = vunpack.c.l.b16 %v31
  %v139 = vunpack.c.l.b16 %v32
  %v140 = vunpack.c.l.b16 %v33
  %v141 = vunpack.c.l.b16 %v34
  %v142 = vunpack.c.l.b16 %v35
  %v143 = vunpack.c.l.b16 %v36
  %v144 = vunpack.c.l.b16 %v37
  %v145 = vunpack.c.l.b16 %v38
  %v146 = vunpack.c.l.b16 %v39
  %v147 = vunpack.c.l.b16 %v40
  %v148 = vunpack.c.l.b16 %v41
  %v149 = vunpack.c.l.b16 %v42
  %v150 = vunpack.c.l.b16 %v43
  %v151 = vunpack.c.l.b16 %v44
  %v152 = vunpack.c.l.b16 %v45
  %v153 = vunpack.c.l.b16 %v46
  %v154 = vunpack.c.l.b16 %v47
  %v155 = vunpack.c.l.b16 %v48
  %v156 = vunpack.c.l.b16 %v49
  %v157 = vunpack.c.l.b16 %v50
  %v158 = vunpack.c.l.b16 %v51
  %v159 = vunpack.c.l.b16 %v52
  %v160 = vunpack.c.l.b16 %v53
  %v161 = vunpack.c.l.b16 %v54
  %v162 = vunpack.c.l.b16 %v55
  %v163 = vunpack.c.l.b16 %v56
  %v164 = vunpack.c.l.b16 %v57
  %v165 = vunpack.c.l.b16 %v58
  %v166 = vunpack.c.l.b16 %v59
  %v167 = vunpack.c.l.b16 %v60
  %v168 = vunpack.c.l.b16 %v61
  %v169 = vunpack.c.l.b16 %v62
  %v170 = vunpack.c.l.b16 %v63
  %v171 = vunpack.c.l.b16 %v64
  %v172 = vunpack.c.l.b16 %v65
  %v173 = vunpack.c.l.b16 %v66
  %v174 = vunpack.c.l.b16 %v67
  %v175 = vunpack.c.l.b16 %v68
  %v176 = vunpack.c.l.b16 %v69
  %v177 = vunpack.c.l.b16 %v70
  %v178 = vunpack.c.l.b16 %v71
  %v179 = vunpack.c.l.b16 %v72
  %v180 = vunpack.c.l.b16 %v73
  %v181 = vpack.c.b16 %v134, %v133
  %v182 = vpack.c.b16 %v136, %v135
  %v183 = vpack.c.b16 %v138, %v137
  %v184 = vpack.c.b16 %v140, %v139
  %v185 = vpack.c.b16 %v142, %v141
  %v186 = vpack.c.b16 %v144, %v143
  %v187 = vpack.c.b16 %v146, %v145
  %v188 = vpack.c.b16 %v148, %v147
  %v189 = vpack.c.b16 %v150, %v149
  %v190 = vpack.c.b16 %v152, %v151
  %v191 = vpack.c.b16 %v154, %v153
  %v192 = vpack.c.b16 %v156, %v155
  %v193 = vpack.c.b16 %v158, %v157
  %v194 = vpack.c.b16 %v160, %v159
  %v195 = vpack.c.b16 %v162, %v161
  %v196 = vpack.c.b16 %v164, %v163
  %v197 = vpack.c.b16 %v166, %v165
  %v198 = vpack.c.b16 %v168, %v167
  %v199 = vpack.c.b16 %v170, %v169
  %v200 = vpack.c.b16 %v172, %v171
  %v201 = vpack.c.b16 %v174, %v173
  %v202 = vpack.c.b16 %v176, %v175
  %v203 = vpack.c.b16 %v178, %v177
  %v204 = vpack.c.b16 %v180, %v179
  %229 = vmatprep.subr.bf16.mxu0 0
  %230 = vmatpush1.bf16.msra.mxu0 %v181
  %231 = vmatprep.subr.bf16.mxu0 0
  %232 = vmatpush1.bf16.msra.mxu0 %v182
  %233 = vmatprep.subr.bf16.mxu0 0
  %234 = vmatpush1.bf16.msra.mxu0 %v183
  %235 = vmatprep.subr.bf16.mxu0 0
  %236 = vmatpush1.bf16.msra.mxu0 %v184
  %237 = vmatprep.subr.bf16.mxu0 0
  %238 = vmatpush1.bf16.msra.mxu0 %v185
  %239 = vmatprep.subr.bf16.mxu0 0
  %240 = vmatpush1.bf16.msra.mxu0 %v186
  %241 = vmatprep.subr.bf16.mxu0 0
  %242 = vmatpush1.bf16.msra.mxu0 %v187
  %243 = vmatprep.subr.bf16.mxu0 0
  %244 = vmatpush1.bf16.msra.mxu0 %v188
  %245 = vmatprep.subr.bf16.mxu0 0
  %246 = vmatpush1.bf16.msra.mxu0 %v189
  %247 = vmatprep.subr.bf16.mxu0 0
  %248 = vmatpush1.bf16.msra.mxu0 %v190
  %249 = vmatprep.subr.bf16.mxu0 0
  %250 = vmatpush1.bf16.msra.mxu0 %v191
  %251 = vmatprep.subr.bf16.mxu0 0
  %252 = vmatpush1.bf16.msra.mxu0 %v192
  %253 = vmatprep.subr.bf16.mxu0 0
  %254 = vmatpush1.bf16.msra.mxu0 %v193
  %255 = vmatprep.subr.bf16.mxu0 0
  %256 = vmatpush1.bf16.msra.mxu0 %v194
  %257 = vmatprep.subr.bf16.mxu0 0
  %258 = vmatpush1.bf16.msra.mxu0 %v195
  %259 = vmatprep.subr.bf16.mxu0 0
  %260 = vmatpush1.bf16.msra.mxu0 %v196
  %261 = vmatprep.mubr.bf16.mxu0 %v80
  %262 = vmatmul.mubr.bf16.gmra.mrb[0].mxu0 %v79
  %v263 = vpop.f32.mrb[0].mxu0
  %v264 = vadd.f32 0.0, %v263
  %v265 = vpop.f32.mrb[0].mxu0
  %v266 = vpop.f32.mrb[0].mxu0
  %v267 = vpop.f32.mrb[0].mxu0
  %268 = vdwg.mxu0
  %269 = vmatprep.subr.bf16.mxu0 0
  %270 = vmatpush1.bf16.msra.mxu0 %v197
  %271 = vmatprep.subr.bf16.mxu0 0
  %272 = vmatpush1.bf16.msra.mxu0 %v198
  %273 = vmatprep.subr.bf16.mxu0 0
  %274 = vmatpush1.bf16.msra.mxu0 %v199
  %275 = vmatprep.subr.bf16.mxu0 0
  %276 = vmatpush1.bf16.msra.mxu0 %v200
  %277 = vmatprep.subr.bf16.mxu0 0
  %278 = vmatpush1.bf16.msra.mxu0 %v201
  %279 = vmatprep.subr.bf16.mxu0 0
  %280 = vmatpush1.bf16.msra.mxu0 %v202
  %281 = vmatprep.subr.bf16.mxu0 0
  %282 = vmatpush1.bf16.msra.mxu0 %v203
  %283 = vmatprep.subr.bf16.mxu0 0
  %284 = vmatpush1.bf16.msra.mxu0 %v204
  %285 = vmatprep.subr.bf16.mxu0 0
  %286 = vmatpush1.bf16.msra.mxu0 0
  %287 = vmatprep.subr.bf16.mxu0 0
  %288 = vmatpush1.bf16.msra.mxu0 0
  %289 = vmatprep.subr.bf16.mxu0 0
  %290 = vmatpush1.bf16.msra.mxu0 0
  %291 = vmatprep.subr.bf16.mxu0 0
  %292 = vmatpush1.bf16.msra.mxu0 0
  %293 = vmatprep.subr.bf16.mxu0 0
  %294 = vmatpush1.bf16.msra.mxu0 0
  %295 = vmatprep.subr.bf16.mxu0 0
  %296 = vmatpush1.bf16.msra.mxu0 0
  %297 = vmatprep.subr.bf16.mxu0 0
  %298 = vmatpush1.bf16.msra.mxu0 0
  %299 = vmatprep.subr.bf16.mxu0 0
  %300 = vmatpush1.bf16.msra.mxu0 0
  %301 = vmatprep.mubr.bf16.mxu0 0
  %302 = vmatmul.mubr.bf16.gmra.mrb[0].mxu0 %v81
  %v303 = vpop.f32.mrb[0].mxu0
  %v304 = vadd.f32 %v264, %v303
  %v305 = vpop.f32.mrb[0].mxu0
  %v306 = vpop.f32.mrb[0].mxu0
  %v307 = vpop.f32.mrb[0].mxu0
  %308 = vdwg.mxu0
  %s309 = smul.u32 0, 8
  %s310 = scalar_lea.vmem [#allocation2], %s309
  %311 = vst [vmem:[%s310] sm:$0xff] %v304
  %v312 = vld [vmem:[#allocation3] sm:$0x1]
  %v313 = vrot.slane %v304, 4
  %v314 = vadd.f32 %v304, %v313
  %v315 = vrot.slane %v314, 2
  %v316 = vadd.f32 %v314, %v315
  %v317 = vrot.slane %v316, 1
  %v318 = vadd.f32 %v316, %v317
  %v319 = vadd.f32 %v312, %v318
  %320 = vst [vmem:[#allocation3] sm:$0x1] %v319
  %v321 = vld [vmem:[#allocation4] sm:$0x1]
  %v322 = vmul.f32 %v304, %v304
  %v323 = vrot.slane %v322, 4
  %v324 = vadd.f32 %v322, %v323
  %v325 = vrot.slane %v324, 2
  %v326 = vadd.f32 %v324, %v325
  %v327 = vrot.slane %v326, 1
  %v328 = vadd.f32 %v326, %v327
  %v329 = vadd.f32 %v321, %v328
  %330 = vst [vmem:[#allocation4] sm:$0x1] %v329
  // Predicated region
  $region22: #{encoder_2d_forward.7} parent=0 // pred_check
    %p331 = pneg %p18
  $region23: #{encoder_2d_forward.7} parent=0 // pred_check_branch
    %333 = sbr.rel (%p331) target = $region25
  $region24: #{encoder_2d_forward.7} parent=0 // pred_region
    %v334 = vld [vmem:[#allocation3] sm:$0x1]
    %v335 = vmul.f32 %v334, 0.125
    %v336 = vld [vmem:[#allocation4] sm:$0x1]
    %v337 = vmul.f32 %v336, 0.125
    %v338 = vmul.f32 %v335, %v335
    %v339 = vsub.f32 %v337, %v338
    %v340 = vmax.f32 %v339, 0.0
    %v341 = vld [vmem:[%s2] sm:$0x1]
    %v342 = vadd.f32 %v340, 1e-05
    %v343 = vrsqrt.pop %v342
    %v344 = vmul.f32 %v341, %v343
    %v345 = vld [vmem:[%s3] sm:$0x1]
    %v346 = vmul.f32 %v335, %v344
    %v347 = vsub.f32 %v345, %v346
    %v349 = vlaneseq
    %v350 = vshrl.u32 %v349, 7
    %v351 = vsub.s32 0, %v350
    %v352 = vrot.slane %v344, %v351
    %v355 = vlaneseq
    %v356 = vshrl.u32 %v355, 7
    %v357 = vsub.s32 0, %v356
    %v358 = vrot.slane %v347, %v357
    %v360 = vld [vmem:[#allocation2] sm:$0xff]
    %v361 = vmul.f32 %v360, %v352
    %v362 = vadd.f32 %v361, %v358
    %v363 = vmax.f32 %v362, 0.0
    %v364 = vpack.c.bf16 %v363, %v363
    %vm365 = vcmask 519168
    %366 = vst.msk [vmem:[%s4] sm:$0xf] %vm365, %v364
  $region25: #{encoder_2d_forward.7} parent=0 // pred_fallthru
    _
  // Predicated region
  $region26: #{encoder_2d_forward.7} parent=0 // pred_check
    _
  $region27: #{encoder_2d_forward.7} parent=0 // pred_check_branch
    %368 = sbr.rel (0) target = $region29
  $region28: #{encoder_2d_forward.7} parent=0 // pred_region
    _
  $region29: #{encoder_2d_forward.7} parent=0 // pred_fallthru
    _
  // Predicated region
  $region30: #{encoder_2d_forward.7} parent=0 // pred_check
    _
  $region31: #{encoder_2d_forward.7} parent=0 // pred_check_branch
    %370 = sbr.rel (0) target = $region33
  $region32: #{encoder_2d_forward.7} parent=0 // pred_region
    _
  $region33: #{encoder_2d_forward.7} parent=0 // pred_fallthru
    _

</llo_original>
